<compile_context>
chip_gen: v7x
topology: tpu7x:2x2x1
jax: 0.10.0
libtpu: 0.0.40
codegen_flags: <defaults>
</compile_context>

<pallas_src>
import jax
import jax.numpy as jnp
from jax.experimental import pallas as pl
from jax.experimental.pallas import tpu as pltpu

STATE_DIM = 29
ACTION_DIM = 4
H1, H1P = 700, 768   # padded to MXU/lane-friendly multiples
H2, H2P = 500, 512
TILE_B = 256         # batch tile (lane dim of activations); clamped for tiny B


def _round_up(n, m):
    return (n + m - 1) // m * m


def critic_kernel(xT_ref, uT_ref, w1x_ref, w1u_ref, b1_ref,
                  w2_ref, b2_ref, w3_ref, b3_ref, o_ref):
    # Activations are [features, TILE_B]; bf16 weights resident in VMEM.
    xT = xT_ref[...].astype(jnp.bfloat16)          # [29, TB]
    uT = uT_ref[...].astype(jnp.bfloat16)          # [ 4, TB]

    # layer 1: h1 = relu(W1x @ x + W1u @ u + b1)            [768, TB] f32
    h1 = (jnp.dot(w1x_ref[...], xT, preferred_element_type=jnp.float32)
          + jnp.dot(w1u_ref[...], uT, preferred_element_type=jnp.float32)
          + b1_ref[...])
    h1 = jnp.maximum(h1, 0.0)

    # layer 2: h2 = relu(W2 @ h1 + b2)                      [512, TB] f32
    h2 = jnp.dot(w2_ref[...], h1.astype(jnp.bfloat16),
                 preferred_element_type=jnp.float32) + b2_ref[...]
    h2 = jnp.maximum(h2, 0.0)

    # layer 3 (500->1): VPU multiply + sublane reduction instead of an
    # almost-empty MXU pass; result is lane-dense [1, TB] (batch on lanes).
    q = jnp.sum(h2 * w3_ref[...], axis=0, keepdims=True) + b3_ref[...]
    o_ref[...] = q.astype(o_ref.dtype)


def critic_forward(x, u, params, tile_b=TILE_B):
    """x: [B, 29] f32, u: [B, 4] f32 -> q: [B, 1] f32."""
    w1x, w1u, b1, w2, b2, w3, b3 = params
    B = x.shape[0]

    tb = min(tile_b, _round_up(B, 8))
    B_pad = _round_up(B, tb)
    grid = (B_pad // tb,)

    # transpose + zero-pad batch so it tiles cleanly on the lane axis
    xT = jnp.pad(x.T, ((0, 0), (0, B_pad - B)))    # [29, B_pad]
    uT = jnp.pad(u.T, ((0, 0), (0, B_pad - B)))    # [ 4, B_pad]

    def resident(a):   # whole-array block, constant index -> DMA'd once, stays in VMEM
        return pl.BlockSpec(a.shape, lambda i: (0, 0))

    qT = pl.pallas_call(
        critic_kernel,
        out_shape=jax.ShapeDtypeStruct((1, B_pad), jnp.float32),
        grid=grid,
        in_specs=[
            pl.BlockSpec((STATE_DIM, tb), lambda i: (0, i)),
            pl.BlockSpec((ACTION_DIM, tb), lambda i: (0, i)),
            resident(w1x), resident(w1u), resident(b1),
            resident(w2), resident(b2),
            resident(w3), resident(b3),
        ],
        out_specs=pl.BlockSpec((1, tb), lambda i: (0, i)),
        compiler_params=pltpu.CompilerParams(
            dimension_semantics=("parallel",),
            vmem_limit_bytes=32 * 1024 * 1024,
        ),
    )(xT, uT, w1x, w1u, b1, w2, b2, w3, b3)

    return qT[0, :B][:, None]                      # back to [B, 1]


def init_params(key):
    """PyTorch nn.Linear default init U(-1/sqrt(fan_in), +1/sqrt(fan_in)),
    kept in torch's [out, in] layout, zero-padded to MXU-friendly sizes and
    cast to the kernel storage dtypes (bf16 matmul weights, f32 biases/w3)."""
    def linear(k, fan_in, fan_out):
        kw, kb = jax.random.split(k)
        bound = 1.0 / (fan_in ** 0.5)
        w = jax.random.uniform(kw, (fan_out, fan_in), jnp.float32, -bound, bound)
        b = jax.random.uniform(kb, (fan_out, 1), jnp.float32, -bound, bound)
        return w, b

    k1, k2, k3 = jax.random.split(key, 3)
    w1, b1 = linear(k1, STATE_DIM + ACTION_DIM, H1)   # [700, 33], [700, 1]
    w2, b2 = linear(k2, H1, H2)                       # [500, 700], [500, 1]
    w3, b3 = linear(k3, H2, 1)                        # [1, 500],   [1, 1]

    # zero-pad hidden dims (exactly preserves the math)
    w1p = jnp.pad(w1, ((0, H1P - H1), (0, 0)))
    b1p = jnp.pad(b1, ((0, H1P - H1), (0, 0)))
    w2p = jnp.pad(w2, ((0, H2P - H2), (0, H1P - H1)))
    b2p = jnp.pad(b2, ((0, H2P - H2), (0, 0)))
    w3p = jnp.pad(w3, ((0, 0), (0, H2P - H2)))        # [1, 512]

    return (
        w1p[:, :STATE_DIM].astype(jnp.bfloat16),      # w1x [768, 29]  bf16
        w1p[:, STATE_DIM:].astype(jnp.bfloat16),      # w1u [768,  4]  bf16
        b1p,                                          # b1  [768,  1]  f32
        w2p.astype(jnp.bfloat16),                     # w2  [512, 768] bf16
        b2p,                                          # b2  [512,  1]  f32
        jnp.asarray(w3p.T),                           # w3  [512,  1]  f32 (VPU path)
        b3,                                           # b3  [1, 1]     f32
    )


def reference_forward(x, u, params):
    """Pure-JAX reference using the same (bf16-quantized, padded) weights but
    f32 activations; the kernel additionally rounds activations to bf16 for
    the MXU, hence the loose tolerance in the check."""
    w1x, w1u, b1, w2, b2, w3, b3 = params
    w1 = jnp.concatenate([w1x, w1u], axis=1).astype(jnp.float32)  # [768, 33]
    xu = jnp.concatenate([x, u], axis=1)                          # [B, 33]
    h1 = jnp.maximum(xu @ w1.T + b1[:, 0], 0.0)                   # [B, 768]
    h2 = jnp.maximum(h1 @ w2.astype(jnp.float32).T + b2[:, 0], 0.0)
    return h2 @ w3 + b3                                           # [B, 1]


if __name__ == "__main__":
    key = jax.random.PRNGKey(0)
    kp, kx, ku = jax.random.split(key, 3)

    params = init_params(kp)

    B = 8
    x = jax.random.normal(kx, (B, STATE_DIM), jnp.float32)
    u = jax.random.normal(ku, (B, ACTION_DIM), jnp.float32)

    q = jax.block_until_ready(critic_forward(x, u, params))
    q_ref = reference_forward(x, u, params)

    assert q.shape == (B, 1)
    max_err = float(jnp.max(jnp.abs(q - q_ref)))
    assert jnp.allclose(q, q_ref, atol=3e-2, rtol=3e-2), (
        f"mismatch vs JAX reference, max abs err = {max_err}")

    print("KERNEL_OK")
</pallas_src>

<mosaic_0001>
module attributes {stable_mosaic.version = 11 : i64} {
  func.func @critic_kernel(%arg0: i32, %arg1: memref<29x8xf32, #tpu.memory_space<vmem>>, %arg2: memref<4x8xf32, #tpu.memory_space<vmem>>, %arg3: memref<768x29xbf16, #tpu.memory_space<vmem>>, %arg4: memref<768x4xbf16, #tpu.memory_space<vmem>>, %arg5: memref<768x1xf32, #tpu.memory_space<vmem>>, %arg6: memref<512x768xbf16, #tpu.memory_space<vmem>>, %arg7: memref<512x1xf32, #tpu.memory_space<vmem>>, %arg8: memref<512x1xf32, #tpu.memory_space<vmem>>, %arg9: memref<1x1xf32, #tpu.memory_space<vmem>>, %arg10: memref<1x8xf32, #tpu.memory_space<vmem>>) attributes {dimension_semantics = [#tpu.dimension_semantics<parallel>], iteration_bounds = array<i64: 1>, scalar_prefetch = 0 : i64, scratch_operands = 0 : i64, tpu.core_type = #tpu.core_type<tc>, window_params = [{transform_indices = @transform_0, window_bounds = array<i64: 29, 8>}, {transform_indices = @transform_1, window_bounds = array<i64: 4, 8>}, {pipeline_mode = #tpu.pipeline_mode<synchronous>, transform_indices = @transform_2, window_bounds = array<i64: 768, 29>}, {pipeline_mode = #tpu.pipeline_mode<synchronous>, transform_indices = @transform_3, window_bounds = array<i64: 768, 4>}, {pipeline_mode = #tpu.pipeline_mode<synchronous>, transform_indices = @transform_4, window_bounds = array<i64: 768, 1>}, {pipeline_mode = #tpu.pipeline_mode<synchronous>, transform_indices = @transform_5, window_bounds = array<i64: 512, 768>}, {pipeline_mode = #tpu.pipeline_mode<synchronous>, transform_indices = @transform_6, window_bounds = array<i64: 512, 1>}, {pipeline_mode = #tpu.pipeline_mode<synchronous>, transform_indices = @transform_7, window_bounds = array<i64: 512, 1>}, {pipeline_mode = #tpu.pipeline_mode<synchronous>, transform_indices = @transform_8, window_bounds = array<i64: 1, 1>}, {transform_indices = @transform_9, window_bounds = array<i64: 1, 8>}]} {
    %c0 = arith.constant 0 : index
    %c0_0 = arith.constant 0 : index
    %0 = vector.load %arg1[%c0, %c0_0] : memref<29x8xf32, #tpu.memory_space<vmem>>, vector<29x8xf32>
    %1 = arith.truncf %0 : vector<29x8xf32> to vector<29x8xbf16>
    %c0_1 = arith.constant 0 : index
    %c0_2 = arith.constant 0 : index
    %2 = vector.load %arg2[%c0_1, %c0_2] : memref<4x8xf32, #tpu.memory_space<vmem>>, vector<4x8xf32>
    %3 = arith.truncf %2 : vector<4x8xf32> to vector<4x8xbf16>
    %c0_3 = arith.constant 0 : index
    %c0_4 = arith.constant 0 : index
    %4 = vector.load %arg3[%c0_3, %c0_4] : memref<768x29xbf16, #tpu.memory_space<vmem>>, vector<768x29xbf16>
    %cst = arith.constant dense<0.000000e+00> : vector<768x8xf32>
    %5 = tpu.matmul %4, %1, %cst {dimension_numbers = #tpu.dot_dimension_numbers<[1], [0], [0], [1], [0, 0, 1, 1], [], []>} : vector<768x29xbf16>, vector<29x8xbf16>, vector<768x8xf32> -> vector<768x8xf32>
    %c0_5 = arith.constant 0 : index
    %c0_6 = arith.constant 0 : index
    %6 = vector.load %arg4[%c0_5, %c0_6] : memref<768x4xbf16, #tpu.memory_space<vmem>>, vector<768x4xbf16>
    %cst_7 = arith.constant dense<0.000000e+00> : vector<768x8xf32>
    %7 = tpu.matmul %6, %3, %cst_7 {dimension_numbers = #tpu.dot_dimension_numbers<[1], [0], [0], [1], [0, 0, 1, 1], [], []>} : vector<768x4xbf16>, vector<4x8xbf16>, vector<768x8xf32> -> vector<768x8xf32>
    %8 = arith.addf %5, %7 : vector<768x8xf32>
    %c0_8 = arith.constant 0 : index
    %c0_9 = arith.constant 0 : index
    %9 = vector.load %arg5[%c0_8, %c0_9] : memref<768x1xf32, #tpu.memory_space<vmem>>, vector<768x1xf32>
    %10 = vector.broadcast %9 : vector<768x1xf32> to vector<768x8xf32>
    %11 = arith.addf %8, %10 : vector<768x8xf32>
    %cst_10 = arith.constant 0.000000e+00 : f32
    %12 = vector.broadcast %cst_10 : f32 to vector<768x8xf32>
    %13 = arith.maximumf %11, %12 : vector<768x8xf32>
    %c0_11 = arith.constant 0 : index
    %c0_12 = arith.constant 0 : index
    %14 = vector.load %arg6[%c0_11, %c0_12] : memref<512x768xbf16, #tpu.memory_space<vmem>>, vector<512x768xbf16>
    %15 = arith.truncf %13 : vector<768x8xf32> to vector<768x8xbf16>
    %cst_13 = arith.constant dense<0.000000e+00> : vector<512x8xf32>
    %16 = tpu.matmul %14, %15, %cst_13 {dimension_numbers = #tpu.dot_dimension_numbers<[1], [0], [0], [1], [0, 0, 1, 1], [], []>} : vector<512x768xbf16>, vector<768x8xbf16>, vector<512x8xf32> -> vector<512x8xf32>
    %c0_14 = arith.constant 0 : index
    %c0_15 = arith.constant 0 : index
    %17 = vector.load %arg7[%c0_14, %c0_15] : memref<512x1xf32, #tpu.memory_space<vmem>>, vector<512x1xf32>
    %18 = vector.broadcast %17 : vector<512x1xf32> to vector<512x8xf32>
    %19 = arith.addf %16, %18 : vector<512x8xf32>
    %cst_16 = arith.constant 0.000000e+00 : f32
    %20 = vector.broadcast %cst_16 : f32 to vector<512x8xf32>
    %21 = arith.maximumf %19, %20 : vector<512x8xf32>
    %c0_17 = arith.constant 0 : index
    %c0_18 = arith.constant 0 : index
    %22 = vector.load %arg8[%c0_17, %c0_18] : memref<512x1xf32, #tpu.memory_space<vmem>>, vector<512x1xf32>
    %23 = vector.broadcast %22 : vector<512x1xf32> to vector<512x8xf32>
    %24 = arith.mulf %21, %23 : vector<512x8xf32>
    %cst_19 = arith.constant dense<0.000000e+00> : vector<8xf32>
    %25 = vector.multi_reduction <add>, %24, %cst_19 [0] : vector<512x8xf32> to vector<8xf32>
    %26 = vector.shape_cast %25 : vector<8xf32> to vector<1x8xf32>
    %c0_20 = arith.constant 0 : index
    %c0_21 = arith.constant 0 : index
    %27 = vector.load %arg9[%c0_20, %c0_21] : memref<1x1xf32, #tpu.memory_space<vmem>>, vector<1x1xf32>
    %28 = vector.broadcast %27 : vector<1x1xf32> to vector<1x8xf32>
    %29 = arith.addf %26, %28 : vector<1x8xf32>
    %c0_22 = arith.constant 0 : index
    %c0_23 = arith.constant 0 : index
    %30 = vector.load %arg10[%c0_22, %c0_23] : memref<1x8xf32, #tpu.memory_space<vmem>>, vector<1x8xf32>
    tpu.vector_store %arg10[%c0_22, %c0_23], %29 {strides = array<i32>} : memref<1x8xf32, #tpu.memory_space<vmem>>, vector<1x8xf32>,
    return
  }
  func.func @transform_0(%arg0: i32) -> (i32, i32) {
    %c0_i32 = arith.constant 0 : i32
    %c0_i32_0 = arith.constant 0 : i32
    return %c0_i32, %arg0 : i32, i32
  }
  func.func @transform_1(%arg0: i32) -> (i32, i32) {
    %c0_i32 = arith.constant 0 : i32
    %c0_i32_0 = arith.constant 0 : i32
    return %c0_i32, %arg0 : i32, i32
  }
  func.func @transform_2(%arg0: i32) -> (i32, i32) {
    %c0_i32 = arith.constant 0 : i32
    %c0_i32_0 = arith.constant 0 : i32
    %c0_i32_1 = arith.constant 0 : i32
    return %c0_i32, %c0_i32_0 : i32, i32
  }
  func.func @transform_3(%arg0: i32) -> (i32, i32) {
    %c0_i32 = arith.constant 0 : i32
    %c0_i32_0 = arith.constant 0 : i32
    %c0_i32_1 = arith.constant 0 : i32
    return %c0_i32, %c0_i32_0 : i32, i32
  }
  func.func @transform_4(%arg0: i32) -> (i32, i32) {
    %c0_i32 = arith.constant 0 : i32
    %c0_i32_0 = arith.constant 0 : i32
    %c0_i32_1 = arith.constant 0 : i32
    return %c0_i32, %c0_i32_0 : i32, i32
  }
  func.func @transform_5(%arg0: i32) -> (i32, i32) {
    %c0_i32 = arith.constant 0 : i32
    %c0_i32_0 = arith.constant 0 : i32
    %c0_i32_1 = arith.constant 0 : i32
    return %c0_i32, %c0_i32_0 : i32, i32
  }
  func.func @transform_6(%arg0: i32) -> (i32, i32) {
    %c0_i32 = arith.constant 0 : i32
    %c0_i32_0 = arith.constant 0 : i32
    %c0_i32_1 = arith.constant 0 : i32
    return %c0_i32, %c0_i32_0 : i32, i32
  }
  func.func @transform_7(%arg0: i32) -> (i32, i32) {
    %c0_i32 = arith.constant 0 : i32
    %c0_i32_0 = arith.constant 0 : i32
    %c0_i32_1 = arith.constant 0 : i32
    return %c0_i32, %c0_i32_0 : i32, i32
  }
  func.func @transform_8(%arg0: i32) -> (i32, i32) {
    %c0_i32 = arith.constant 0 : i32
    %c0_i32_0 = arith.constant 0 : i32
    %c0_i32_1 = arith.constant 0 : i32
    return %c0_i32, %c0_i32_0 : i32, i32
  }
  func.func @transform_9(%arg0: i32) -> (i32, i32) {
    %c0_i32 = arith.constant 0 : i32
    %c0_i32_0 = arith.constant 0 : i32
    return %c0_i32, %arg0 : i32, i32
  }
}

</mosaic_0001>

<llo_original>
// kernel: tpu_custom_call.1
$region0: #{tpu_custom_call.1}
  #allocation0 [shape = 'u32[]', space=smem, size = 0x4, offset = 0x4, fixed_abs, tag = 'smem constant byte address 0x4 - core index']
  #allocation1 [shape = 'u32[144,128]{1,0:T(1,128)}', space=vmem, size = 0x12000, scoped, tag = 'internal scratch']
  #allocation2 [shape = 'f32[1,1]{1,0:T(1,128)S(1)}', space=vmem, size = 0x200, scoped, tag = 'scoped memory for tpu_custom_call.1']
  %s0 = inlined_call_operand.vmem [shape: f32[29,8], index: 0, kind: input, shape index: {}]
  %s1 = inlined_call_operand.vmem [shape: f32[4,8], index: 1, kind: input, shape index: {}]
  %s2 = inlined_call_operand.vmem [shape: bf16[768,29], index: 2, kind: input, shape index: {}]
  %s3 = inlined_call_operand.vmem [shape: bf16[768,4], index: 3, kind: input, shape index: {}]
  %s4 = inlined_call_operand.vmem [shape: f32[768,1], index: 4, kind: input, shape index: {}]
  %s5 = inlined_call_operand.vmem [shape: bf16[512,768], index: 5, kind: input, shape index: {}]
  %s6 = inlined_call_operand.vmem [shape: f32[512,1], index: 6, kind: input, shape index: {}]
  %s7 = inlined_call_operand.vmem [shape: f32[512,1], index: 7, kind: input, shape index: {}]
  %s8 = inlined_call_operand.<no memory space> [shape: f32[1,1], index: 8, kind: input, shape index: {}]
  %s9 = inlined_call_operand.hbm [shape: f32[1,8], index: 9, kind: output, shape index: {}]
  %s10 = sld [smem:[#allocation0]]
  $region46: #{tpu_custom_call.1} parent=0
    _
  %s12 = ssub.s32 1, %s10
  %s13 = scalar_select 0, %s12, %s10
  %v14 = vstv %s8
  %15 = vst [vmem:[#allocation2] sm:$0x1] %v14
  $region1: #{tpu_custom_call.1} parent=0
    #allocation3 [shape = 'u8[512]{0}', space=vmem, size = 0x400, scoped, tag = 'output window, operand 0, single buffered']
    #allocation4 [shape = 's32[1]{0}', space=sflag, size = 0x4, scoped, tag = 'scoped memory for tpu_custom_call.1']
    %16 = vsyncpa [#allocation4], 0
    // Predicated region
    $region2: #{tpu_custom_call.1} parent=1 // pred_check
      _
    $region3: #{tpu_custom_call.1} parent=1 // pred_check_branch
      %18 = sbr.rel (0) target = $region5
    $region4: #{tpu_custom_call.1} parent=1 // pred_region
      _
    $region5: #{tpu_custom_call.1} parent=1 // pred_fallthru
      _
    // Predicated region
    $region6: #{tpu_custom_call.1} parent=1 // pred_check
      _
    $region7: #{tpu_custom_call.1} parent=1 // pred_check_branch
      %20 = sbr.rel (0) target = $region9
    $region8: #{tpu_custom_call.1} parent=1 // pred_region
      _
    $region9: #{tpu_custom_call.1} parent=1 // pred_fallthru
      _
    // Predicated region
    $region10: #{tpu_custom_call.1} parent=1 // pred_check
      _
    $region11: #{tpu_custom_call.1} parent=1 // pred_check_branch
      %22 = sbr.rel (0) target = $region13
    $region12: #{tpu_custom_call.1} parent=1 // pred_region
      _
    $region13: #{tpu_custom_call.1} parent=1 // pred_fallthru
      _
    // Predicated region
    $region14: #{tpu_custom_call.1} parent=1 // pred_check
      _
    $region15: #{tpu_custom_call.1} parent=1 // pred_check_branch
      %24 = sbr.rel (0) target = $region17
    $region16: #{tpu_custom_call.1} parent=1 // pred_region
      _
    $region17: #{tpu_custom_call.1} parent=1 // pred_fallthru
      _
    // Predicated region
    $region18: #{tpu_custom_call.1} parent=1 // pred_check
      _
    $region19: #{tpu_custom_call.1} parent=1 // pred_check_branch
      %26 = sbr.rel (0) target = $region21
    $region20: #{tpu_custom_call.1} parent=1 // pred_region
      _
    $region21: #{tpu_custom_call.1} parent=1 // pred_fallthru
      _
    // Predicated region
    $region22: #{tpu_custom_call.1} parent=1 // pred_check
      _
    $region23: #{tpu_custom_call.1} parent=1 // pred_check_branch
      %28 = sbr.rel (0) target = $region25
    $region24: #{tpu_custom_call.1} parent=1 // pred_region
      _
    $region25: #{tpu_custom_call.1} parent=1 // pred_fallthru
      _
    // Predicated region
    $region26: #{tpu_custom_call.1} parent=1 // pred_check
      _
    $region27: #{tpu_custom_call.1} parent=1 // pred_check_branch
      %30 = sbr.rel (0) target = $region29
    $region28: #{tpu_custom_call.1} parent=1 // pred_region
      _
    $region29: #{tpu_custom_call.1} parent=1 // pred_fallthru
      _
    // Predicated region
    $region30: #{tpu_custom_call.1} parent=1 // pred_check
      _
    $region31: #{tpu_custom_call.1} parent=1 // pred_check_branch
      %32 = sbr.rel (0) target = $region33
    $region32: #{tpu_custom_call.1} parent=1 // pred_region
      _
    $region33: #{tpu_custom_call.1} parent=1 // pred_fallthru
      _
    // Predicated region
    $region34: #{tpu_custom_call.1} parent=1 // pred_check
      _
    $region35: #{tpu_custom_call.1} parent=1 // pred_check_branch
      %34 = sbr.rel (0) target = $region37
    $region36: #{tpu_custom_call.1} parent=1 // pred_region
      _
    $region37: #{tpu_custom_call.1} parent=1 // pred_fallthru
      _
    %v36 = vld [vmem:[%s0] sm:$0xff]
    %v37 = vld [vmem:[%s0 + $0x8] sm:$0xff]
    %v38 = vld [vmem:[%s0 + $0x10] sm:$0xff]
    %v39 = vld [vmem:[%s0 + $0x18] sm:$0x1f]
    %v40 = vpack.c.bf16 %v37, %v36
    %v41 = vpack.c.bf16 %v39, %v38
    %v42 = vld [vmem:[%s1] sm:$0xf]
    %v43 = vpack.c.bf16 %v42, %v42
    %v44 = vld [vmem:[%s2] sm:$0xf]
    %v45 = vld [vmem:[%s2 + $0x4] sm:$0xf]
    %v46 = vld [vmem:[%s2 + $0x8] sm:$0xf]
    %v47 = vld [vmem:[%s2 + $0xc] sm:$0xf]
    %v48 = vld [vmem:[%s2 + $0x10] sm:$0xf]
    %v49 = vld [vmem:[%s2 + $0x14] sm:$0xf]
    %v50 = vld [vmem:[%s2 + $0x18] sm:$0xf]
    %v51 = vld [vmem:[%s2 + $0x1c] sm:$0xf]
    %v52 = vld [vmem:[%s2 + $0x20] sm:$0xf]
    %v53 = vld [vmem:[%s2 + $0x24] sm:$0xf]
    %v54 = vld [vmem:[%s2 + $0x28] sm:$0xf]
    %v55 = vld [vmem:[%s2 + $0x2c] sm:$0xf]
    %v56 = vld [vmem:[%s2 + $0x30] sm:$0xf]
    %v57 = vld [vmem:[%s2 + $0x34] sm:$0xf]
    %v58 = vld [vmem:[%s2 + $0x38] sm:$0xf]
    %v59 = vld [vmem:[%s2 + $0x3c] sm:$0xf]
    %v60 = vld [vmem:[%s2 + $0x40] sm:$0xf]
    %v61 = vld [vmem:[%s2 + $0x44] sm:$0xf]
    %v62 = vld [vmem:[%s2 + $0x48] sm:$0xf]
    %v63 = vld [vmem:[%s2 + $0x4c] sm:$0xf]
    %v64 = vld [vmem:[%s2 + $0x50] sm:$0xf]
    %v65 = vld [vmem:[%s2 + $0x54] sm:$0xf]
    %v66 = vld [vmem:[%s2 + $0x58] sm:$0xf]
    %v67 = vld [vmem:[%s2 + $0x5c] sm:$0xf]
    %v68 = vld [vmem:[%s2 + $0x60] sm:$0xf]
    %v69 = vld [vmem:[%s2 + $0x64] sm:$0xf]
    %v70 = vld [vmem:[%s2 + $0x68] sm:$0xf]
    %v71 = vld [vmem:[%s2 + $0x6c] sm:$0xf]
    %v72 = vld [vmem:[%s2 + $0x70] sm:$0xf]
    %v73 = vld [vmem:[%s2 + $0x74] sm:$0xf]
    %v74 = vld [vmem:[%s2 + $0x78] sm:$0xf]
    %v75 = vld [vmem:[%s2 + $0x7c] sm:$0xf]
    %v76 = vld [vmem:[%s2 + $0x80] sm:$0xf]
    %v77 = vld [vmem:[%s2 + $0x84] sm:$0xf]
    %v78 = vld [vmem:[%s2 + $0x88] sm:$0xf]
    %v79 = vld [vmem:[%s2 + $0x8c] sm:$0xf]
    %v80 = vld [vmem:[%s2 + $0x90] sm:$0xf]
    %v81 = vld [vmem:[%s2 + $0x94] sm:$0xf]
    %v82 = vld [vmem:[%s2 + $0x98] sm:$0xf]
    %v83 = vld [vmem:[%s2 + $0x9c] sm:$0xf]
    %v84 = vld [vmem:[%s2 + $0xa0] sm:$0xf]
    %v85 = vld [vmem:[%s2 + $0xa4] sm:$0xf]
    %v86 = vld [vmem:[%s2 + $0xa8] sm:$0xf]
    %v87 = vld [vmem:[%s2 + $0xac] sm:$0xf]
    %v88 = vld [vmem:[%s2 + $0xb0] sm:$0xf]
    %v89 = vld [vmem:[%s2 + $0xb4] sm:$0xf]
    %v90 = vld [vmem:[%s2 + $0xb8] sm:$0xf]
    %v91 = vld [vmem:[%s2 + $0xbc] sm:$0xf]
    %v92 = vld [vmem:[%s2 + $0xc0] sm:$0xf]
    %v93 = vld [vmem:[%s2 + $0xc4] sm:$0xf]
    %v94 = vld [vmem:[%s2 + $0xc8] sm:$0xf]
    %v95 = vld [vmem:[%s2 + $0xcc] sm:$0xf]
    %v96 = vld [vmem:[%s2 + $0xd0] sm:$0xf]
    %v97 = vld [vmem:[%s2 + $0xd4] sm:$0xf]
    %v98 = vld [vmem:[%s2 + $0xd8] sm:$0xf]
    %v99 = vld [vmem:[%s2 + $0xdc] sm:$0xf]
    %v100 = vld [vmem:[%s2 + $0xe0] sm:$0xf]
    %v101 = vld [vmem:[%s2 + $0xe4] sm:$0xf]
    %v102 = vld [vmem:[%s2 + $0xe8] sm:$0xf]
    %v103 = vld [vmem:[%s2 + $0xec] sm:$0xf]
    %v104 = vld [vmem:[%s2 + $0xf0] sm:$0xf]
    %v105 = vld [vmem:[%s2 + $0xf4] sm:$0xf]
    %v106 = vld [vmem:[%s2 + $0xf8] sm:$0xf]
    %v107 = vld [vmem:[%s2 + $0xfc] sm:$0xf]
    %v108 = vld [vmem:[%s2 + $0x100] sm:$0xf]
    %v109 = vld [vmem:[%s2 + $0x104] sm:$0xf]
    %v110 = vld [vmem:[%s2 + $0x108] sm:$0xf]
    %v111 = vld [vmem:[%s2 + $0x10c] sm:$0xf]
    %v112 = vld [vmem:[%s2 + $0x110] sm:$0xf]
    %v113 = vld [vmem:[%s2 + $0x114] sm:$0xf]
    %v114 = vld [vmem:[%s2 + $0x118] sm:$0xf]
    %v115 = vld [vmem:[%s2 + $0x11c] sm:$0xf]
    %v116 = vld [vmem:[%s2 + $0x120] sm:$0xf]
    %v117 = vld [vmem:[%s2 + $0x124] sm:$0xf]
    %v118 = vld [vmem:[%s2 + $0x128] sm:$0xf]
    %v119 = vld [vmem:[%s2 + $0x12c] sm:$0xf]
    %v120 = vld [vmem:[%s2 + $0x130] sm:$0xf]
    %v121 = vld [vmem:[%s2 + $0x134] sm:$0xf]
    %v122 = vld [vmem:[%s2 + $0x138] sm:$0xf]
    %v123 = vld [vmem:[%s2 + $0x13c] sm:$0xf]
    %v124 = vld [vmem:[%s2 + $0x140] sm:$0xf]
    %v125 = vld [vmem:[%s2 + $0x144] sm:$0xf]
    %v126 = vld [vmem:[%s2 + $0x148] sm:$0xf]
    %v127 = vld [vmem:[%s2 + $0x14c] sm:$0xf]
    %v128 = vld [vmem:[%s2 + $0x150] sm:$0xf]
    %v129 = vld [vmem:[%s2 + $0x154] sm:$0xf]
    %v130 = vld [vmem:[%s2 + $0x158] sm:$0xf]
    %v131 = vld [vmem:[%s2 + $0x15c] sm:$0xf]
    %v132 = vld [vmem:[%s2 + $0x160] sm:$0xf]
    %v133 = vld [vmem:[%s2 + $0x164] sm:$0xf]
    %v134 = vld [vmem:[%s2 + $0x168] sm:$0xf]
    %v135 = vld [vmem:[%s2 + $0x16c] sm:$0xf]
    %v136 = vld [vmem:[%s2 + $0x170] sm:$0xf]
    %v137 = vld [vmem:[%s2 + $0x174] sm:$0xf]
    %v138 = vld [vmem:[%s2 + $0x178] sm:$0xf]
    %v139 = vld [vmem:[%s2 + $0x17c] sm:$0xf]
    %v140 = vld [vmem:[%s3] sm:$0xf]
    %v141 = vld [vmem:[%s3 + $0x4] sm:$0xf]
    %v142 = vld [vmem:[%s3 + $0x8] sm:$0xf]
    %v143 = vld [vmem:[%s3 + $0xc] sm:$0xf]
    %v144 = vld [vmem:[%s3 + $0x10] sm:$0xf]
    %v145 = vld [vmem:[%s3 + $0x14] sm:$0xf]
    %v146 = vld [vmem:[%s3 + $0x18] sm:$0xf]
    %v147 = vld [vmem:[%s3 + $0x1c] sm:$0xf]
    %v148 = vld [vmem:[%s3 + $0x20] sm:$0xf]
    %v149 = vld [vmem:[%s3 + $0x24] sm:$0xf]
    %v150 = vld [vmem:[%s3 + $0x28] sm:$0xf]
    %v151 = vld [vmem:[%s3 + $0x2c] sm:$0xf]
    %v152 = vld [vmem:[%s3 + $0x30] sm:$0xf]
    %v153 = vld [vmem:[%s3 + $0x34] sm:$0xf]
    %v154 = vld [vmem:[%s3 + $0x38] sm:$0xf]
    %v155 = vld [vmem:[%s3 + $0x3c] sm:$0xf]
    %v156 = vld [vmem:[%s3 + $0x40] sm:$0xf]
    %v157 = vld [vmem:[%s3 + $0x44] sm:$0xf]
    %v158 = vld [vmem:[%s3 + $0x48] sm:$0xf]
    %v159 = vld [vmem:[%s3 + $0x4c] sm:$0xf]
    %v160 = vld [vmem:[%s3 + $0x50] sm:$0xf]
    %v161 = vld [vmem:[%s3 + $0x54] sm:$0xf]
    %v162 = vld [vmem:[%s3 + $0x58] sm:$0xf]
    %v163 = vld [vmem:[%s3 + $0x5c] sm:$0xf]
    %v164 = vld [vmem:[%s3 + $0x60] sm:$0xf]
    %v165 = vld [vmem:[%s3 + $0x64] sm:$0xf]
    %v166 = vld [vmem:[%s3 + $0x68] sm:$0xf]
    %v167 = vld [vmem:[%s3 + $0x6c] sm:$0xf]
    %v168 = vld [vmem:[%s3 + $0x70] sm:$0xf]
    %v169 = vld [vmem:[%s3 + $0x74] sm:$0xf]
    %v170 = vld [vmem:[%s3 + $0x78] sm:$0xf]
    %v171 = vld [vmem:[%s3 + $0x7c] sm:$0xf]
    %v172 = vld [vmem:[%s3 + $0x80] sm:$0xf]
    %v173 = vld [vmem:[%s3 + $0x84] sm:$0xf]
    %v174 = vld [vmem:[%s3 + $0x88] sm:$0xf]
    %v175 = vld [vmem:[%s3 + $0x8c] sm:$0xf]
    %v176 = vld [vmem:[%s3 + $0x90] sm:$0xf]
    %v177 = vld [vmem:[%s3 + $0x94] sm:$0xf]
    %v178 = vld [vmem:[%s3 + $0x98] sm:$0xf]
    %v179 = vld [vmem:[%s3 + $0x9c] sm:$0xf]
    %v180 = vld [vmem:[%s3 + $0xa0] sm:$0xf]
    %v181 = vld [vmem:[%s3 + $0xa4] sm:$0xf]
    %v182 = vld [vmem:[%s3 + $0xa8] sm:$0xf]
    %v183 = vld [vmem:[%s3 + $0xac] sm:$0xf]
    %v184 = vld [vmem:[%s3 + $0xb0] sm:$0xf]
    %v185 = vld [vmem:[%s3 + $0xb4] sm:$0xf]
    %v186 = vld [vmem:[%s3 + $0xb8] sm:$0xf]
    %v187 = vld [vmem:[%s3 + $0xbc] sm:$0xf]
    %v188 = vld [vmem:[%s3 + $0xc0] sm:$0xf]
    %v189 = vld [vmem:[%s3 + $0xc4] sm:$0xf]
    %v190 = vld [vmem:[%s3 + $0xc8] sm:$0xf]
    %v191 = vld [vmem:[%s3 + $0xcc] sm:$0xf]
    %v192 = vld [vmem:[%s3 + $0xd0] sm:$0xf]
    %v193 = vld [vmem:[%s3 + $0xd4] sm:$0xf]
    %v194 = vld [vmem:[%s3 + $0xd8] sm:$0xf]
    %v195 = vld [vmem:[%s3 + $0xdc] sm:$0xf]
    %v196 = vld [vmem:[%s3 + $0xe0] sm:$0xf]
    %v197 = vld [vmem:[%s3 + $0xe4] sm:$0xf]
    %v198 = vld [vmem:[%s3 + $0xe8] sm:$0xf]
    %v199 = vld [vmem:[%s3 + $0xec] sm:$0xf]
    %v200 = vld [vmem:[%s3 + $0xf0] sm:$0xf]
    %v201 = vld [vmem:[%s3 + $0xf4] sm:$0xf]
    %v202 = vld [vmem:[%s3 + $0xf8] sm:$0xf]
    %v203 = vld [vmem:[%s3 + $0xfc] sm:$0xf]
    %v204 = vld [vmem:[%s3 + $0x100] sm:$0xf]
    %v205 = vld [vmem:[%s3 + $0x104] sm:$0xf]
    %v206 = vld [vmem:[%s3 + $0x108] sm:$0xf]
    %v207 = vld [vmem:[%s3 + $0x10c] sm:$0xf]
    %v208 = vld [vmem:[%s3 + $0x110] sm:$0xf]
    %v209 = vld [vmem:[%s3 + $0x114] sm:$0xf]
    %v210 = vld [vmem:[%s3 + $0x118] sm:$0xf]
    %v211 = vld [vmem:[%s3 + $0x11c] sm:$0xf]
    %v212 = vld [vmem:[%s3 + $0x120] sm:$0xf]
    %v213 = vld [vmem:[%s3 + $0x124] sm:$0xf]
    %v214 = vld [vmem:[%s3 + $0x128] sm:$0xf]
    %v215 = vld [vmem:[%s3 + $0x12c] sm:$0xf]
    %v216 = vld [vmem:[%s3 + $0x130] sm:$0xf]
    %v217 = vld [vmem:[%s3 + $0x134] sm:$0xf]
    %v218 = vld [vmem:[%s3 + $0x138] sm:$0xf]
    %v219 = vld [vmem:[%s3 + $0x13c] sm:$0xf]
    %v220 = vld [vmem:[%s3 + $0x140] sm:$0xf]
    %v221 = vld [vmem:[%s3 + $0x144] sm:$0xf]
    %v222 = vld [vmem:[%s3 + $0x148] sm:$0xf]
    %v223 = vld [vmem:[%s3 + $0x14c] sm:$0xf]
    %v224 = vld [vmem:[%s3 + $0x150] sm:$0xf]
    %v225 = vld [vmem:[%s3 + $0x154] sm:$0xf]
    %v226 = vld [vmem:[%s3 + $0x158] sm:$0xf]
    %v227 = vld [vmem:[%s3 + $0x15c] sm:$0xf]
    %v228 = vld [vmem:[%s3 + $0x160] sm:$0xf]
    %v229 = vld [vmem:[%s3 + $0x164] sm:$0xf]
    %v230 = vld [vmem:[%s3 + $0x168] sm:$0xf]
    %v231 = vld [vmem:[%s3 + $0x16c] sm:$0xf]
    %v232 = vld [vmem:[%s3 + $0x170] sm:$0xf]
    %v233 = vld [vmem:[%s3 + $0x174] sm:$0xf]
    %v234 = vld [vmem:[%s3 + $0x178] sm:$0xf]
    %v235 = vld [vmem:[%s3 + $0x17c] sm:$0xf]
    %v332 = vunpack.c.l.b16 %v140
    %v333 = vunpack.c.l.b16 %v141
    %v334 = vunpack.c.l.b16 %v142
    %v335 = vunpack.c.l.b16 %v143
    %v336 = vunpack.c.l.b16 %v144
    %v337 = vunpack.c.l.b16 %v145
    %v338 = vunpack.c.l.b16 %v146
    %v339 = vunpack.c.l.b16 %v147
    %v340 = vunpack.c.l.b16 %v148
    %v341 = vunpack.c.l.b16 %v149
    %v342 = vunpack.c.l.b16 %v150
    %v343 = vunpack.c.l.b16 %v151
    %v344 = vunpack.c.l.b16 %v152
    %v345 = vunpack.c.l.b16 %v153
    %v346 = vunpack.c.l.b16 %v154
    %v347 = vunpack.c.l.b16 %v155
    %v348 = vunpack.c.l.b16 %v156
    %v349 = vunpack.c.l.b16 %v157
    %v350 = vunpack.c.l.b16 %v158
    %v351 = vunpack.c.l.b16 %v159
    %v352 = vunpack.c.l.b16 %v160
    %v353 = vunpack.c.l.b16 %v161
    %v354 = vunpack.c.l.b16 %v162
    %v355 = vunpack.c.l.b16 %v163
    %v356 = vunpack.c.l.b16 %v164
    %v357 = vunpack.c.l.b16 %v165
    %v358 = vunpack.c.l.b16 %v166
    %v359 = vunpack.c.l.b16 %v167
    %v360 = vunpack.c.l.b16 %v168
    %v361 = vunpack.c.l.b16 %v169
    %v362 = vunpack.c.l.b16 %v170
    %v363 = vunpack.c.l.b16 %v171
    %v364 = vunpack.c.l.b16 %v172
    %v365 = vunpack.c.l.b16 %v173
    %v366 = vunpack.c.l.b16 %v174
    %v367 = vunpack.c.l.b16 %v175
    %v368 = vunpack.c.l.b16 %v176
    %v369 = vunpack.c.l.b16 %v177
    %v370 = vunpack.c.l.b16 %v178
    %v371 = vunpack.c.l.b16 %v179
    %v372 = vunpack.c.l.b16 %v180
    %v373 = vunpack.c.l.b16 %v181
    %v374 = vunpack.c.l.b16 %v182
    %v375 = vunpack.c.l.b16 %v183
    %v376 = vunpack.c.l.b16 %v184
    %v377 = vunpack.c.l.b16 %v185
    %v378 = vunpack.c.l.b16 %v186
    %v379 = vunpack.c.l.b16 %v187
    %v380 = vunpack.c.l.b16 %v188
    %v381 = vunpack.c.l.b16 %v189
    %v382 = vunpack.c.l.b16 %v190
    %v383 = vunpack.c.l.b16 %v191
    %v384 = vunpack.c.l.b16 %v192
    %v385 = vunpack.c.l.b16 %v193
    %v386 = vunpack.c.l.b16 %v194
    %v387 = vunpack.c.l.b16 %v195
    %v388 = vunpack.c.l.b16 %v196
    %v389 = vunpack.c.l.b16 %v197
    %v390 = vunpack.c.l.b16 %v198
    %v391 = vunpack.c.l.b16 %v199
    %v392 = vunpack.c.l.b16 %v200
    %v393 = vunpack.c.l.b16 %v201
    %v394 = vunpack.c.l.b16 %v202
    %v395 = vunpack.c.l.b16 %v203
    %v396 = vunpack.c.l.b16 %v204
    %v397 = vunpack.c.l.b16 %v205
    %v398 = vunpack.c.l.b16 %v206
    %v399 = vunpack.c.l.b16 %v207
    %v400 = vunpack.c.l.b16 %v208
    %v401 = vunpack.c.l.b16 %v209
    %v402 = vunpack.c.l.b16 %v210
    %v403 = vunpack.c.l.b16 %v211
    %v404 = vunpack.c.l.b16 %v212
    %v405 = vunpack.c.l.b16 %v213
    %v406 = vunpack.c.l.b16 %v214
    %v407 = vunpack.c.l.b16 %v215
    %v408 = vunpack.c.l.b16 %v216
    %v409 = vunpack.c.l.b16 %v217
    %v410 = vunpack.c.l.b16 %v218
    %v411 = vunpack.c.l.b16 %v219
    %v412 = vunpack.c.l.b16 %v220
    %v413 = vunpack.c.l.b16 %v221
    %v414 = vunpack.c.l.b16 %v222
    %v415 = vunpack.c.l.b16 %v223
    %v416 = vunpack.c.l.b16 %v224
    %v417 = vunpack.c.l.b16 %v225
    %v418 = vunpack.c.l.b16 %v226
    %v419 = vunpack.c.l.b16 %v227
    %v420 = vunpack.c.l.b16 %v228
    %v421 = vunpack.c.l.b16 %v229
    %v422 = vunpack.c.l.b16 %v230
    %v423 = vunpack.c.l.b16 %v231
    %v424 = vunpack.c.l.b16 %v232
    %v425 = vunpack.c.l.b16 %v233
    %v426 = vunpack.c.l.b16 %v234
    %v427 = vunpack.c.l.b16 %v235
    %v428 = vpack.c.b16 %v333, %v332
    %v429 = vpack.c.b16 %v335, %v334
    %v430 = vpack.c.b16 %v337, %v336
    %v431 = vpack.c.b16 %v339, %v338
    %v432 = vpack.c.b16 %v341, %v340
    %v433 = vpack.c.b16 %v343, %v342
    %v434 = vpack.c.b16 %v345, %v344
    %v435 = vpack.c.b16 %v347, %v346
    %v436 = vpack.c.b16 %v349, %v348
    %v437 = vpack.c.b16 %v351, %v350
    %v438 = vpack.c.b16 %v353, %v352
    %v439 = vpack.c.b16 %v355, %v354
    %v440 = vpack.c.b16 %v357, %v356
    %v441 = vpack.c.b16 %v359, %v358
    %v442 = vpack.c.b16 %v361, %v360
    %v443 = vpack.c.b16 %v363, %v362
    %v444 = vpack.c.b16 %v365, %v364
    %v445 = vpack.c.b16 %v367, %v366
    %v446 = vpack.c.b16 %v369, %v368
    %v447 = vpack.c.b16 %v371, %v370
    %v448 = vpack.c.b16 %v373, %v372
    %v449 = vpack.c.b16 %v375, %v374
    %v450 = vpack.c.b16 %v377, %v376
    %v451 = vpack.c.b16 %v379, %v378
    %v452 = vpack.c.b16 %v381, %v380
    %v453 = vpack.c.b16 %v383, %v382
    %v454 = vpack.c.b16 %v385, %v384
    %v455 = vpack.c.b16 %v387, %v386
    %v456 = vpack.c.b16 %v389, %v388
    %v457 = vpack.c.b16 %v391, %v390
    %v458 = vpack.c.b16 %v393, %v392
    %v459 = vpack.c.b16 %v395, %v394
    %v460 = vpack.c.b16 %v397, %v396
    %v461 = vpack.c.b16 %v399, %v398
    %v462 = vpack.c.b16 %v401, %v400
    %v463 = vpack.c.b16 %v403, %v402
    %v464 = vpack.c.b16 %v405, %v404
    %v465 = vpack.c.b16 %v407, %v406
    %v466 = vpack.c.b16 %v409, %v408
    %v467 = vpack.c.b16 %v411, %v410
    %v468 = vpack.c.b16 %v413, %v412
    %v469 = vpack.c.b16 %v415, %v414
    %v470 = vpack.c.b16 %v417, %v416
    %v471 = vpack.c.b16 %v419, %v418
    %v472 = vpack.c.b16 %v421, %v420
    %v473 = vpack.c.b16 %v423, %v422
    %v474 = vpack.c.b16 %v425, %v424
    %v475 = vpack.c.b16 %v427, %v426
    %vm476 = vcmask 31744
    %v478 = vsel %vm476, %v428, 0
    %v481 = vsel %vm476, %v429, 0
    %v484 = vsel %vm476, %v430, 0
    %v487 = vsel %vm476, %v431, 0
    %v490 = vsel %vm476, %v432, 0
    %v493 = vsel %vm476, %v433, 0
    %v496 = vsel %vm476, %v434, 0
    %v499 = vsel %vm476, %v435, 0
    %v502 = vsel %vm476, %v436, 0
    %v505 = vsel %vm476, %v437, 0
    %v508 = vsel %vm476, %v438, 0
    %v511 = vsel %vm476, %v439, 0
    %v514 = vsel %vm476, %v440, 0
    %v517 = vsel %vm476, %v441, 0
    %v520 = vsel %vm476, %v442, 0
    %v523 = vsel %vm476, %v443, 0
    %v526 = vsel %vm476, %v444, 0
    %v529 = vsel %vm476, %v445, 0
    %v532 = vsel %vm476, %v446, 0
    %v535 = vsel %vm476, %v447, 0
    %v538 = vsel %vm476, %v448, 0
    %v541 = vsel %vm476, %v449, 0
    %v544 = vsel %vm476, %v450, 0
    %v547 = vsel %vm476, %v451, 0
    %v550 = vsel %vm476, %v452, 0
    %v553 = vsel %vm476, %v453, 0
    %v556 = vsel %vm476, %v454, 0
    %v559 = vsel %vm476, %v455, 0
    %v562 = vsel %vm476, %v456, 0
    %v565 = vsel %vm476, %v457, 0
    %v568 = vsel %vm476, %v458, 0
    %v571 = vsel %vm476, %v459, 0
    %v574 = vsel %vm476, %v460, 0
    %v577 = vsel %vm476, %v461, 0
    %v580 = vsel %vm476, %v462, 0
    %v583 = vsel %vm476, %v463, 0
    %v586 = vsel %vm476, %v464, 0
    %v589 = vsel %vm476, %v465, 0
    %v592 = vsel %vm476, %v466, 0
    %v595 = vsel %vm476, %v467, 0
    %v598 = vsel %vm476, %v468, 0
    %v601 = vsel %vm476, %v469, 0
    %v604 = vsel %vm476, %v470, 0
    %v607 = vsel %vm476, %v471, 0
    %v610 = vsel %vm476, %v472, 0
    %v613 = vsel %vm476, %v473, 0
    %v616 = vsel %vm476, %v474, 0
    %v619 = vsel %vm476, %v475, 0
    %vm621 = vcmask 1041408
    %v623 = vsel %vm621, %v43, 0
    %625 = vmatprep.subr.bf16.mxu0 0
    %626 = vmatpush1.bf16.msra.mxu0 %v623
    %627 = vmatprep.subr.bf16.mxu0 0
    %628 = vmatpush1.bf16.msra.mxu0 0
    %629 = vmatprep.subr.bf16.mxu0 0
    %630 = vmatpush1.bf16.msra.mxu0 0
    %631 = vmatprep.subr.bf16.mxu0 0
    %632 = vmatpush1.bf16.msra.mxu0 0
    %633 = vmatprep.subr.bf16.mxu0 0
    %634 = vmatpush1.bf16.msra.mxu0 0
    %635 = vmatprep.subr.bf16.mxu0 0
    %636 = vmatpush1.bf16.msra.mxu0 0
    %637 = vmatprep.subr.bf16.mxu0 0
    %638 = vmatpush1.bf16.msra.mxu0 0
    %639 = vmatprep.subr.bf16.mxu0 0
    %640 = vmatpush1.bf16.msra.mxu0 0
    %641 = vmatprep.subr.bf16.mxu0 0
    %642 = vmatpush1.bf16.msra.mxu0 0
    %643 = vmatprep.subr.bf16.mxu0 0
    %644 = vmatpush1.bf16.msra.mxu0 0
    %645 = vmatprep.subr.bf16.mxu0 0
    %646 = vmatpush1.bf16.msra.mxu0 0
    %647 = vmatprep.subr.bf16.mxu0 0
    %648 = vmatpush1.bf16.msra.mxu0 0
    %649 = vmatprep.subr.bf16.mxu0 0
    %650 = vmatpush1.bf16.msra.mxu0 0
    %651 = vmatprep.subr.bf16.mxu0 0
    %652 = vmatpush1.bf16.msra.mxu0 0
    %653 = vmatprep.subr.bf16.mxu0 0
    %654 = vmatpush1.bf16.msra.mxu0 0
    %655 = vmatprep.subr.bf16.mxu0 0
    %656 = vmatpush1.bf16.msra.mxu0 0
    %657 = vmatprep.mubr.bf16.mxu0 0
    %658 = vmatmul.mubr.bf16.gmra.mrb[0].mxu0 %v478
    %v659 = vpop.f32.mrb[0].mxu0
    %v660 = vadd.f32 0.0, %v659
    %v661 = vpop.f32.mrb[0].mxu0
    %v662 = vpop.f32.mrb[0].mxu0
    %v663 = vadd.f32 0.0, %v662
    %v664 = vpop.f32.mrb[0].mxu0
    %665 = vmatprep.mubr.bf16.mxu0 0
    %666 = vmatmul.mubr.bf16.gmra.mrb[0].mxu0 %v481
    %v667 = vpop.f32.mrb[0].mxu0
    %v668 = vadd.f32 0.0, %v667
    %v669 = vpop.f32.mrb[0].mxu0
    %v670 = vpop.f32.mrb[0].mxu0
    %v671 = vadd.f32 0.0, %v670
    %v672 = vpop.f32.mrb[0].mxu0
    %673 = vmatprep.mubr.bf16.mxu0 0
    %674 = vmatmul.mubr.bf16.gmra.mrb[0].mxu0 %v484
    %v675 = vpop.f32.mrb[0].mxu0
    %v676 = vadd.f32 0.0, %v675
    %v677 = vpop.f32.mrb[0].mxu0
    %v678 = vpop.f32.mrb[0].mxu0
    %v679 = vadd.f32 0.0, %v678
    %v680 = vpop.f32.mrb[0].mxu0
    %681 = vmatprep.mubr.bf16.mxu0 0
    %682 = vmatmul.mubr.bf16.gmra.mrb[0].mxu0 %v487
    %v683 = vpop.f32.mrb[0].mxu0
    %v684 = vadd.f32 0.0, %v683
    %v685 = vpop.f32.mrb[0].mxu0
    %v686 = vpop.f32.mrb[0].mxu0
    %v687 = vadd.f32 0.0, %v686
    %v688 = vpop.f32.mrb[0].mxu0
    %689 = vmatprep.mubr.bf16.mxu0 0
    %690 = vmatmul.mubr.bf16.gmra.mrb[0].mxu0 %v490
    %v691 = vpop.f32.mrb[0].mxu0
    %v692 = vadd.f32 0.0, %v691
    %v693 = vpop.f32.mrb[0].mxu0
    %v694 = vpop.f32.mrb[0].mxu0
    %v695 = vadd.f32 0.0, %v694
    %v696 = vpop.f32.mrb[0].mxu0
    %697 = vmatprep.mubr.bf16.mxu0 0
    %698 = vmatmul.mubr.bf16.gmra.mrb[0].mxu0 %v493
    %v699 = vpop.f32.mrb[0].mxu0
    %v700 = vadd.f32 0.0, %v699
    %v701 = vpop.f32.mrb[0].mxu0
    %v702 = vpop.f32.mrb[0].mxu0
    %v703 = vadd.f32 0.0, %v702
    %v704 = vpop.f32.mrb[0].mxu0
    %705 = vmatprep.mubr.bf16.mxu0 0
    %706 = vmatmul.mubr.bf16.gmra.mrb[0].mxu0 %v496
    %v707 = vpop.f32.mrb[0].mxu0
    %v708 = vadd.f32 0.0, %v707
    %v709 = vpop.f32.mrb[0].mxu0
    %v710 = vpop.f32.mrb[0].mxu0
    %v711 = vadd.f32 0.0, %v710
    %v712 = vpop.f32.mrb[0].mxu0
    %713 = vmatprep.mubr.bf16.mxu0 0
    %714 = vmatmul.mubr.bf16.gmra.mrb[0].mxu0 %v499
    %v715 = vpop.f32.mrb[0].mxu0
    %v716 = vadd.f32 0.0, %v715
    %v717 = vpop.f32.mrb[0].mxu0
    %v718 = vpop.f32.mrb[0].mxu0
    %v719 = vadd.f32 0.0, %v718
    %v720 = vpop.f32.mrb[0].mxu0
    %721 = vmatprep.mubr.bf16.mxu0 0
    %722 = vmatmul.mubr.bf16.gmra.mrb[0].mxu0 %v502
    %v723 = vpop.f32.mrb[0].mxu0
    %v724 = vadd.f32 0.0, %v723
    %v725 = vpop.f32.mrb[0].mxu0
    %v726 = vpop.f32.mrb[0].mxu0
    %v727 = vadd.f32 0.0, %v726
    %v728 = vpop.f32.mrb[0].mxu0
    %729 = vmatprep.mubr.bf16.mxu0 0
    %730 = vmatmul.mubr.bf16.gmra.mrb[0].mxu0 %v505
    %v731 = vpop.f32.mrb[0].mxu0
    %v732 = vadd.f32 0.0, %v731
    %v733 = vpop.f32.mrb[0].mxu0
    %v734 = vpop.f32.mrb[0].mxu0
    %v735 = vadd.f32 0.0, %v734
    %v736 = vpop.f32.mrb[0].mxu0
    %737 = vmatprep.mubr.bf16.mxu0 0
    %738 = vmatmul.mubr.bf16.gmra.mrb[0].mxu0 %v508
    %v739 = vpop.f32.mrb[0].mxu0
    %v740 = vadd.f32 0.0, %v739
    %v741 = vpop.f32.mrb[0].mxu0
    %v742 = vpop.f32.mrb[0].mxu0
    %v743 = vadd.f32 0.0, %v742
    %v744 = vpop.f32.mrb[0].mxu0
    %745 = vmatprep.mubr.bf16.mxu0 0
    %746 = vmatmul.mubr.bf16.gmra.mrb[0].mxu0 %v511
    %v747 = vpop.f32.mrb[0].mxu0
    %v748 = vadd.f32 0.0, %v747
    %v749 = vpop.f32.mrb[0].mxu0
    %v750 = vpop.f32.mrb[0].mxu0
    %v751 = vadd.f32 0.0, %v750
    %v752 = vpop.f32.mrb[0].mxu0
    %753 = vmatprep.mubr.bf16.mxu0 0
    %754 = vmatmul.mubr.bf16.gmra.mrb[0].mxu0 %v514
    %v755 = vpop.f32.mrb[0].mxu0
    %v756 = vadd.f32 0.0, %v755
    %v757 = vpop.f32.mrb[0].mxu0
    %v758 = vpop.f32.mrb[0].mxu0
    %v759 = vadd.f32 0.0, %v758
    %v760 = vpop.f32.mrb[0].mxu0
    %761 = vmatprep.mubr.bf16.mxu0 0
    %762 = vmatmul.mubr.bf16.gmra.mrb[0].mxu0 %v517
    %v763 = vpop.f32.mrb[0].mxu0
    %v764 = vadd.f32 0.0, %v763
    %v765 = vpop.f32.mrb[0].mxu0
    %v766 = vpop.f32.mrb[0].mxu0
    %v767 = vadd.f32 0.0, %v766
    %v768 = vpop.f32.mrb[0].mxu0
    %769 = vmatprep.mubr.bf16.mxu0 0
    %770 = vmatmul.mubr.bf16.gmra.mrb[0].mxu0 %v520
    %v771 = vpop.f32.mrb[0].mxu0
    %v772 = vadd.f32 0.0, %v771
    %v773 = vpop.f32.mrb[0].mxu0
    %v774 = vpop.f32.mrb[0].mxu0
    %v775 = vadd.f32 0.0, %v774
    %v776 = vpop.f32.mrb[0].mxu0
    %777 = vmatprep.mubr.bf16.mxu0 0
    %778 = vmatmul.mubr.bf16.gmra.mrb[0].mxu0 %v523
    %v779 = vpop.f32.mrb[0].mxu0
    %v780 = vadd.f32 0.0, %v779
    %v781 = vpop.f32.mrb[0].mxu0
    %v782 = vpop.f32.mrb[0].mxu0
    %v783 = vadd.f32 0.0, %v782
    %v784 = vpop.f32.mrb[0].mxu0
    %785 = vmatprep.mubr.bf16.mxu0 0
    %786 = vmatmul.mubr.bf16.gmra.mrb[0].mxu0 %v526
    %v787 = vpop.f32.mrb[0].mxu0
    %v788 = vadd.f32 0.0, %v787
    %v789 = vpop.f32.mrb[0].mxu0
    %v790 = vpop.f32.mrb[0].mxu0
    %v791 = vadd.f32 0.0, %v790
    %v792 = vpop.f32.mrb[0].mxu0
    %793 = vmatprep.mubr.bf16.mxu0 0
    %794 = vmatmul.mubr.bf16.gmra.mrb[0].mxu0 %v529
    %v795 = vpop.f32.mrb[0].mxu0
    %v796 = vadd.f32 0.0, %v795
    %v797 = vpop.f32.mrb[0].mxu0
    %v798 = vpop.f32.mrb[0].mxu0
    %v799 = vadd.f32 0.0, %v798
    %v800 = vpop.f32.mrb[0].mxu0
    %801 = vmatprep.mubr.bf16.mxu0 0
    %802 = vmatmul.mubr.bf16.gmra.mrb[0].mxu0 %v532
    %v803 = vpop.f32.mrb[0].mxu0
    %v804 = vadd.f32 0.0, %v803
    %v805 = vpop.f32.mrb[0].mxu0
    %v806 = vpop.f32.mrb[0].mxu0
    %v807 = vadd.f32 0.0, %v806
    %v808 = vpop.f32.mrb[0].mxu0
    %809 = vmatprep.mubr.bf16.mxu0 0
    %810 = vmatmul.mubr.bf16.gmra.mrb[0].mxu0 %v535
    %v811 = vpop.f32.mrb[0].mxu0
    %v812 = vadd.f32 0.0, %v811
    %v813 = vpop.f32.mrb[0].mxu0
    %v814 = vpop.f32.mrb[0].mxu0
    %v815 = vadd.f32 0.0, %v814
    %v816 = vpop.f32.mrb[0].mxu0
    %817 = vmatprep.mubr.bf16.mxu0 0
    %818 = vmatmul.mubr.bf16.gmra.mrb[0].mxu0 %v538
    %v819 = vpop.f32.mrb[0].mxu0
    %v820 = vadd.f32 0.0, %v819
    %v821 = vpop.f32.mrb[0].mxu0
    %v822 = vpop.f32.mrb[0].mxu0
    %v823 = vadd.f32 0.0, %v822
    %v824 = vpop.f32.mrb[0].mxu0
    %825 = vmatprep.mubr.bf16.mxu0 0
    %826 = vmatmul.mubr.bf16.gmra.mrb[0].mxu0 %v541
    %v827 = vpop.f32.mrb[0].mxu0
    %v828 = vadd.f32 0.0, %v827
    %v829 = vpop.f32.mrb[0].mxu0
    %v830 = vpop.f32.mrb[0].mxu0
    %v831 = vadd.f32 0.0, %v830
    %v832 = vpop.f32.mrb[0].mxu0
    %833 = vmatprep.mubr.bf16.mxu0 0
    %834 = vmatmul.mubr.bf16.gmra.mrb[0].mxu0 %v544
    %v835 = vpop.f32.mrb[0].mxu0
    %v836 = vadd.f32 0.0, %v835
    %v837 = vpop.f32.mrb[0].mxu0
    %v838 = vpop.f32.mrb[0].mxu0
    %v839 = vadd.f32 0.0, %v838
    %v840 = vpop.f32.mrb[0].mxu0
    %841 = vmatprep.mubr.bf16.mxu0 0
    %842 = vmatmul.mubr.bf16.gmra.mrb[0].mxu0 %v547
    %v843 = vpop.f32.mrb[0].mxu0
    %v844 = vadd.f32 0.0, %v843
    %v845 = vpop.f32.mrb[0].mxu0
    %v846 = vpop.f32.mrb[0].mxu0
    %v847 = vadd.f32 0.0, %v846
    %v848 = vpop.f32.mrb[0].mxu0
    %849 = vmatprep.mubr.bf16.mxu0 0
    %850 = vmatmul.mubr.bf16.gmra.mrb[0].mxu0 %v550
    %v851 = vpop.f32.mrb[0].mxu0
    %v852 = vadd.f32 0.0, %v851
    %v853 = vpop.f32.mrb[0].mxu0
    %v854 = vpop.f32.mrb[0].mxu0
    %v855 = vadd.f32 0.0, %v854
    %v856 = vpop.f32.mrb[0].mxu0
    %857 = vmatprep.mubr.bf16.mxu0 0
    %858 = vmatmul.mubr.bf16.gmra.mrb[0].mxu0 %v553
    %v859 = vpop.f32.mrb[0].mxu0
    %v860 = vadd.f32 0.0, %v859
    %v861 = vpop.f32.mrb[0].mxu0
    %v862 = vpop.f32.mrb[0].mxu0
    %v863 = vadd.f32 0.0, %v862
    %v864 = vpop.f32.mrb[0].mxu0
    %865 = vmatprep.mubr.bf16.mxu0 0
    %866 = vmatmul.mubr.bf16.gmra.mrb[0].mxu0 %v556
    %v867 = vpop.f32.mrb[0].mxu0
    %v868 = vadd.f32 0.0, %v867
    %v869 = vpop.f32.mrb[0].mxu0
    %v870 = vpop.f32.mrb[0].mxu0
    %v871 = vadd.f32 0.0, %v870
    %v872 = vpop.f32.mrb[0].mxu0
    %873 = vmatprep.mubr.bf16.mxu0 0
    %874 = vmatmul.mubr.bf16.gmra.mrb[0].mxu0 %v559
    %v875 = vpop.f32.mrb[0].mxu0
    %v876 = vadd.f32 0.0, %v875
    %v877 = vpop.f32.mrb[0].mxu0
    %v878 = vpop.f32.mrb[0].mxu0
    %v879 = vadd.f32 0.0, %v878
    %v880 = vpop.f32.mrb[0].mxu0
    %881 = vmatprep.mubr.bf16.mxu0 0
    %882 = vmatmul.mubr.bf16.gmra.mrb[0].mxu0 %v562
    %v883 = vpop.f32.mrb[0].mxu0
    %v884 = vadd.f32 0.0, %v883
    %v885 = vpop.f32.mrb[0].mxu0
    %v886 = vpop.f32.mrb[0].mxu0
    %v887 = vadd.f32 0.0, %v886
    %v888 = vpop.f32.mrb[0].mxu0
    %889 = vmatprep.mubr.bf16.mxu0 0
    %890 = vmatmul.mubr.bf16.gmra.mrb[0].mxu0 %v565
    %v891 = vpop.f32.mrb[0].mxu0
    %v892 = vadd.f32 0.0, %v891
    %v893 = vpop.f32.mrb[0].mxu0
    %v894 = vpop.f32.mrb[0].mxu0
    %v895 = vadd.f32 0.0, %v894
    %v896 = vpop.f32.mrb[0].mxu0
    %897 = vmatprep.mubr.bf16.mxu0 0
    %898 = vmatmul.mubr.bf16.gmra.mrb[0].mxu0 %v568
    %v899 = vpop.f32.mrb[0].mxu0
    %v900 = vadd.f32 0.0, %v899
    %v901 = vpop.f32.mrb[0].mxu0
    %v902 = vpop.f32.mrb[0].mxu0
    %v903 = vadd.f32 0.0, %v902
    %v904 = vpop.f32.mrb[0].mxu0
    %905 = vmatprep.mubr.bf16.mxu0 0
    %906 = vmatmul.mubr.bf16.gmra.mrb[0].mxu0 %v571
    %v907 = vpop.f32.mrb[0].mxu0
    %v908 = vadd.f32 0.0, %v907
    %v909 = vpop.f32.mrb[0].mxu0
    %v910 = vpop.f32.mrb[0].mxu0
    %v911 = vadd.f32 0.0, %v910
    %v912 = vpop.f32.mrb[0].mxu0
    %913 = vmatprep.mubr.bf16.mxu0 0
    %914 = vmatmul.mubr.bf16.gmra.mrb[0].mxu0 %v574
    %v915 = vpop.f32.mrb[0].mxu0
    %v916 = vadd.f32 0.0, %v915
    %v917 = vpop.f32.mrb[0].mxu0
    %v918 = vpop.f32.mrb[0].mxu0
    %v919 = vadd.f32 0.0, %v918
    %v920 = vpop.f32.mrb[0].mxu0
    %921 = vmatprep.mubr.bf16.mxu0 0
    %922 = vmatmul.mubr.bf16.gmra.mrb[0].mxu0 %v577
    %v923 = vpop.f32.mrb[0].mxu0
    %v924 = vadd.f32 0.0, %v923
    %v925 = vpop.f32.mrb[0].mxu0
    %v926 = vpop.f32.mrb[0].mxu0
    %v927 = vadd.f32 0.0, %v926
    %v928 = vpop.f32.mrb[0].mxu0
    %929 = vmatprep.mubr.bf16.mxu0 0
    %930 = vmatmul.mubr.bf16.gmra.mrb[0].mxu0 %v580
    %v931 = vpop.f32.mrb[0].mxu0
    %v932 = vadd.f32 0.0, %v931
    %v933 = vpop.f32.mrb[0].mxu0
    %v934 = vpop.f32.mrb[0].mxu0
    %v935 = vadd.f32 0.0, %v934
    %v936 = vpop.f32.mrb[0].mxu0
    %937 = vmatprep.mubr.bf16.mxu0 0
    %938 = vmatmul.mubr.bf16.gmra.mrb[0].mxu0 %v583
    %v939 = vpop.f32.mrb[0].mxu0
    %v940 = vadd.f32 0.0, %v939
    %v941 = vpop.f32.mrb[0].mxu0
    %v942 = vpop.f32.mrb[0].mxu0
    %v943 = vadd.f32 0.0, %v942
    %v944 = vpop.f32.mrb[0].mxu0
    %945 = vmatprep.mubr.bf16.mxu0 0
    %946 = vmatmul.mubr.bf16.gmra.mrb[0].mxu0 %v586
    %v947 = vpop.f32.mrb[0].mxu0
    %v948 = vadd.f32 0.0, %v947
    %v949 = vpop.f32.mrb[0].mxu0
    %v950 = vpop.f32.mrb[0].mxu0
    %v951 = vadd.f32 0.0, %v950
    %v952 = vpop.f32.mrb[0].mxu0
    %953 = vmatprep.mubr.bf16.mxu0 0
    %954 = vmatmul.mubr.bf16.gmra.mrb[0].mxu0 %v589
    %v955 = vpop.f32.mrb[0].mxu0
    %v956 = vadd.f32 0.0, %v955
    %v957 = vpop.f32.mrb[0].mxu0
    %v958 = vpop.f32.mrb[0].mxu0
    %v959 = vadd.f32 0.0, %v958
    %v960 = vpop.f32.mrb[0].mxu0
    %961 = vmatprep.mubr.bf16.mxu0 0
    %962 = vmatmul.mubr.bf16.gmra.mrb[0].mxu0 %v592
    %v963 = vpop.f32.mrb[0].mxu0
    %v964 = vadd.f32 0.0, %v963
    %v965 = vpop.f32.mrb[0].mxu0
    %v966 = vpop.f32.mrb[0].mxu0
    %v967 = vadd.f32 0.0, %v966
    %v968 = vpop.f32.mrb[0].mxu0
    %969 = vmatprep.mubr.bf16.mxu0 0
    %970 = vmatmul.mubr.bf16.gmra.mrb[0].mxu0 %v595
    %v971 = vpop.f32.mrb[0].mxu0
    %v972 = vadd.f32 0.0, %v971
    %v973 = vpop.f32.mrb[0].mxu0
    %v974 = vpop.f32.mrb[0].mxu0
    %v975 = vadd.f32 0.0, %v974
    %v976 = vpop.f32.mrb[0].mxu0
    %977 = vmatprep.mubr.bf16.mxu0 0
    %978 = vmatmul.mubr.bf16.gmra.mrb[0].mxu0 %v598
    %v979 = vpop.f32.mrb[0].mxu0
    %v980 = vadd.f32 0.0, %v979
    %v981 = vpop.f32.mrb[0].mxu0
    %v982 = vpop.f32.mrb[0].mxu0
    %v983 = vadd.f32 0.0, %v982
    %v984 = vpop.f32.mrb[0].mxu0
    %985 = vmatprep.mubr.bf16.mxu0 0
    %986 = vmatmul.mubr.bf16.gmra.mrb[0].mxu0 %v601
    %v987 = vpop.f32.mrb[0].mxu0
    %v988 = vadd.f32 0.0, %v987
    %v989 = vpop.f32.mrb[0].mxu0
    %v990 = vpop.f32.mrb[0].mxu0
    %v991 = vadd.f32 0.0, %v990
    %v992 = vpop.f32.mrb[0].mxu0
    %993 = vmatprep.mubr.bf16.mxu0 0
    %994 = vmatmul.mubr.bf16.gmra.mrb[0].mxu0 %v604
    %v995 = vpop.f32.mrb[0].mxu0
    %v996 = vadd.f32 0.0, %v995
    %v997 = vpop.f32.mrb[0].mxu0
    %v998 = vpop.f32.mrb[0].mxu0
    %v999 = vadd.f32 0.0, %v998
    %v1000 = vpop.f32.mrb[0].mxu0
    %1001 = vmatprep.mubr.bf16.mxu0 0
    %1002 = vmatmul.mubr.bf16.gmra.mrb[0].mxu0 %v607
    %v1003 = vpop.f32.mrb[0].mxu0
    %v1004 = vadd.f32 0.0, %v1003
    %v1005 = vpop.f32.mrb[0].mxu0
    %v1006 = vpop.f32.mrb[0].mxu0
    %v1007 = vadd.f32 0.0, %v1006
    %v1008 = vpop.f32.mrb[0].mxu0
    %1009 = vmatprep.mubr.bf16.mxu0 0
    %1010 = vmatmul.mubr.bf16.gmra.mrb[0].mxu0 %v610
    %v1011 = vpop.f32.mrb[0].mxu0
    %v1012 = vadd.f32 0.0, %v1011
    %v1013 = vpop.f32.mrb[0].mxu0
    %v1014 = vpop.f32.mrb[0].mxu0
    %v1015 = vadd.f32 0.0, %v1014
    %v1016 = vpop.f32.mrb[0].mxu0
    %1017 = vmatprep.mubr.bf16.mxu0 0
    %1018 = vmatmul.mubr.bf16.gmra.mrb[0].mxu0 %v613
    %v1019 = vpop.f32.mrb[0].mxu0
    %v1020 = vadd.f32 0.0, %v1019
    %v1021 = vpop.f32.mrb[0].mxu0
    %v1022 = vpop.f32.mrb[0].mxu0
    %v1023 = vadd.f32 0.0, %v1022
    %v1024 = vpop.f32.mrb[0].mxu0
    %1025 = vmatprep.mubr.bf16.mxu0 0
    %1026 = vmatmul.mubr.bf16.gmra.mrb[0].mxu0 %v616
    %v1027 = vpop.f32.mrb[0].mxu0
    %v1028 = vadd.f32 0.0, %v1027
    %v1029 = vpop.f32.mrb[0].mxu0
    %v1030 = vpop.f32.mrb[0].mxu0
    %v1031 = vadd.f32 0.0, %v1030
    %v1032 = vpop.f32.mrb[0].mxu0
    %1033 = vmatprep.mubr.bf16.mxu0 0
    %1034 = vmatmul.mubr.bf16.gmra.mrb[0].mxu0 %v619
    %v1035 = vpop.f32.mrb[0].mxu0
    %v1036 = vadd.f32 0.0, %v1035
    %v1037 = vpop.f32.mrb[0].mxu0
    %v1038 = vpop.f32.mrb[0].mxu0
    %v1039 = vadd.f32 0.0, %v1038
    %v1040 = vpop.f32.mrb[0].mxu0
    %1041 = vdwg.mxu0
    %v1138 = vunpack.c.l.b16 %v44
    %v1139 = vunpack.c.l.b16 %v45
    %v1140 = vunpack.c.l.b16 %v46
    %v1141 = vunpack.c.l.b16 %v47
    %v1142 = vunpack.c.l.b16 %v48
    %v1143 = vunpack.c.l.b16 %v49
    %v1144 = vunpack.c.l.b16 %v50
    %v1145 = vunpack.c.l.b16 %v51
    %v1146 = vunpack.c.l.b16 %v52
    %v1147 = vunpack.c.l.b16 %v53
    %v1148 = vunpack.c.l.b16 %v54
    %v1149 = vunpack.c.l.b16 %v55
    %v1150 = vunpack.c.l.b16 %v56
    %v1151 = vunpack.c.l.b16 %v57
    %v1152 = vunpack.c.l.b16 %v58
    %v1153 = vunpack.c.l.b16 %v59
    %v1154 = vunpack.c.l.b16 %v60
    %v1155 = vunpack.c.l.b16 %v61
    %v1156 = vunpack.c.l.b16 %v62
    %v1157 = vunpack.c.l.b16 %v63
    %v1158 = vunpack.c.l.b16 %v64
    %v1159 = vunpack.c.l.b16 %v65
    %v1160 = vunpack.c.l.b16 %v66
    %v1161 = vunpack.c.l.b16 %v67
    %v1162 = vunpack.c.l.b16 %v68
    %v1163 = vunpack.c.l.b16 %v69
    %v1164 = vunpack.c.l.b16 %v70
    %v1165 = vunpack.c.l.b16 %v71
    %v1166 = vunpack.c.l.b16 %v72
    %v1167 = vunpack.c.l.b16 %v73
    %v1168 = vunpack.c.l.b16 %v74
    %v1169 = vunpack.c.l.b16 %v75
    %v1170 = vunpack.c.l.b16 %v76
    %v1171 = vunpack.c.l.b16 %v77
    %v1172 = vunpack.c.l.b16 %v78
    %v1173 = vunpack.c.l.b16 %v79
    %v1174 = vunpack.c.l.b16 %v80
    %v1175 = vunpack.c.l.b16 %v81
    %v1176 = vunpack.c.l.b16 %v82
    %v1177 = vunpack.c.l.b16 %v83
    %v1178 = vunpack.c.l.b16 %v84
    %v1179 = vunpack.c.l.b16 %v85
    %v1180 = vunpack.c.l.b16 %v86
    %v1181 = vunpack.c.l.b16 %v87
    %v1182 = vunpack.c.l.b16 %v88
    %v1183 = vunpack.c.l.b16 %v89
    %v1184 = vunpack.c.l.b16 %v90
    %v1185 = vunpack.c.l.b16 %v91
    %v1186 = vunpack.c.l.b16 %v92
    %v1187 = vunpack.c.l.b16 %v93
    %v1188 = vunpack.c.l.b16 %v94
    %v1189 = vunpack.c.l.b16 %v95
    %v1190 = vunpack.c.l.b16 %v96
    %v1191 = vunpack.c.l.b16 %v97
    %v1192 = vunpack.c.l.b16 %v98
    %v1193 = vunpack.c.l.b16 %v99
    %v1194 = vunpack.c.l.b16 %v100
    %v1195 = vunpack.c.l.b16 %v101
    %v1196 = vunpack.c.l.b16 %v102
    %v1197 = vunpack.c.l.b16 %v103
    %v1198 = vunpack.c.l.b16 %v104
    %v1199 = vunpack.c.l.b16 %v105
    %v1200 = vunpack.c.l.b16 %v106
    %v1201 = vunpack.c.l.b16 %v107
    %v1202 = vunpack.c.l.b16 %v108
    %v1203 = vunpack.c.l.b16 %v109
    %v1204 = vunpack.c.l.b16 %v110
    %v1205 = vunpack.c.l.b16 %v111
    %v1206 = vunpack.c.l.b16 %v112
    %v1207 = vunpack.c.l.b16 %v113
    %v1208 = vunpack.c.l.b16 %v114
    %v1209 = vunpack.c.l.b16 %v115
    %v1210 = vunpack.c.l.b16 %v116
    %v1211 = vunpack.c.l.b16 %v117
    %v1212 = vunpack.c.l.b16 %v118
    %v1213 = vunpack.c.l.b16 %v119
    %v1214 = vunpack.c.l.b16 %v120
    %v1215 = vunpack.c.l.b16 %v121
    %v1216 = vunpack.c.l.b16 %v122
    %v1217 = vunpack.c.l.b16 %v123
    %v1218 = vunpack.c.l.b16 %v124
    %v1219 = vunpack.c.l.b16 %v125
    %v1220 = vunpack.c.l.b16 %v126
    %v1221 = vunpack.c.l.b16 %v127
    %v1222 = vunpack.c.l.b16 %v128
    %v1223 = vunpack.c.l.b16 %v129
    %v1224 = vunpack.c.l.b16 %v130
    %v1225 = vunpack.c.l.b16 %v131
    %v1226 = vunpack.c.l.b16 %v132
    %v1227 = vunpack.c.l.b16 %v133
    %v1228 = vunpack.c.l.b16 %v134
    %v1229 = vunpack.c.l.b16 %v135
    %v1230 = vunpack.c.l.b16 %v136
    %v1231 = vunpack.c.l.b16 %v137
    %v1232 = vunpack.c.l.b16 %v138
    %v1233 = vunpack.c.l.b16 %v139
    %v1234 = vpack.c.b16 %v1139, %v1138
    %v1235 = vpack.c.b16 %v1141, %v1140
    %v1236 = vpack.c.b16 %v1143, %v1142
    %v1237 = vpack.c.b16 %v1145, %v1144
    %v1238 = vpack.c.b16 %v1147, %v1146
    %v1239 = vpack.c.b16 %v1149, %v1148
    %v1240 = vpack.c.b16 %v1151, %v1150
    %v1241 = vpack.c.b16 %v1153, %v1152
    %v1242 = vpack.c.b16 %v1155, %v1154
    %v1243 = vpack.c.b16 %v1157, %v1156
    %v1244 = vpack.c.b16 %v1159, %v1158
    %v1245 = vpack.c.b16 %v1161, %v1160
    %v1246 = vpack.c.b16 %v1163, %v1162
    %v1247 = vpack.c.b16 %v1165, %v1164
    %v1248 = vpack.c.b16 %v1167, %v1166
    %v1249 = vpack.c.b16 %v1169, %v1168
    %v1250 = vpack.c.b16 %v1171, %v1170
    %v1251 = vpack.c.b16 %v1173, %v1172
    %v1252 = vpack.c.b16 %v1175, %v1174
    %v1253 = vpack.c.b16 %v1177, %v1176
    %v1254 = vpack.c.b16 %v1179, %v1178
    %v1255 = vpack.c.b16 %v1181, %v1180
    %v1256 = vpack.c.b16 %v1183, %v1182
    %v1257 = vpack.c.b16 %v1185, %v1184
    %v1258 = vpack.c.b16 %v1187, %v1186
    %v1259 = vpack.c.b16 %v1189, %v1188
    %v1260 = vpack.c.b16 %v1191, %v1190
    %v1261 = vpack.c.b16 %v1193, %v1192
    %v1262 = vpack.c.b16 %v1195, %v1194
    %v1263 = vpack.c.b16 %v1197, %v1196
    %v1264 = vpack.c.b16 %v1199, %v1198
    %v1265 = vpack.c.b16 %v1201, %v1200
    %v1266 = vpack.c.b16 %v1203, %v1202
    %v1267 = vpack.c.b16 %v1205, %v1204
    %v1268 = vpack.c.b16 %v1207, %v1206
    %v1269 = vpack.c.b16 %v1209, %v1208
    %v1270 = vpack.c.b16 %v1211, %v1210
    %v1271 = vpack.c.b16 %v1213, %v1212
    %v1272 = vpack.c.b16 %v1215, %v1214
    %v1273 = vpack.c.b16 %v1217, %v1216
    %v1274 = vpack.c.b16 %v1219, %v1218
    %v1275 = vpack.c.b16 %v1221, %v1220
    %v1276 = vpack.c.b16 %v1223, %v1222
    %v1277 = vpack.c.b16 %v1225, %v1224
    %v1278 = vpack.c.b16 %v1227, %v1226
    %v1279 = vpack.c.b16 %v1229, %v1228
    %v1280 = vpack.c.b16 %v1231, %v1230
    %v1281 = vpack.c.b16 %v1233, %v1232
    %vm1282 = vcmask 236544
    %v1284 = vsel %vm1282, %v1234, 0
    %v1287 = vsel %vm1282, %v1235, 0
    %v1290 = vsel %vm1282, %v1236, 0
    %v1293 = vsel %vm1282, %v1237, 0
    %v1296 = vsel %vm1282, %v1238, 0
    %v1299 = vsel %vm1282, %v1239, 0
    %v1302 = vsel %vm1282, %v1240, 0
    %v1305 = vsel %vm1282, %v1241, 0
    %v1308 = vsel %vm1282, %v1242, 0
    %v1311 = vsel %vm1282, %v1243, 0
    %v1314 = vsel %vm1282, %v1244, 0
    %v1317 = vsel %vm1282, %v1245, 0
    %v1320 = vsel %vm1282, %v1246, 0
    %v1323 = vsel %vm1282, %v1247, 0
    %v1326 = vsel %vm1282, %v1248, 0
    %v1329 = vsel %vm1282, %v1249, 0
    %v1332 = vsel %vm1282, %v1250, 0
    %v1335 = vsel %vm1282, %v1251, 0
    %v1338 = vsel %vm1282, %v1252, 0
    %v1341 = vsel %vm1282, %v1253, 0
    %v1344 = vsel %vm1282, %v1254, 0
    %v1347 = vsel %vm1282, %v1255, 0
    %v1350 = vsel %vm1282, %v1256, 0
    %v1353 = vsel %vm1282, %v1257, 0
    %v1356 = vsel %vm1282, %v1258, 0
    %v1359 = vsel %vm1282, %v1259, 0
    %v1362 = vsel %vm1282, %v1260, 0
    %v1365 = vsel %vm1282, %v1261, 0
    %v1368 = vsel %vm1282, %v1262, 0
    %v1371 = vsel %vm1282, %v1263, 0
    %v1374 = vsel %vm1282, %v1264, 0
    %v1377 = vsel %vm1282, %v1265, 0
    %v1380 = vsel %vm1282, %v1266, 0
    %v1383 = vsel %vm1282, %v1267, 0
    %v1386 = vsel %vm1282, %v1268, 0
    %v1389 = vsel %vm1282, %v1269, 0
    %v1392 = vsel %vm1282, %v1270, 0
    %v1395 = vsel %vm1282, %v1271, 0
    %v1398 = vsel %vm1282, %v1272, 0
    %v1401 = vsel %vm1282, %v1273, 0
    %v1404 = vsel %vm1282, %v1274, 0
    %v1407 = vsel %vm1282, %v1275, 0
    %v1410 = vsel %vm1282, %v1276, 0
    %v1413 = vsel %vm1282, %v1277, 0
    %v1416 = vsel %vm1282, %v1278, 0
    %v1419 = vsel %vm1282, %v1279, 0
    %v1422 = vsel %vm1282, %v1280, 0
    %v1425 = vsel %vm1282, %v1281, 0
    %vm1427 = vcmask 1045504
    %vm1428 = vcmask 1046528
    %v1429 = vsel %vm1427, 4294967295, 65535
    %v1430 = vsel %vm1428, %v1429, 0
    %v1432 = vand.u32 %v41, %v1430
    %1434 = vmatprep.subr.bf16.mxu0 0
    %1435 = vmatpush1.bf16.msra.mxu0 %v40
    %1436 = vmatprep.subr.bf16.mxu0 0
    %1437 = vmatpush1.bf16.msra.mxu0 %v1432
    %1438 = vmatprep.subr.bf16.mxu0 0
    %1439 = vmatpush1.bf16.msra.mxu0 0
    %1440 = vmatprep.subr.bf16.mxu0 0
    %1441 = vmatpush1.bf16.msra.mxu0 0
    %1442 = vmatprep.subr.bf16.mxu0 0
    %1443 = vmatpush1.bf16.msra.mxu0 0
    %1444 = vmatprep.subr.bf16.mxu0 0
    %1445 = vmatpush1.bf16.msra.mxu0 0
    %1446 = vmatprep.subr.bf16.mxu0 0
    %1447 = vmatpush1.bf16.msra.mxu0 0
    %1448 = vmatprep.subr.bf16.mxu0 0
    %1449 = vmatpush1.bf16.msra.mxu0 0
    %1450 = vmatprep.subr.bf16.mxu0 0
    %1451 = vmatpush1.bf16.msra.mxu0 0
    %1452 = vmatprep.subr.bf16.mxu0 0
    %1453 = vmatpush1.bf16.msra.mxu0 0
    %1454 = vmatprep.subr.bf16.mxu0 0
    %1455 = vmatpush1.bf16.msra.mxu0 0
    %1456 = vmatprep.subr.bf16.mxu0 0
    %1457 = vmatpush1.bf16.msra.mxu0 0
    %1458 = vmatprep.subr.bf16.mxu0 0
    %1459 = vmatpush1.bf16.msra.mxu0 0
    %1460 = vmatprep.subr.bf16.mxu0 0
    %1461 = vmatpush1.bf16.msra.mxu0 0
    %1462 = vmatprep.subr.bf16.mxu0 0
    %1463 = vmatpush1.bf16.msra.mxu0 0
    %1464 = vmatprep.subr.bf16.mxu0 0
    %1465 = vmatpush1.bf16.msra.mxu0 0
    %1466 = vmatprep.mubr.bf16.mxu0 0
    %1467 = vmatmul.mubr.bf16.gmra.mrb[0].mxu0 %v1284
    %v1468 = vpop.f32.mrb[0].mxu0
    %v1469 = vadd.f32 %v660, %v1468
    %v1470 = vpop.f32.mrb[0].mxu0
    %v1471 = vpop.f32.mrb[0].mxu0
    %v1472 = vadd.f32 %v663, %v1471
    %v1473 = vpop.f32.mrb[0].mxu0
    %1474 = vmatprep.mubr.bf16.mxu0 0
    %1475 = vmatmul.mubr.bf16.gmra.mrb[0].mxu0 %v1287
    %v1476 = vpop.f32.mrb[0].mxu0
    %v1477 = vadd.f32 %v668, %v1476
    %v1478 = vpop.f32.mrb[0].mxu0
    %v1479 = vpop.f32.mrb[0].mxu0
    %v1480 = vadd.f32 %v671, %v1479
    %v1481 = vpop.f32.mrb[0].mxu0
    %1482 = vmatprep.mubr.bf16.mxu0 0
    %1483 = vmatmul.mubr.bf16.gmra.mrb[0].mxu0 %v1290
    %v1484 = vpop.f32.mrb[0].mxu0
    %v1485 = vadd.f32 %v676, %v1484
    %v1486 = vpop.f32.mrb[0].mxu0
    %v1487 = vpop.f32.mrb[0].mxu0
    %v1488 = vadd.f32 %v679, %v1487
    %v1489 = vpop.f32.mrb[0].mxu0
    %1490 = vmatprep.mubr.bf16.mxu0 0
    %1491 = vmatmul.mubr.bf16.gmra.mrb[0].mxu0 %v1293
    %v1492 = vpop.f32.mrb[0].mxu0
    %v1493 = vadd.f32 %v684, %v1492
    %v1494 = vpop.f32.mrb[0].mxu0
    %v1495 = vpop.f32.mrb[0].mxu0
    %v1496 = vadd.f32 %v687, %v1495
    %v1497 = vpop.f32.mrb[0].mxu0
    %1498 = vmatprep.mubr.bf16.mxu0 0
    %1499 = vmatmul.mubr.bf16.gmra.mrb[0].mxu0 %v1296
    %v1500 = vpop.f32.mrb[0].mxu0
    %v1501 = vadd.f32 %v692, %v1500
    %v1502 = vpop.f32.mrb[0].mxu0
    %v1503 = vpop.f32.mrb[0].mxu0
    %v1504 = vadd.f32 %v695, %v1503
    %v1505 = vpop.f32.mrb[0].mxu0
    %1506 = vmatprep.mubr.bf16.mxu0 0
    %1507 = vmatmul.mubr.bf16.gmra.mrb[0].mxu0 %v1299
    %v1508 = vpop.f32.mrb[0].mxu0
    %v1509 = vadd.f32 %v700, %v1508
    %v1510 = vpop.f32.mrb[0].mxu0
    %v1511 = vpop.f32.mrb[0].mxu0
    %v1512 = vadd.f32 %v703, %v1511
    %v1513 = vpop.f32.mrb[0].mxu0
    %1514 = vmatprep.mubr.bf16.mxu0 0
    %1515 = vmatmul.mubr.bf16.gmra.mrb[0].mxu0 %v1302
    %v1516 = vpop.f32.mrb[0].mxu0
    %v1517 = vadd.f32 %v708, %v1516
    %v1518 = vpop.f32.mrb[0].mxu0
    %v1519 = vpop.f32.mrb[0].mxu0
    %v1520 = vadd.f32 %v711, %v1519
    %v1521 = vpop.f32.mrb[0].mxu0
    %1522 = vmatprep.mubr.bf16.mxu0 0
    %1523 = vmatmul.mubr.bf16.gmra.mrb[0].mxu0 %v1305
    %v1524 = vpop.f32.mrb[0].mxu0
    %v1525 = vadd.f32 %v716, %v1524
    %v1526 = vpop.f32.mrb[0].mxu0
    %v1527 = vpop.f32.mrb[0].mxu0
    %v1528 = vadd.f32 %v719, %v1527
    %v1529 = vpop.f32.mrb[0].mxu0
    %1530 = vmatprep.mubr.bf16.mxu0 0
    %1531 = vmatmul.mubr.bf16.gmra.mrb[0].mxu0 %v1308
    %v1532 = vpop.f32.mrb[0].mxu0
    %v1533 = vadd.f32 %v724, %v1532
    %v1534 = vpop.f32.mrb[0].mxu0
    %v1535 = vpop.f32.mrb[0].mxu0
    %v1536 = vadd.f32 %v727, %v1535
    %v1537 = vpop.f32.mrb[0].mxu0
    %1538 = vmatprep.mubr.bf16.mxu0 0
    %1539 = vmatmul.mubr.bf16.gmra.mrb[0].mxu0 %v1311
    %v1540 = vpop.f32.mrb[0].mxu0
    %v1541 = vadd.f32 %v732, %v1540
    %v1542 = vpop.f32.mrb[0].mxu0
    %v1543 = vpop.f32.mrb[0].mxu0
    %v1544 = vadd.f32 %v735, %v1543
    %v1545 = vpop.f32.mrb[0].mxu0
    %1546 = vmatprep.mubr.bf16.mxu0 0
    %1547 = vmatmul.mubr.bf16.gmra.mrb[0].mxu0 %v1314
    %v1548 = vpop.f32.mrb[0].mxu0
    %v1549 = vadd.f32 %v740, %v1548
    %v1550 = vpop.f32.mrb[0].mxu0
    %v1551 = vpop.f32.mrb[0].mxu0
    %v1552 = vadd.f32 %v743, %v1551
    %v1553 = vpop.f32.mrb[0].mxu0
    %1554 = vmatprep.mubr.bf16.mxu0 0
    %1555 = vmatmul.mubr.bf16.gmra.mrb[0].mxu0 %v1317
    %v1556 = vpop.f32.mrb[0].mxu0
    %v1557 = vadd.f32 %v748, %v1556
    %v1558 = vpop.f32.mrb[0].mxu0
    %v1559 = vpop.f32.mrb[0].mxu0
    %v1560 = vadd.f32 %v751, %v1559
    %v1561 = vpop.f32.mrb[0].mxu0
    %1562 = vmatprep.mubr.bf16.mxu0 0
    %1563 = vmatmul.mubr.bf16.gmra.mrb[0].mxu0 %v1320
    %v1564 = vpop.f32.mrb[0].mxu0
    %v1565 = vadd.f32 %v756, %v1564
    %v1566 = vpop.f32.mrb[0].mxu0
    %v1567 = vpop.f32.mrb[0].mxu0
    %v1568 = vadd.f32 %v759, %v1567
    %v1569 = vpop.f32.mrb[0].mxu0
    %1570 = vmatprep.mubr.bf16.mxu0 0
    %1571 = vmatmul.mubr.bf16.gmra.mrb[0].mxu0 %v1323
    %v1572 = vpop.f32.mrb[0].mxu0
    %v1573 = vadd.f32 %v764, %v1572
    %v1574 = vpop.f32.mrb[0].mxu0
    %v1575 = vpop.f32.mrb[0].mxu0
    %v1576 = vadd.f32 %v767, %v1575
    %v1577 = vpop.f32.mrb[0].mxu0
    %1578 = vmatprep.mubr.bf16.mxu0 0
    %1579 = vmatmul.mubr.bf16.gmra.mrb[0].mxu0 %v1326
    %v1580 = vpop.f32.mrb[0].mxu0
    %v1581 = vadd.f32 %v772, %v1580
    %v1582 = vpop.f32.mrb[0].mxu0
    %v1583 = vpop.f32.mrb[0].mxu0
    %v1584 = vadd.f32 %v775, %v1583
    %v1585 = vpop.f32.mrb[0].mxu0
    %1586 = vmatprep.mubr.bf16.mxu0 0
    %1587 = vmatmul.mubr.bf16.gmra.mrb[0].mxu0 %v1329
    %v1588 = vpop.f32.mrb[0].mxu0
    %v1589 = vadd.f32 %v780, %v1588
    %v1590 = vpop.f32.mrb[0].mxu0
    %v1591 = vpop.f32.mrb[0].mxu0
    %v1592 = vadd.f32 %v783, %v1591
    %v1593 = vpop.f32.mrb[0].mxu0
    %1594 = vmatprep.mubr.bf16.mxu0 0
    %1595 = vmatmul.mubr.bf16.gmra.mrb[0].mxu0 %v1332
    %v1596 = vpop.f32.mrb[0].mxu0
    %v1597 = vadd.f32 %v788, %v1596
    %v1598 = vpop.f32.mrb[0].mxu0
    %v1599 = vpop.f32.mrb[0].mxu0
    %v1600 = vadd.f32 %v791, %v1599
    %v1601 = vpop.f32.mrb[0].mxu0
    %1602 = vmatprep.mubr.bf16.mxu0 0
    %1603 = vmatmul.mubr.bf16.gmra.mrb[0].mxu0 %v1335
    %v1604 = vpop.f32.mrb[0].mxu0
    %v1605 = vadd.f32 %v796, %v1604
    %v1606 = vpop.f32.mrb[0].mxu0
    %v1607 = vpop.f32.mrb[0].mxu0
    %v1608 = vadd.f32 %v799, %v1607
    %v1609 = vpop.f32.mrb[0].mxu0
    %1610 = vmatprep.mubr.bf16.mxu0 0
    %1611 = vmatmul.mubr.bf16.gmra.mrb[0].mxu0 %v1338
    %v1612 = vpop.f32.mrb[0].mxu0
    %v1613 = vadd.f32 %v804, %v1612
    %v1614 = vpop.f32.mrb[0].mxu0
    %v1615 = vpop.f32.mrb[0].mxu0
    %v1616 = vadd.f32 %v807, %v1615
    %v1617 = vpop.f32.mrb[0].mxu0
    %1618 = vmatprep.mubr.bf16.mxu0 0
    %1619 = vmatmul.mubr.bf16.gmra.mrb[0].mxu0 %v1341
    %v1620 = vpop.f32.mrb[0].mxu0
    %v1621 = vadd.f32 %v812, %v1620
    %v1622 = vpop.f32.mrb[0].mxu0
    %v1623 = vpop.f32.mrb[0].mxu0
    %v1624 = vadd.f32 %v815, %v1623
    %v1625 = vpop.f32.mrb[0].mxu0
    %1626 = vmatprep.mubr.bf16.mxu0 0
    %1627 = vmatmul.mubr.bf16.gmra.mrb[0].mxu0 %v1344
    %v1628 = vpop.f32.mrb[0].mxu0
    %v1629 = vadd.f32 %v820, %v1628
    %v1630 = vpop.f32.mrb[0].mxu0
    %v1631 = vpop.f32.mrb[0].mxu0
    %v1632 = vadd.f32 %v823, %v1631
    %v1633 = vpop.f32.mrb[0].mxu0
    %1634 = vmatprep.mubr.bf16.mxu0 0
    %1635 = vmatmul.mubr.bf16.gmra.mrb[0].mxu0 %v1347
    %v1636 = vpop.f32.mrb[0].mxu0
    %v1637 = vadd.f32 %v828, %v1636
    %v1638 = vpop.f32.mrb[0].mxu0
    %v1639 = vpop.f32.mrb[0].mxu0
    %v1640 = vadd.f32 %v831, %v1639
    %v1641 = vpop.f32.mrb[0].mxu0
    %1642 = vmatprep.mubr.bf16.mxu0 0
    %1643 = vmatmul.mubr.bf16.gmra.mrb[0].mxu0 %v1350
    %v1644 = vpop.f32.mrb[0].mxu0
    %v1645 = vadd.f32 %v836, %v1644
    %v1646 = vpop.f32.mrb[0].mxu0
    %v1647 = vpop.f32.mrb[0].mxu0
    %v1648 = vadd.f32 %v839, %v1647
    %v1649 = vpop.f32.mrb[0].mxu0
    %1650 = vmatprep.mubr.bf16.mxu0 0
    %1651 = vmatmul.mubr.bf16.gmra.mrb[0].mxu0 %v1353
    %v1652 = vpop.f32.mrb[0].mxu0
    %v1653 = vadd.f32 %v844, %v1652
    %v1654 = vpop.f32.mrb[0].mxu0
    %v1655 = vpop.f32.mrb[0].mxu0
    %v1656 = vadd.f32 %v847, %v1655
    %v1657 = vpop.f32.mrb[0].mxu0
    %1658 = vmatprep.mubr.bf16.mxu0 0
    %1659 = vmatmul.mubr.bf16.gmra.mrb[0].mxu0 %v1356
    %v1660 = vpop.f32.mrb[0].mxu0
    %v1661 = vadd.f32 %v852, %v1660
    %v1662 = vpop.f32.mrb[0].mxu0
    %v1663 = vpop.f32.mrb[0].mxu0
    %v1664 = vadd.f32 %v855, %v1663
    %v1665 = vpop.f32.mrb[0].mxu0
    %1666 = vmatprep.mubr.bf16.mxu0 0
    %1667 = vmatmul.mubr.bf16.gmra.mrb[0].mxu0 %v1359
    %v1668 = vpop.f32.mrb[0].mxu0
    %v1669 = vadd.f32 %v860, %v1668
    %v1670 = vpop.f32.mrb[0].mxu0
    %v1671 = vpop.f32.mrb[0].mxu0
    %v1672 = vadd.f32 %v863, %v1671
    %v1673 = vpop.f32.mrb[0].mxu0
    %1674 = vmatprep.mubr.bf16.mxu0 0
    %1675 = vmatmul.mubr.bf16.gmra.mrb[0].mxu0 %v1362
    %v1676 = vpop.f32.mrb[0].mxu0
    %v1677 = vadd.f32 %v868, %v1676
    %v1678 = vpop.f32.mrb[0].mxu0
    %v1679 = vpop.f32.mrb[0].mxu0
    %v1680 = vadd.f32 %v871, %v1679
    %v1681 = vpop.f32.mrb[0].mxu0
    %1682 = vmatprep.mubr.bf16.mxu0 0
    %1683 = vmatmul.mubr.bf16.gmra.mrb[0].mxu0 %v1365
    %v1684 = vpop.f32.mrb[0].mxu0
    %v1685 = vadd.f32 %v876, %v1684
    %v1686 = vpop.f32.mrb[0].mxu0
    %v1687 = vpop.f32.mrb[0].mxu0
    %v1688 = vadd.f32 %v879, %v1687
    %v1689 = vpop.f32.mrb[0].mxu0
    %1690 = vmatprep.mubr.bf16.mxu0 0
    %1691 = vmatmul.mubr.bf16.gmra.mrb[0].mxu0 %v1368
    %v1692 = vpop.f32.mrb[0].mxu0
    %v1693 = vadd.f32 %v884, %v1692
    %v1694 = vpop.f32.mrb[0].mxu0
    %v1695 = vpop.f32.mrb[0].mxu0
    %v1696 = vadd.f32 %v887, %v1695
    %v1697 = vpop.f32.mrb[0].mxu0
    %1698 = vmatprep.mubr.bf16.mxu0 0
    %1699 = vmatmul.mubr.bf16.gmra.mrb[0].mxu0 %v1371
    %v1700 = vpop.f32.mrb[0].mxu0
    %v1701 = vadd.f32 %v892, %v1700
    %v1702 = vpop.f32.mrb[0].mxu0
    %v1703 = vpop.f32.mrb[0].mxu0
    %v1704 = vadd.f32 %v895, %v1703
    %v1705 = vpop.f32.mrb[0].mxu0
    %1706 = vmatprep.mubr.bf16.mxu0 0
    %1707 = vmatmul.mubr.bf16.gmra.mrb[0].mxu0 %v1374
    %v1708 = vpop.f32.mrb[0].mxu0
    %v1709 = vadd.f32 %v900, %v1708
    %v1710 = vpop.f32.mrb[0].mxu0
    %v1711 = vpop.f32.mrb[0].mxu0
    %v1712 = vadd.f32 %v903, %v1711
    %v1713 = vpop.f32.mrb[0].mxu0
    %1714 = vmatprep.mubr.bf16.mxu0 0
    %1715 = vmatmul.mubr.bf16.gmra.mrb[0].mxu0 %v1377
    %v1716 = vpop.f32.mrb[0].mxu0
    %v1717 = vadd.f32 %v908, %v1716
    %v1718 = vpop.f32.mrb[0].mxu0
    %v1719 = vpop.f32.mrb[0].mxu0
    %v1720 = vadd.f32 %v911, %v1719
    %v1721 = vpop.f32.mrb[0].mxu0
    %1722 = vmatprep.mubr.bf16.mxu0 0
    %1723 = vmatmul.mubr.bf16.gmra.mrb[0].mxu0 %v1380
    %v1724 = vpop.f32.mrb[0].mxu0
    %v1725 = vadd.f32 %v916, %v1724
    %v1726 = vpop.f32.mrb[0].mxu0
    %v1727 = vpop.f32.mrb[0].mxu0
    %v1728 = vadd.f32 %v919, %v1727
    %v1729 = vpop.f32.mrb[0].mxu0
    %1730 = vmatprep.mubr.bf16.mxu0 0
    %1731 = vmatmul.mubr.bf16.gmra.mrb[0].mxu0 %v1383
    %v1732 = vpop.f32.mrb[0].mxu0
    %v1733 = vadd.f32 %v924, %v1732
    %v1734 = vpop.f32.mrb[0].mxu0
    %v1735 = vpop.f32.mrb[0].mxu0
    %v1736 = vadd.f32 %v927, %v1735
    %v1737 = vpop.f32.mrb[0].mxu0
    %1738 = vmatprep.mubr.bf16.mxu0 0
    %1739 = vmatmul.mubr.bf16.gmra.mrb[0].mxu0 %v1386
    %v1740 = vpop.f32.mrb[0].mxu0
    %v1741 = vadd.f32 %v932, %v1740
    %v1742 = vpop.f32.mrb[0].mxu0
    %v1743 = vpop.f32.mrb[0].mxu0
    %v1744 = vadd.f32 %v935, %v1743
    %v1745 = vpop.f32.mrb[0].mxu0
    %1746 = vmatprep.mubr.bf16.mxu0 0
    %1747 = vmatmul.mubr.bf16.gmra.mrb[0].mxu0 %v1389
    %v1748 = vpop.f32.mrb[0].mxu0
    %v1749 = vadd.f32 %v940, %v1748
    %v1750 = vpop.f32.mrb[0].mxu0
    %v1751 = vpop.f32.mrb[0].mxu0
    %v1752 = vadd.f32 %v943, %v1751
    %v1753 = vpop.f32.mrb[0].mxu0
    %1754 = vmatprep.mubr.bf16.mxu0 0
    %1755 = vmatmul.mubr.bf16.gmra.mrb[0].mxu0 %v1392
    %v1756 = vpop.f32.mrb[0].mxu0
    %v1757 = vadd.f32 %v948, %v1756
    %v1758 = vpop.f32.mrb[0].mxu0
    %v1759 = vpop.f32.mrb[0].mxu0
    %v1760 = vadd.f32 %v951, %v1759
    %v1761 = vpop.f32.mrb[0].mxu0
    %1762 = vmatprep.mubr.bf16.mxu0 0
    %1763 = vmatmul.mubr.bf16.gmra.mrb[0].mxu0 %v1395
    %v1764 = vpop.f32.mrb[0].mxu0
    %v1765 = vadd.f32 %v956, %v1764
    %v1766 = vpop.f32.mrb[0].mxu0
    %v1767 = vpop.f32.mrb[0].mxu0
    %v1768 = vadd.f32 %v959, %v1767
    %v1769 = vpop.f32.mrb[0].mxu0
    %1770 = vmatprep.mubr.bf16.mxu0 0
    %1771 = vmatmul.mubr.bf16.gmra.mrb[0].mxu0 %v1398
    %v1772 = vpop.f32.mrb[0].mxu0
    %v1773 = vadd.f32 %v964, %v1772
    %v1774 = vpop.f32.mrb[0].mxu0
    %v1775 = vpop.f32.mrb[0].mxu0
    %v1776 = vadd.f32 %v967, %v1775
    %v1777 = vpop.f32.mrb[0].mxu0
    %1778 = vmatprep.mubr.bf16.mxu0 0
    %1779 = vmatmul.mubr.bf16.gmra.mrb[0].mxu0 %v1401
    %v1780 = vpop.f32.mrb[0].mxu0
    %v1781 = vadd.f32 %v972, %v1780
    %v1782 = vpop.f32.mrb[0].mxu0
    %v1783 = vpop.f32.mrb[0].mxu0
    %v1784 = vadd.f32 %v975, %v1783
    %v1785 = vpop.f32.mrb[0].mxu0
    %1786 = vmatprep.mubr.bf16.mxu0 0
    %1787 = vmatmul.mubr.bf16.gmra.mrb[0].mxu0 %v1404
    %v1788 = vpop.f32.mrb[0].mxu0
    %v1789 = vadd.f32 %v980, %v1788
    %v1790 = vpop.f32.mrb[0].mxu0
    %v1791 = vpop.f32.mrb[0].mxu0
    %v1792 = vadd.f32 %v983, %v1791
    %v1793 = vpop.f32.mrb[0].mxu0
    %1794 = vmatprep.mubr.bf16.mxu0 0
    %1795 = vmatmul.mubr.bf16.gmra.mrb[0].mxu0 %v1407
    %v1796 = vpop.f32.mrb[0].mxu0
    %v1797 = vadd.f32 %v988, %v1796
    %v1798 = vpop.f32.mrb[0].mxu0
    %v1799 = vpop.f32.mrb[0].mxu0
    %v1800 = vadd.f32 %v991, %v1799
    %v1801 = vpop.f32.mrb[0].mxu0
    %1802 = vmatprep.mubr.bf16.mxu0 0
    %1803 = vmatmul.mubr.bf16.gmra.mrb[0].mxu0 %v1410
    %v1804 = vpop.f32.mrb[0].mxu0
    %v1805 = vadd.f32 %v996, %v1804
    %v1806 = vpop.f32.mrb[0].mxu0
    %v1807 = vpop.f32.mrb[0].mxu0
    %v1808 = vadd.f32 %v999, %v1807
    %v1809 = vpop.f32.mrb[0].mxu0
    %1810 = vmatprep.mubr.bf16.mxu0 0
    %1811 = vmatmul.mubr.bf16.gmra.mrb[0].mxu0 %v1413
    %v1812 = vpop.f32.mrb[0].mxu0
    %v1813 = vadd.f32 %v1004, %v1812
    %v1814 = vpop.f32.mrb[0].mxu0
    %v1815 = vpop.f32.mrb[0].mxu0
    %v1816 = vadd.f32 %v1007, %v1815
    %v1817 = vpop.f32.mrb[0].mxu0
    %1818 = vmatprep.mubr.bf16.mxu0 0
    %1819 = vmatmul.mubr.bf16.gmra.mrb[0].mxu0 %v1416
    %v1820 = vpop.f32.mrb[0].mxu0
    %v1821 = vadd.f32 %v1012, %v1820
    %v1822 = vpop.f32.mrb[0].mxu0
    %v1823 = vpop.f32.mrb[0].mxu0
    %v1824 = vadd.f32 %v1015, %v1823
    %v1825 = vpop.f32.mrb[0].mxu0
    %1826 = vmatprep.mubr.bf16.mxu0 0
    %1827 = vmatmul.mubr.bf16.gmra.mrb[0].mxu0 %v1419
    %v1828 = vpop.f32.mrb[0].mxu0
    %v1829 = vadd.f32 %v1020, %v1828
    %v1830 = vpop.f32.mrb[0].mxu0
    %v1831 = vpop.f32.mrb[0].mxu0
    %v1832 = vadd.f32 %v1023, %v1831
    %v1833 = vpop.f32.mrb[0].mxu0
    %1834 = vmatprep.mubr.bf16.mxu0 0
    %1835 = vmatmul.mubr.bf16.gmra.mrb[0].mxu0 %v1422
    %v1836 = vpop.f32.mrb[0].mxu0
    %v1837 = vadd.f32 %v1028, %v1836
    %v1838 = vpop.f32.mrb[0].mxu0
    %v1839 = vpop.f32.mrb[0].mxu0
    %v1840 = vadd.f32 %v1031, %v1839
    %v1841 = vpop.f32.mrb[0].mxu0
    %1842 = vmatprep.mubr.bf16.mxu0 0
    %1843 = vmatmul.mubr.bf16.gmra.mrb[0].mxu0 %v1425
    %v1844 = vpop.f32.mrb[0].mxu0
    %v1845 = vadd.f32 %v1036, %v1844
    %v1846 = vpop.f32.mrb[0].mxu0
    %v1847 = vpop.f32.mrb[0].mxu0
    %v1848 = vadd.f32 %v1039, %v1847
    %v1849 = vpop.f32.mrb[0].mxu0
    %1850 = vdwg.mxu0
    %v1851 = vld [vmem:[%s4] sm:$0xff]
    %v1852 = vld [vmem:[%s4 + $0x8] sm:$0xff]
    %v1853 = vld [vmem:[%s4 + $0x10] sm:$0xff]
    %v1854 = vld [vmem:[%s4 + $0x18] sm:$0xff]
    %v1855 = vld [vmem:[%s4 + $0x20] sm:$0xff]
    %v1856 = vld [vmem:[%s4 + $0x28] sm:$0xff]
    %v1857 = vld [vmem:[%s4 + $0x30] sm:$0xff]
    %v1858 = vld [vmem:[%s4 + $0x38] sm:$0xff]
    %v1859 = vld [vmem:[%s4 + $0x40] sm:$0xff]
    %v1860 = vld [vmem:[%s4 + $0x48] sm:$0xff]
    %v1861 = vld [vmem:[%s4 + $0x50] sm:$0xff]
    %v1862 = vld [vmem:[%s4 + $0x58] sm:$0xff]
    %v1863 = vld [vmem:[%s4 + $0x60] sm:$0xff]
    %v1864 = vld [vmem:[%s4 + $0x68] sm:$0xff]
    %v1865 = vld [vmem:[%s4 + $0x70] sm:$0xff]
    %v1866 = vld [vmem:[%s4 + $0x78] sm:$0xff]
    %v1867 = vld [vmem:[%s4 + $0x80] sm:$0xff]
    %v1868 = vld [vmem:[%s4 + $0x88] sm:$0xff]
    %v1869 = vld [vmem:[%s4 + $0x90] sm:$0xff]
    %v1870 = vld [vmem:[%s4 + $0x98] sm:$0xff]
    %v1871 = vld [vmem:[%s4 + $0xa0] sm:$0xff]
    %v1872 = vld [vmem:[%s4 + $0xa8] sm:$0xff]
    %v1873 = vld [vmem:[%s4 + $0xb0] sm:$0xff]
    %v1874 = vld [vmem:[%s4 + $0xb8] sm:$0xff]
    %v1875 = vld [vmem:[%s4 + $0xc0] sm:$0xff]
    %v1876 = vld [vmem:[%s4 + $0xc8] sm:$0xff]
    %v1877 = vld [vmem:[%s4 + $0xd0] sm:$0xff]
    %v1878 = vld [vmem:[%s4 + $0xd8] sm:$0xff]
    %v1879 = vld [vmem:[%s4 + $0xe0] sm:$0xff]
    %v1880 = vld [vmem:[%s4 + $0xe8] sm:$0xff]
    %v1881 = vld [vmem:[%s4 + $0xf0] sm:$0xff]
    %v1882 = vld [vmem:[%s4 + $0xf8] sm:$0xff]
    %v1883 = vld [vmem:[%s4 + $0x100] sm:$0xff]
    %v1884 = vld [vmem:[%s4 + $0x108] sm:$0xff]
    %v1885 = vld [vmem:[%s4 + $0x110] sm:$0xff]
    %v1886 = vld [vmem:[%s4 + $0x118] sm:$0xff]
    %v1887 = vld [vmem:[%s4 + $0x120] sm:$0xff]
    %v1888 = vld [vmem:[%s4 + $0x128] sm:$0xff]
    %v1889 = vld [vmem:[%s4 + $0x130] sm:$0xff]
    %v1890 = vld [vmem:[%s4 + $0x138] sm:$0xff]
    %v1891 = vld [vmem:[%s4 + $0x140] sm:$0xff]
    %v1892 = vld [vmem:[%s4 + $0x148] sm:$0xff]
    %v1893 = vld [vmem:[%s4 + $0x150] sm:$0xff]
    %v1894 = vld [vmem:[%s4 + $0x158] sm:$0xff]
    %v1895 = vld [vmem:[%s4 + $0x160] sm:$0xff]
    %v1896 = vld [vmem:[%s4 + $0x168] sm:$0xff]
    %v1897 = vld [vmem:[%s4 + $0x170] sm:$0xff]
    %v1898 = vld [vmem:[%s4 + $0x178] sm:$0xff]
    %v1899 = vld [vmem:[%s4 + $0x180] sm:$0xff]
    %v1900 = vld [vmem:[%s4 + $0x188] sm:$0xff]
    %v1901 = vld [vmem:[%s4 + $0x190] sm:$0xff]
    %v1902 = vld [vmem:[%s4 + $0x198] sm:$0xff]
    %v1903 = vld [vmem:[%s4 + $0x1a0] sm:$0xff]
    %v1904 = vld [vmem:[%s4 + $0x1a8] sm:$0xff]
    %v1905 = vld [vmem:[%s4 + $0x1b0] sm:$0xff]
    %v1906 = vld [vmem:[%s4 + $0x1b8] sm:$0xff]
    %v1907 = vld [vmem:[%s4 + $0x1c0] sm:$0xff]
    %v1908 = vld [vmem:[%s4 + $0x1c8] sm:$0xff]
    %v1909 = vld [vmem:[%s4 + $0x1d0] sm:$0xff]
    %v1910 = vld [vmem:[%s4 + $0x1d8] sm:$0xff]
    %v1911 = vld [vmem:[%s4 + $0x1e0] sm:$0xff]
    %v1912 = vld [vmem:[%s4 + $0x1e8] sm:$0xff]
    %v1913 = vld [vmem:[%s4 + $0x1f0] sm:$0xff]
    %v1914 = vld [vmem:[%s4 + $0x1f8] sm:$0xff]
    %v1915 = vld [vmem:[%s4 + $0x200] sm:$0xff]
    %v1916 = vld [vmem:[%s4 + $0x208] sm:$0xff]
    %v1917 = vld [vmem:[%s4 + $0x210] sm:$0xff]
    %v1918 = vld [vmem:[%s4 + $0x218] sm:$0xff]
    %v1919 = vld [vmem:[%s4 + $0x220] sm:$0xff]
    %v1920 = vld [vmem:[%s4 + $0x228] sm:$0xff]
    %v1921 = vld [vmem:[%s4 + $0x230] sm:$0xff]
    %v1922 = vld [vmem:[%s4 + $0x238] sm:$0xff]
    %v1923 = vld [vmem:[%s4 + $0x240] sm:$0xff]
    %v1924 = vld [vmem:[%s4 + $0x248] sm:$0xff]
    %v1925 = vld [vmem:[%s4 + $0x250] sm:$0xff]
    %v1926 = vld [vmem:[%s4 + $0x258] sm:$0xff]
    %v1927 = vld [vmem:[%s4 + $0x260] sm:$0xff]
    %v1928 = vld [vmem:[%s4 + $0x268] sm:$0xff]
    %v1929 = vld [vmem:[%s4 + $0x270] sm:$0xff]
    %v1930 = vld [vmem:[%s4 + $0x278] sm:$0xff]
    %v1931 = vld [vmem:[%s4 + $0x280] sm:$0xff]
    %v1932 = vld [vmem:[%s4 + $0x288] sm:$0xff]
    %v1933 = vld [vmem:[%s4 + $0x290] sm:$0xff]
    %v1934 = vld [vmem:[%s4 + $0x298] sm:$0xff]
    %v1935 = vld [vmem:[%s4 + $0x2a0] sm:$0xff]
    %v1936 = vld [vmem:[%s4 + $0x2a8] sm:$0xff]
    %v1937 = vld [vmem:[%s4 + $0x2b0] sm:$0xff]
    %v1938 = vld [vmem:[%s4 + $0x2b8] sm:$0xff]
    %v1939 = vld [vmem:[%s4 + $0x2c0] sm:$0xff]
    %v1940 = vld [vmem:[%s4 + $0x2c8] sm:$0xff]
    %v1941 = vld [vmem:[%s4 + $0x2d0] sm:$0xff]
    %v1942 = vld [vmem:[%s4 + $0x2d8] sm:$0xff]
    %v1943 = vld [vmem:[%s4 + $0x2e0] sm:$0xff]
    %v1944 = vld [vmem:[%s4 + $0x2e8] sm:$0xff]
    %v1945 = vld [vmem:[%s4 + $0x2f0] sm:$0xff]
    %v1946 = vld [vmem:[%s4 + $0x2f8] sm:$0xff]
    %1948 = vset.pattern.permute.xlu0 0
    %1949 = vperm.xlu0 %1948, %v1851
    %v1950 = vpop.permute.xlu0 %1949
    %1953 = vset.pattern.permute.xlu0 0
    %1954 = vperm.xlu0 %1953, %v1852
    %v1955 = vpop.permute.xlu0 %1954
    %1958 = vset.pattern.permute.xlu0 0
    %1959 = vperm.xlu0 %1958, %v1853
    %v1960 = vpop.permute.xlu0 %1959
    %1963 = vset.pattern.permute.xlu0 0
    %1964 = vperm.xlu0 %1963, %v1854
    %v1965 = vpop.permute.xlu0 %1964
    %1968 = vset.pattern.permute.xlu0 0
    %1969 = vperm.xlu0 %1968, %v1855
    %v1970 = vpop.permute.xlu0 %1969
    %1973 = vset.pattern.permute.xlu0 0
    %1974 = vperm.xlu0 %1973, %v1856
    %v1975 = vpop.permute.xlu0 %1974
    %1978 = vset.pattern.permute.xlu0 0
    %1979 = vperm.xlu0 %1978, %v1857
    %v1980 = vpop.permute.xlu0 %1979
    %1983 = vset.pattern.permute.xlu0 0
    %1984 = vperm.xlu0 %1983, %v1858
    %v1985 = vpop.permute.xlu0 %1984
    %1988 = vset.pattern.permute.xlu0 0
    %1989 = vperm.xlu0 %1988, %v1859
    %v1990 = vpop.permute.xlu0 %1989
    %1993 = vset.pattern.permute.xlu0 0
    %1994 = vperm.xlu0 %1993, %v1860
    %v1995 = vpop.permute.xlu0 %1994
    %1998 = vset.pattern.permute.xlu0 0
    %1999 = vperm.xlu0 %1998, %v1861
    %v2000 = vpop.permute.xlu0 %1999
    %2003 = vset.pattern.permute.xlu0 0
    %2004 = vperm.xlu0 %2003, %v1862
    %v2005 = vpop.permute.xlu0 %2004
    %2008 = vset.pattern.permute.xlu0 0
    %2009 = vperm.xlu0 %2008, %v1863
    %v2010 = vpop.permute.xlu0 %2009
    %2013 = vset.pattern.permute.xlu0 0
    %2014 = vperm.xlu0 %2013, %v1864
    %v2015 = vpop.permute.xlu0 %2014
    %2018 = vset.pattern.permute.xlu0 0
    %2019 = vperm.xlu0 %2018, %v1865
    %v2020 = vpop.permute.xlu0 %2019
    %2023 = vset.pattern.permute.xlu0 0
    %2024 = vperm.xlu0 %2023, %v1866
    %v2025 = vpop.permute.xlu0 %2024
    %2028 = vset.pattern.permute.xlu0 0
    %2029 = vperm.xlu0 %2028, %v1867
    %v2030 = vpop.permute.xlu0 %2029
    %2033 = vset.pattern.permute.xlu0 0
    %2034 = vperm.xlu0 %2033, %v1868
    %v2035 = vpop.permute.xlu0 %2034
    %2038 = vset.pattern.permute.xlu0 0
    %2039 = vperm.xlu0 %2038, %v1869
    %v2040 = vpop.permute.xlu0 %2039
    %2043 = vset.pattern.permute.xlu0 0
    %2044 = vperm.xlu0 %2043, %v1870
    %v2045 = vpop.permute.xlu0 %2044
    %2048 = vset.pattern.permute.xlu0 0
    %2049 = vperm.xlu0 %2048, %v1871
    %v2050 = vpop.permute.xlu0 %2049
    %2053 = vset.pattern.permute.xlu0 0
    %2054 = vperm.xlu0 %2053, %v1872
    %v2055 = vpop.permute.xlu0 %2054
    %2058 = vset.pattern.permute.xlu0 0
    %2059 = vperm.xlu0 %2058, %v1873
    %v2060 = vpop.permute.xlu0 %2059
    %2063 = vset.pattern.permute.xlu0 0
    %2064 = vperm.xlu0 %2063, %v1874
    %v2065 = vpop.permute.xlu0 %2064
    %2068 = vset.pattern.permute.xlu0 0
    %2069 = vperm.xlu0 %2068, %v1875
    %v2070 = vpop.permute.xlu0 %2069
    %2073 = vset.pattern.permute.xlu0 0
    %2074 = vperm.xlu0 %2073, %v1876
    %v2075 = vpop.permute.xlu0 %2074
    %2078 = vset.pattern.permute.xlu0 0
    %2079 = vperm.xlu0 %2078, %v1877
    %v2080 = vpop.permute.xlu0 %2079
    %2083 = vset.pattern.permute.xlu0 0
    %2084 = vperm.xlu0 %2083, %v1878
    %v2085 = vpop.permute.xlu0 %2084
    %2088 = vset.pattern.permute.xlu0 0
    %2089 = vperm.xlu0 %2088, %v1879
    %v2090 = vpop.permute.xlu0 %2089
    %2093 = vset.pattern.permute.xlu0 0
    %2094 = vperm.xlu0 %2093, %v1880
    %v2095 = vpop.permute.xlu0 %2094
    %2098 = vset.pattern.permute.xlu0 0
    %2099 = vperm.xlu0 %2098, %v1881
    %v2100 = vpop.permute.xlu0 %2099
    %2103 = vset.pattern.permute.xlu0 0
    %2104 = vperm.xlu0 %2103, %v1882
    %v2105 = vpop.permute.xlu0 %2104
    %2108 = vset.pattern.permute.xlu0 0
    %2109 = vperm.xlu0 %2108, %v1883
    %v2110 = vpop.permute.xlu0 %2109
    %2113 = vset.pattern.permute.xlu0 0
    %2114 = vperm.xlu0 %2113, %v1884
    %v2115 = vpop.permute.xlu0 %2114
    %2118 = vset.pattern.permute.xlu0 0
    %2119 = vperm.xlu0 %2118, %v1885
    %v2120 = vpop.permute.xlu0 %2119
    %2123 = vset.pattern.permute.xlu0 0
    %2124 = vperm.xlu0 %2123, %v1886
    %v2125 = vpop.permute.xlu0 %2124
    %2128 = vset.pattern.permute.xlu0 0
    %2129 = vperm.xlu0 %2128, %v1887
    %v2130 = vpop.permute.xlu0 %2129
    %2133 = vset.pattern.permute.xlu0 0
    %2134 = vperm.xlu0 %2133, %v1888
    %v2135 = vpop.permute.xlu0 %2134
    %2138 = vset.pattern.permute.xlu0 0
    %2139 = vperm.xlu0 %2138, %v1889
    %v2140 = vpop.permute.xlu0 %2139
    %2143 = vset.pattern.permute.xlu0 0
    %2144 = vperm.xlu0 %2143, %v1890
    %v2145 = vpop.permute.xlu0 %2144
    %2148 = vset.pattern.permute.xlu0 0
    %2149 = vperm.xlu0 %2148, %v1891
    %v2150 = vpop.permute.xlu0 %2149
    %2153 = vset.pattern.permute.xlu0 0
    %2154 = vperm.xlu0 %2153, %v1892
    %v2155 = vpop.permute.xlu0 %2154
    %2158 = vset.pattern.permute.xlu0 0
    %2159 = vperm.xlu0 %2158, %v1893
    %v2160 = vpop.permute.xlu0 %2159
    %2163 = vset.pattern.permute.xlu0 0
    %2164 = vperm.xlu0 %2163, %v1894
    %v2165 = vpop.permute.xlu0 %2164
    %2168 = vset.pattern.permute.xlu0 0
    %2169 = vperm.xlu0 %2168, %v1895
    %v2170 = vpop.permute.xlu0 %2169
    %2173 = vset.pattern.permute.xlu0 0
    %2174 = vperm.xlu0 %2173, %v1896
    %v2175 = vpop.permute.xlu0 %2174
    %2178 = vset.pattern.permute.xlu0 0
    %2179 = vperm.xlu0 %2178, %v1897
    %v2180 = vpop.permute.xlu0 %2179
    %2183 = vset.pattern.permute.xlu0 0
    %2184 = vperm.xlu0 %2183, %v1898
    %v2185 = vpop.permute.xlu0 %2184
    %2188 = vset.pattern.permute.xlu0 0
    %2189 = vperm.xlu0 %2188, %v1899
    %v2190 = vpop.permute.xlu0 %2189
    %2193 = vset.pattern.permute.xlu0 0
    %2194 = vperm.xlu0 %2193, %v1900
    %v2195 = vpop.permute.xlu0 %2194
    %2198 = vset.pattern.permute.xlu0 0
    %2199 = vperm.xlu0 %2198, %v1901
    %v2200 = vpop.permute.xlu0 %2199
    %2203 = vset.pattern.permute.xlu0 0
    %2204 = vperm.xlu0 %2203, %v1902
    %v2205 = vpop.permute.xlu0 %2204
    %2208 = vset.pattern.permute.xlu0 0
    %2209 = vperm.xlu0 %2208, %v1903
    %v2210 = vpop.permute.xlu0 %2209
    %2213 = vset.pattern.permute.xlu0 0
    %2214 = vperm.xlu0 %2213, %v1904
    %v2215 = vpop.permute.xlu0 %2214
    %2218 = vset.pattern.permute.xlu0 0
    %2219 = vperm.xlu0 %2218, %v1905
    %v2220 = vpop.permute.xlu0 %2219
    %2223 = vset.pattern.permute.xlu0 0
    %2224 = vperm.xlu0 %2223, %v1906
    %v2225 = vpop.permute.xlu0 %2224
    %2228 = vset.pattern.permute.xlu0 0
    %2229 = vperm.xlu0 %2228, %v1907
    %v2230 = vpop.permute.xlu0 %2229
    %2233 = vset.pattern.permute.xlu0 0
    %2234 = vperm.xlu0 %2233, %v1908
    %v2235 = vpop.permute.xlu0 %2234
    %2238 = vset.pattern.permute.xlu0 0
    %2239 = vperm.xlu0 %2238, %v1909
    %v2240 = vpop.permute.xlu0 %2239
    %2243 = vset.pattern.permute.xlu0 0
    %2244 = vperm.xlu0 %2243, %v1910
    %v2245 = vpop.permute.xlu0 %2244
    %2248 = vset.pattern.permute.xlu0 0
    %2249 = vperm.xlu0 %2248, %v1911
    %v2250 = vpop.permute.xlu0 %2249
    %2253 = vset.pattern.permute.xlu0 0
    %2254 = vperm.xlu0 %2253, %v1912
    %v2255 = vpop.permute.xlu0 %2254
    %2258 = vset.pattern.permute.xlu0 0
    %2259 = vperm.xlu0 %2258, %v1913
    %v2260 = vpop.permute.xlu0 %2259
    %2263 = vset.pattern.permute.xlu0 0
    %2264 = vperm.xlu0 %2263, %v1914
    %v2265 = vpop.permute.xlu0 %2264
    %2268 = vset.pattern.permute.xlu0 0
    %2269 = vperm.xlu0 %2268, %v1915
    %v2270 = vpop.permute.xlu0 %2269
    %2273 = vset.pattern.permute.xlu0 0
    %2274 = vperm.xlu0 %2273, %v1916
    %v2275 = vpop.permute.xlu0 %2274
    %2278 = vset.pattern.permute.xlu0 0
    %2279 = vperm.xlu0 %2278, %v1917
    %v2280 = vpop.permute.xlu0 %2279
    %2283 = vset.pattern.permute.xlu0 0
    %2284 = vperm.xlu0 %2283, %v1918
    %v2285 = vpop.permute.xlu0 %2284
    %2288 = vset.pattern.permute.xlu0 0
    %2289 = vperm.xlu0 %2288, %v1919
    %v2290 = vpop.permute.xlu0 %2289
    %2293 = vset.pattern.permute.xlu0 0
    %2294 = vperm.xlu0 %2293, %v1920
    %v2295 = vpop.permute.xlu0 %2294
    %2298 = vset.pattern.permute.xlu0 0
    %2299 = vperm.xlu0 %2298, %v1921
    %v2300 = vpop.permute.xlu0 %2299
    %2303 = vset.pattern.permute.xlu0 0
    %2304 = vperm.xlu0 %2303, %v1922
    %v2305 = vpop.permute.xlu0 %2304
    %2308 = vset.pattern.permute.xlu0 0
    %2309 = vperm.xlu0 %2308, %v1923
    %v2310 = vpop.permute.xlu0 %2309
    %2313 = vset.pattern.permute.xlu0 0
    %2314 = vperm.xlu0 %2313, %v1924
    %v2315 = vpop.permute.xlu0 %2314
    %2318 = vset.pattern.permute.xlu0 0
    %2319 = vperm.xlu0 %2318, %v1925
    %v2320 = vpop.permute.xlu0 %2319
    %2323 = vset.pattern.permute.xlu0 0
    %2324 = vperm.xlu0 %2323, %v1926
    %v2325 = vpop.permute.xlu0 %2324
    %2328 = vset.pattern.permute.xlu0 0
    %2329 = vperm.xlu0 %2328, %v1927
    %v2330 = vpop.permute.xlu0 %2329
    %2333 = vset.pattern.permute.xlu0 0
    %2334 = vperm.xlu0 %2333, %v1928
    %v2335 = vpop.permute.xlu0 %2334
    %2338 = vset.pattern.permute.xlu0 0
    %2339 = vperm.xlu0 %2338, %v1929
    %v2340 = vpop.permute.xlu0 %2339
    %2343 = vset.pattern.permute.xlu0 0
    %2344 = vperm.xlu0 %2343, %v1930
    %v2345 = vpop.permute.xlu0 %2344
    %2348 = vset.pattern.permute.xlu0 0
    %2349 = vperm.xlu0 %2348, %v1931
    %v2350 = vpop.permute.xlu0 %2349
    %2353 = vset.pattern.permute.xlu0 0
    %2354 = vperm.xlu0 %2353, %v1932
    %v2355 = vpop.permute.xlu0 %2354
    %2358 = vset.pattern.permute.xlu0 0
    %2359 = vperm.xlu0 %2358, %v1933
    %v2360 = vpop.permute.xlu0 %2359
    %2363 = vset.pattern.permute.xlu0 0
    %2364 = vperm.xlu0 %2363, %v1934
    %v2365 = vpop.permute.xlu0 %2364
    %2368 = vset.pattern.permute.xlu0 0
    %2369 = vperm.xlu0 %2368, %v1935
    %v2370 = vpop.permute.xlu0 %2369
    %2373 = vset.pattern.permute.xlu0 0
    %2374 = vperm.xlu0 %2373, %v1936
    %v2375 = vpop.permute.xlu0 %2374
    %2378 = vset.pattern.permute.xlu0 0
    %2379 = vperm.xlu0 %2378, %v1937
    %v2380 = vpop.permute.xlu0 %2379
    %2383 = vset.pattern.permute.xlu0 0
    %2384 = vperm.xlu0 %2383, %v1938
    %v2385 = vpop.permute.xlu0 %2384
    %2388 = vset.pattern.permute.xlu0 0
    %2389 = vperm.xlu0 %2388, %v1939
    %v2390 = vpop.permute.xlu0 %2389
    %2393 = vset.pattern.permute.xlu0 0
    %2394 = vperm.xlu0 %2393, %v1940
    %v2395 = vpop.permute.xlu0 %2394
    %2398 = vset.pattern.permute.xlu0 0
    %2399 = vperm.xlu0 %2398, %v1941
    %v2400 = vpop.permute.xlu0 %2399
    %2403 = vset.pattern.permute.xlu0 0
    %2404 = vperm.xlu0 %2403, %v1942
    %v2405 = vpop.permute.xlu0 %2404
    %2408 = vset.pattern.permute.xlu0 0
    %2409 = vperm.xlu0 %2408, %v1943
    %v2410 = vpop.permute.xlu0 %2409
    %2413 = vset.pattern.permute.xlu0 0
    %2414 = vperm.xlu0 %2413, %v1944
    %v2415 = vpop.permute.xlu0 %2414
    %2418 = vset.pattern.permute.xlu0 0
    %2419 = vperm.xlu0 %2418, %v1945
    %v2420 = vpop.permute.xlu0 %2419
    %2423 = vset.pattern.permute.xlu0 0
    %2424 = vperm.xlu0 %2423, %v1946
    %v2425 = vpop.permute.xlu0 %2424
    %v2427 = vadd.f32 %v1469, %v1950
    %v2428 = vadd.f32 %v1472, %v1955
    %v2429 = vadd.f32 %v1477, %v1960
    %v2430 = vadd.f32 %v1480, %v1965
    %v2431 = vadd.f32 %v1485, %v1970
    %v2432 = vadd.f32 %v1488, %v1975
    %v2433 = vadd.f32 %v1493, %v1980
    %v2434 = vadd.f32 %v1496, %v1985
    %v2435 = vadd.f32 %v1501, %v1990
    %v2436 = vadd.f32 %v1504, %v1995
    %v2437 = vadd.f32 %v1509, %v2000
    %v2438 = vadd.f32 %v1512, %v2005
    %v2439 = vadd.f32 %v1517, %v2010
    %v2440 = vadd.f32 %v1520, %v2015
    %v2441 = vadd.f32 %v1525, %v2020
    %v2442 = vadd.f32 %v1528, %v2025
    %v2443 = vadd.f32 %v1533, %v2030
    %v2444 = vadd.f32 %v1536, %v2035
    %v2445 = vadd.f32 %v1541, %v2040
    %v2446 = vadd.f32 %v1544, %v2045
    %v2447 = vadd.f32 %v1549, %v2050
    %v2448 = vadd.f32 %v1552, %v2055
    %v2449 = vadd.f32 %v1557, %v2060
    %v2450 = vadd.f32 %v1560, %v2065
    %v2451 = vadd.f32 %v1565, %v2070
    %v2452 = vadd.f32 %v1568, %v2075
    %v2453 = vadd.f32 %v1573, %v2080
    %v2454 = vadd.f32 %v1576, %v2085
    %v2455 = vadd.f32 %v1581, %v2090
    %v2456 = vadd.f32 %v1584, %v2095
    %v2457 = vadd.f32 %v1589, %v2100
    %v2458 = vadd.f32 %v1592, %v2105
    %v2459 = vadd.f32 %v1597, %v2110
    %v2460 = vadd.f32 %v1600, %v2115
    %v2461 = vadd.f32 %v1605, %v2120
    %v2462 = vadd.f32 %v1608, %v2125
    %v2463 = vadd.f32 %v1613, %v2130
    %v2464 = vadd.f32 %v1616, %v2135
    %v2465 = vadd.f32 %v1621, %v2140
    %v2466 = vadd.f32 %v1624, %v2145
    %v2467 = vadd.f32 %v1629, %v2150
    %v2468 = vadd.f32 %v1632, %v2155
    %v2469 = vadd.f32 %v1637, %v2160
    %v2470 = vadd.f32 %v1640, %v2165
    %v2471 = vadd.f32 %v1645, %v2170
    %v2472 = vadd.f32 %v1648, %v2175
    %v2473 = vadd.f32 %v1653, %v2180
    %v2474 = vadd.f32 %v1656, %v2185
    %v2475 = vadd.f32 %v1661, %v2190
    %v2476 = vadd.f32 %v1664, %v2195
    %v2477 = vadd.f32 %v1669, %v2200
    %v2478 = vadd.f32 %v1672, %v2205
    %v2479 = vadd.f32 %v1677, %v2210
    %v2480 = vadd.f32 %v1680, %v2215
    %v2481 = vadd.f32 %v1685, %v2220
    %v2482 = vadd.f32 %v1688, %v2225
    %v2483 = vadd.f32 %v1693, %v2230
    %v2484 = vadd.f32 %v1696, %v2235
    %v2485 = vadd.f32 %v1701, %v2240
    %v2486 = vadd.f32 %v1704, %v2245
    %v2487 = vadd.f32 %v1709, %v2250
    %v2488 = vadd.f32 %v1712, %v2255
    %v2489 = vadd.f32 %v1717, %v2260
    %v2490 = vadd.f32 %v1720, %v2265
    %v2491 = vadd.f32 %v1725, %v2270
    %v2492 = vadd.f32 %v1728, %v2275
    %v2493 = vadd.f32 %v1733, %v2280
    %v2494 = vadd.f32 %v1736, %v2285
    %v2495 = vadd.f32 %v1741, %v2290
    %v2496 = vadd.f32 %v1744, %v2295
    %v2497 = vadd.f32 %v1749, %v2300
    %v2498 = vadd.f32 %v1752, %v2305
    %v2499 = vadd.f32 %v1757, %v2310
    %v2500 = vadd.f32 %v1760, %v2315
    %v2501 = vadd.f32 %v1765, %v2320
    %v2502 = vadd.f32 %v1768, %v2325
    %v2503 = vadd.f32 %v1773, %v2330
    %v2504 = vadd.f32 %v1776, %v2335
    %v2505 = vadd.f32 %v1781, %v2340
    %v2506 = vadd.f32 %v1784, %v2345
    %v2507 = vadd.f32 %v1789, %v2350
    %v2508 = vadd.f32 %v1792, %v2355
    %v2509 = vadd.f32 %v1797, %v2360
    %v2510 = vadd.f32 %v1800, %v2365
    %v2511 = vadd.f32 %v1805, %v2370
    %v2512 = vadd.f32 %v1808, %v2375
    %v2513 = vadd.f32 %v1813, %v2380
    %v2514 = vadd.f32 %v1816, %v2385
    %v2515 = vadd.f32 %v1821, %v2390
    %v2516 = vadd.f32 %v1824, %v2395
    %v2517 = vadd.f32 %v1829, %v2400
    %v2518 = vadd.f32 %v1832, %v2405
    %v2519 = vadd.f32 %v1837, %v2410
    %v2520 = vadd.f32 %v1840, %v2415
    %v2521 = vadd.f32 %v1845, %v2420
    %v2522 = vadd.f32 %v1848, %v2425
    %v2523 = vmax.f32 %v2427, 0.0
    %v2524 = vmax.f32 %v2428, 0.0
    %v2525 = vmax.f32 %v2429, 0.0
    %v2526 = vmax.f32 %v2430, 0.0
    %v2527 = vmax.f32 %v2431, 0.0
    %v2528 = vmax.f32 %v2432, 0.0
    %v2529 = vmax.f32 %v2433, 0.0
    %v2530 = vmax.f32 %v2434, 0.0
    %v2531 = vmax.f32 %v2435, 0.0
    %v2532 = vmax.f32 %v2436, 0.0
    %v2533 = vmax.f32 %v2437, 0.0
    %v2534 = vmax.f32 %v2438, 0.0
    %v2535 = vmax.f32 %v2439, 0.0
    %v2536 = vmax.f32 %v2440, 0.0
    %v2537 = vmax.f32 %v2441, 0.0
    %v2538 = vmax.f32 %v2442, 0.0
    %v2539 = vmax.f32 %v2443, 0.0
    %v2540 = vmax.f32 %v2444, 0.0
    %v2541 = vmax.f32 %v2445, 0.0
    %v2542 = vmax.f32 %v2446, 0.0
    %v2543 = vmax.f32 %v2447, 0.0
    %v2544 = vmax.f32 %v2448, 0.0
    %v2545 = vmax.f32 %v2449, 0.0
    %v2546 = vmax.f32 %v2450, 0.0
    %v2547 = vmax.f32 %v2451, 0.0
    %v2548 = vmax.f32 %v2452, 0.0
    %v2549 = vmax.f32 %v2453, 0.0
    %v2550 = vmax.f32 %v2454, 0.0
    %v2551 = vmax.f32 %v2455, 0.0
    %v2552 = vmax.f32 %v2456, 0.0
    %v2553 = vmax.f32 %v2457, 0.0
    %v2554 = vmax.f32 %v2458, 0.0
    %v2555 = vmax.f32 %v2459, 0.0
    %v2556 = vmax.f32 %v2460, 0.0
    %v2557 = vmax.f32 %v2461, 0.0
    %v2558 = vmax.f32 %v2462, 0.0
    %v2559 = vmax.f32 %v2463, 0.0
    %v2560 = vmax.f32 %v2464, 0.0
    %v2561 = vmax.f32 %v2465, 0.0
    %v2562 = vmax.f32 %v2466, 0.0
    %v2563 = vmax.f32 %v2467, 0.0
    %v2564 = vmax.f32 %v2468, 0.0
    %v2565 = vmax.f32 %v2469, 0.0
    %v2566 = vmax.f32 %v2470, 0.0
    %v2567 = vmax.f32 %v2471, 0.0
    %v2568 = vmax.f32 %v2472, 0.0
    %v2569 = vmax.f32 %v2473, 0.0
    %v2570 = vmax.f32 %v2474, 0.0
    %v2571 = vmax.f32 %v2475, 0.0
    %v2572 = vmax.f32 %v2476, 0.0
    %v2573 = vmax.f32 %v2477, 0.0
    %v2574 = vmax.f32 %v2478, 0.0
    %v2575 = vmax.f32 %v2479, 0.0
    %v2576 = vmax.f32 %v2480, 0.0
    %v2577 = vmax.f32 %v2481, 0.0
    %v2578 = vmax.f32 %v2482, 0.0
    %v2579 = vmax.f32 %v2483, 0.0
    %v2580 = vmax.f32 %v2484, 0.0
    %v2581 = vmax.f32 %v2485, 0.0
    %v2582 = vmax.f32 %v2486, 0.0
    %v2583 = vmax.f32 %v2487, 0.0
    %v2584 = vmax.f32 %v2488, 0.0
    %v2585 = vmax.f32 %v2489, 0.0
    %v2586 = vmax.f32 %v2490, 0.0
    %v2587 = vmax.f32 %v2491, 0.0
    %v2588 = vmax.f32 %v2492, 0.0
    %v2589 = vmax.f32 %v2493, 0.0
    %v2590 = vmax.f32 %v2494, 0.0
    %v2591 = vmax.f32 %v2495, 0.0
    %v2592 = vmax.f32 %v2496, 0.0
    %v2593 = vmax.f32 %v2497, 0.0
    %v2594 = vmax.f32 %v2498, 0.0
    %v2595 = vmax.f32 %v2499, 0.0
    %v2596 = vmax.f32 %v2500, 0.0
    %v2597 = vmax.f32 %v2501, 0.0
    %v2598 = vmax.f32 %v2502, 0.0
    %v2599 = vmax.f32 %v2503, 0.0
    %v2600 = vmax.f32 %v2504, 0.0
    %v2601 = vmax.f32 %v2505, 0.0
    %v2602 = vmax.f32 %v2506, 0.0
    %v2603 = vmax.f32 %v2507, 0.0
    %v2604 = vmax.f32 %v2508, 0.0
    %v2605 = vmax.f32 %v2509, 0.0
    %v2606 = vmax.f32 %v2510, 0.0
    %v2607 = vmax.f32 %v2511, 0.0
    %v2608 = vmax.f32 %v2512, 0.0
    %v2609 = vmax.f32 %v2513, 0.0
    %v2610 = vmax.f32 %v2514, 0.0
    %v2611 = vmax.f32 %v2515, 0.0
    %v2612 = vmax.f32 %v2516, 0.0
    %v2613 = vmax.f32 %v2517, 0.0
    %v2614 = vmax.f32 %v2518, 0.0
    %v2615 = vmax.f32 %v2519, 0.0
    %v2616 = vmax.f32 %v2520, 0.0
    %v2617 = vmax.f32 %v2521, 0.0
    %v2618 = vmax.f32 %v2522, 0.0
    %v2619 = vld [vmem:[%s5] sm:$0xff]
    %v2620 = vld [vmem:[%s5 + $0x8] sm:$0xff]
    %v2621 = vld [vmem:[%s5 + $0x10] sm:$0xff]
    %v2622 = vld [vmem:[%s5 + $0x18] sm:$0xff]
    %v2623 = vld [vmem:[%s5 + $0x20] sm:$0xff]
    %v2624 = vld [vmem:[%s5 + $0x28] sm:$0xff]
    %v2625 = vld [vmem:[%s5 + $0x30] sm:$0xff]
    %v2626 = vld [vmem:[%s5 + $0x38] sm:$0xff]
    %v2627 = vld [vmem:[%s5 + $0x40] sm:$0xff]
    %v2628 = vld [vmem:[%s5 + $0x48] sm:$0xff]
    %v2629 = vld [vmem:[%s5 + $0x50] sm:$0xff]
    %v2630 = vld [vmem:[%s5 + $0x58] sm:$0xff]
    %v2631 = vld [vmem:[%s5 + $0x60] sm:$0xff]
    %v2632 = vld [vmem:[%s5 + $0x68] sm:$0xff]
    %v2633 = vld [vmem:[%s5 + $0x70] sm:$0xff]
    %v2634 = vld [vmem:[%s5 + $0x78] sm:$0xff]
    %v2635 = vld [vmem:[%s5 + $0x80] sm:$0xff]
    %v2636 = vld [vmem:[%s5 + $0x88] sm:$0xff]
    %v2637 = vld [vmem:[%s5 + $0x90] sm:$0xff]
    %v2638 = vld [vmem:[%s5 + $0x98] sm:$0xff]
    %v2639 = vld [vmem:[%s5 + $0xa0] sm:$0xff]
    %v2640 = vld [vmem:[%s5 + $0xa8] sm:$0xff]
    %v2641 = vld [vmem:[%s5 + $0xb0] sm:$0xff]
    %v2642 = vld [vmem:[%s5 + $0xb8] sm:$0xff]
    %v2643 = vld [vmem:[%s5 + $0xc0] sm:$0xff]
    %v2644 = vld [vmem:[%s5 + $0xc8] sm:$0xff]
    %v2645 = vld [vmem:[%s5 + $0xd0] sm:$0xff]
    %v2646 = vld [vmem:[%s5 + $0xd8] sm:$0xff]
    %v2647 = vld [vmem:[%s5 + $0xe0] sm:$0xff]
    %v2648 = vld [vmem:[%s5 + $0xe8] sm:$0xff]
    %v2649 = vld [vmem:[%s5 + $0xf0] sm:$0xff]
    %v2650 = vld [vmem:[%s5 + $0xf8] sm:$0xff]
    %v2651 = vld [vmem:[%s5 + $0x100] sm:$0xff]
    %v2652 = vld [vmem:[%s5 + $0x108] sm:$0xff]
    %v2653 = vld [vmem:[%s5 + $0x110] sm:$0xff]
    %v2654 = vld [vmem:[%s5 + $0x118] sm:$0xff]
    %v2655 = vld [vmem:[%s5 + $0x120] sm:$0xff]
    %v2656 = vld [vmem:[%s5 + $0x128] sm:$0xff]
    %v2657 = vld [vmem:[%s5 + $0x130] sm:$0xff]
    %v2658 = vld [vmem:[%s5 + $0x138] sm:$0xff]
    %v2659 = vld [vmem:[%s5 + $0x140] sm:$0xff]
    %v2660 = vld [vmem:[%s5 + $0x148] sm:$0xff]
    %v2661 = vld [vmem:[%s5 + $0x150] sm:$0xff]
    %v2662 = vld [vmem:[%s5 + $0x158] sm:$0xff]
    %v2663 = vld [vmem:[%s5 + $0x160] sm:$0xff]
    %v2664 = vld [vmem:[%s5 + $0x168] sm:$0xff]
    %v2665 = vld [vmem:[%s5 + $0x170] sm:$0xff]
    %v2666 = vld [vmem:[%s5 + $0x178] sm:$0xff]
    %v2667 = vld [vmem:[%s5 + $0x180] sm:$0xff]
    %v2668 = vld [vmem:[%s5 + $0x188] sm:$0xff]
    %v2669 = vld [vmem:[%s5 + $0x190] sm:$0xff]
    %v2670 = vld [vmem:[%s5 + $0x198] sm:$0xff]
    %v2671 = vld [vmem:[%s5 + $0x1a0] sm:$0xff]
    %v2672 = vld [vmem:[%s5 + $0x1a8] sm:$0xff]
    %v2673 = vld [vmem:[%s5 + $0x1b0] sm:$0xff]
    %v2674 = vld [vmem:[%s5 + $0x1b8] sm:$0xff]
    %v2675 = vld [vmem:[%s5 + $0x1c0] sm:$0xff]
    %v2676 = vld [vmem:[%s5 + $0x1c8] sm:$0xff]
    %v2677 = vld [vmem:[%s5 + $0x1d0] sm:$0xff]
    %v2678 = vld [vmem:[%s5 + $0x1d8] sm:$0xff]
    %v2679 = vld [vmem:[%s5 + $0x1e0] sm:$0xff]
    %v2680 = vld [vmem:[%s5 + $0x1e8] sm:$0xff]
    %v2681 = vld [vmem:[%s5 + $0x1f0] sm:$0xff]
    %v2682 = vld [vmem:[%s5 + $0x1f8] sm:$0xff]
    %v2683 = vld [vmem:[%s5 + $0x200] sm:$0xff]
    %v2684 = vld [vmem:[%s5 + $0x208] sm:$0xff]
    %v2685 = vld [vmem:[%s5 + $0x210] sm:$0xff]
    %v2686 = vld [vmem:[%s5 + $0x218] sm:$0xff]
    %v2687 = vld [vmem:[%s5 + $0x220] sm:$0xff]
    %v2688 = vld [vmem:[%s5 + $0x228] sm:$0xff]
    %v2689 = vld [vmem:[%s5 + $0x230] sm:$0xff]
    %v2690 = vld [vmem:[%s5 + $0x238] sm:$0xff]
    %v2691 = vld [vmem:[%s5 + $0x240] sm:$0xff]
    %v2692 = vld [vmem:[%s5 + $0x248] sm:$0xff]
    %v2693 = vld [vmem:[%s5 + $0x250] sm:$0xff]
    %v2694 = vld [vmem:[%s5 + $0x258] sm:$0xff]
    %v2695 = vld [vmem:[%s5 + $0x260] sm:$0xff]
    %v2696 = vld [vmem:[%s5 + $0x268] sm:$0xff]
    %v2697 = vld [vmem:[%s5 + $0x270] sm:$0xff]
    %v2698 = vld [vmem:[%s5 + $0x278] sm:$0xff]
    %v2699 = vld [vmem:[%s5 + $0x280] sm:$0xff]
    %v2700 = vld [vmem:[%s5 + $0x288] sm:$0xff]
    %v2701 = vld [vmem:[%s5 + $0x290] sm:$0xff]
    %v2702 = vld [vmem:[%s5 + $0x298] sm:$0xff]
    %v2703 = vld [vmem:[%s5 + $0x2a0] sm:$0xff]
    %v2704 = vld [vmem:[%s5 + $0x2a8] sm:$0xff]
    %v2705 = vld [vmem:[%s5 + $0x2b0] sm:$0xff]
    %v2706 = vld [vmem:[%s5 + $0x2b8] sm:$0xff]
    %v2707 = vld [vmem:[%s5 + $0x2c0] sm:$0xff]
    %v2708 = vld [vmem:[%s5 + $0x2c8] sm:$0xff]
    %v2709 = vld [vmem:[%s5 + $0x2d0] sm:$0xff]
    %v2710 = vld [vmem:[%s5 + $0x2d8] sm:$0xff]
    %v2711 = vld [vmem:[%s5 + $0x2e0] sm:$0xff]
    %v2712 = vld [vmem:[%s5 + $0x2e8] sm:$0xff]
    %v2713 = vld [vmem:[%s5 + $0x2f0] sm:$0xff]
    %v2714 = vld [vmem:[%s5 + $0x2f8] sm:$0xff]
    %v2715 = vld [vmem:[%s5 + $0x300] sm:$0xff]
    %v2716 = vld [vmem:[%s5 + $0x308] sm:$0xff]
    %v2717 = vld [vmem:[%s5 + $0x310] sm:$0xff]
    %v2718 = vld [vmem:[%s5 + $0x318] sm:$0xff]
    %v2719 = vld [vmem:[%s5 + $0x320] sm:$0xff]
    %v2720 = vld [vmem:[%s5 + $0x328] sm:$0xff]
    %v2721 = vld [vmem:[%s5 + $0x330] sm:$0xff]
    %v2722 = vld [vmem:[%s5 + $0x338] sm:$0xff]
    %v2723 = vld [vmem:[%s5 + $0x340] sm:$0xff]
    %v2724 = vld [vmem:[%s5 + $0x348] sm:$0xff]
    %v2725 = vld [vmem:[%s5 + $0x350] sm:$0xff]
    %v2726 = vld [vmem:[%s5 + $0x358] sm:$0xff]
    %v2727 = vld [vmem:[%s5 + $0x360] sm:$0xff]
    %v2728 = vld [vmem:[%s5 + $0x368] sm:$0xff]
    %v2729 = vld [vmem:[%s5 + $0x370] sm:$0xff]
    %v2730 = vld [vmem:[%s5 + $0x378] sm:$0xff]
    %v2731 = vld [vmem:[%s5 + $0x380] sm:$0xff]
    %v2732 = vld [vmem:[%s5 + $0x388] sm:$0xff]
    %v2733 = vld [vmem:[%s5 + $0x390] sm:$0xff]
    %v2734 = vld [vmem:[%s5 + $0x398] sm:$0xff]
    %v2735 = vld [vmem:[%s5 + $0x3a0] sm:$0xff]
    %v2736 = vld [vmem:[%s5 + $0x3a8] sm:$0xff]
    %v2737 = vld [vmem:[%s5 + $0x3b0] sm:$0xff]
    %v2738 = vld [vmem:[%s5 + $0x3b8] sm:$0xff]
    %v2739 = vld [vmem:[%s5 + $0x3c0] sm:$0xff]
    %v2740 = vld [vmem:[%s5 + $0x3c8] sm:$0xff]
    %v2741 = vld [vmem:[%s5 + $0x3d0] sm:$0xff]
    %v2742 = vld [vmem:[%s5 + $0x3d8] sm:$0xff]
    %v2743 = vld [vmem:[%s5 + $0x3e0] sm:$0xff]
    %v2744 = vld [vmem:[%s5 + $0x3e8] sm:$0xff]
    %v2745 = vld [vmem:[%s5 + $0x3f0] sm:$0xff]
    %v2746 = vld [vmem:[%s5 + $0x3f8] sm:$0xff]
    %v2747 = vld [vmem:[%s5 + $0x400] sm:$0xff]
    %v2748 = vld [vmem:[%s5 + $0x408] sm:$0xff]
    %v2749 = vld [vmem:[%s5 + $0x410] sm:$0xff]
    %v2750 = vld [vmem:[%s5 + $0x418] sm:$0xff]
    %v2751 = vld [vmem:[%s5 + $0x420] sm:$0xff]
    %v2752 = vld [vmem:[%s5 + $0x428] sm:$0xff]
    %v2753 = vld [vmem:[%s5 + $0x430] sm:$0xff]
    %v2754 = vld [vmem:[%s5 + $0x438] sm:$0xff]
    %v2755 = vld [vmem:[%s5 + $0x440] sm:$0xff]
    %v2756 = vld [vmem:[%s5 + $0x448] sm:$0xff]
    %v2757 = vld [vmem:[%s5 + $0x450] sm:$0xff]
    %v2758 = vld [vmem:[%s5 + $0x458] sm:$0xff]
    %v2759 = vld [vmem:[%s5 + $0x460] sm:$0xff]
    %v2760 = vld [vmem:[%s5 + $0x468] sm:$0xff]
    %v2761 = vld [vmem:[%s5 + $0x470] sm:$0xff]
    %v2762 = vld [vmem:[%s5 + $0x478] sm:$0xff]
    %v2763 = vld [vmem:[%s5 + $0x480] sm:$0xff]
    %v2764 = vld [vmem:[%s5 + $0x488] sm:$0xff]
    %v2765 = vld [vmem:[%s5 + $0x490] sm:$0xff]
    %v2766 = vld [vmem:[%s5 + $0x498] sm:$0xff]
    %v2767 = vld [vmem:[%s5 + $0x4a0] sm:$0xff]
    %v2768 = vld [vmem:[%s5 + $0x4a8] sm:$0xff]
    %v2769 = vld [vmem:[%s5 + $0x4b0] sm:$0xff]
    %v2770 = vld [vmem:[%s5 + $0x4b8] sm:$0xff]
    %v2771 = vld [vmem:[%s5 + $0x4c0] sm:$0xff]
    %v2772 = vld [vmem:[%s5 + $0x4c8] sm:$0xff]
    %v2773 = vld [vmem:[%s5 + $0x4d0] sm:$0xff]
    %v2774 = vld [vmem:[%s5 + $0x4d8] sm:$0xff]
    %v2775 = vld [vmem:[%s5 + $0x4e0] sm:$0xff]
    %v2776 = vld [vmem:[%s5 + $0x4e8] sm:$0xff]
    %v2777 = vld [vmem:[%s5 + $0x4f0] sm:$0xff]
    %v2778 = vld [vmem:[%s5 + $0x4f8] sm:$0xff]
    %v2779 = vld [vmem:[%s5 + $0x500] sm:$0xff]
    %v2780 = vld [vmem:[%s5 + $0x508] sm:$0xff]
    %v2781 = vld [vmem:[%s5 + $0x510] sm:$0xff]
    %v2782 = vld [vmem:[%s5 + $0x518] sm:$0xff]
    %v2783 = vld [vmem:[%s5 + $0x520] sm:$0xff]
    %v2784 = vld [vmem:[%s5 + $0x528] sm:$0xff]
    %v2785 = vld [vmem:[%s5 + $0x530] sm:$0xff]
    %v2786 = vld [vmem:[%s5 + $0x538] sm:$0xff]
    %v2787 = vld [vmem:[%s5 + $0x540] sm:$0xff]
    %v2788 = vld [vmem:[%s5 + $0x548] sm:$0xff]
    %v2789 = vld [vmem:[%s5 + $0x550] sm:$0xff]
    %v2790 = vld [vmem:[%s5 + $0x558] sm:$0xff]
    %v2791 = vld [vmem:[%s5 + $0x560] sm:$0xff]
    %v2792 = vld [vmem:[%s5 + $0x568] sm:$0xff]
    %v2793 = vld [vmem:[%s5 + $0x570] sm:$0xff]
    %v2794 = vld [vmem:[%s5 + $0x578] sm:$0xff]
    %v2795 = vld [vmem:[%s5 + $0x580] sm:$0xff]
    %v2796 = vld [vmem:[%s5 + $0x588] sm:$0xff]
    %v2797 = vld [vmem:[%s5 + $0x590] sm:$0xff]
    %v2798 = vld [vmem:[%s5 + $0x598] sm:$0xff]
    %v2799 = vld [vmem:[%s5 + $0x5a0] sm:$0xff]
    %v2800 = vld [vmem:[%s5 + $0x5a8] sm:$0xff]
    %v2801 = vld [vmem:[%s5 + $0x5b0] sm:$0xff]
    %v2802 = vld [vmem:[%s5 + $0x5b8] sm:$0xff]
    %v2803 = vld [vmem:[%s5 + $0x5c0] sm:$0xff]
    %v2804 = vld [vmem:[%s5 + $0x5c8] sm:$0xff]
    %v2805 = vld [vmem:[%s5 + $0x5d0] sm:$0xff]
    %v2806 = vld [vmem:[%s5 + $0x5d8] sm:$0xff]
    %v2807 = vld [vmem:[%s5 + $0x5e0] sm:$0xff]
    %v2808 = vld [vmem:[%s5 + $0x5e8] sm:$0xff]
    %v2809 = vld [vmem:[%s5 + $0x5f0] sm:$0xff]
    %v2810 = vld [vmem:[%s5 + $0x5f8] sm:$0xff]
    %v2811 = vpack.c.bf16 %v2524, %v2523
    %v2812 = vpack.c.bf16 %v2526, %v2525
    %v2813 = vpack.c.bf16 %v2528, %v2527
    %v2814 = vpack.c.bf16 %v2530, %v2529
    %v2815 = vpack.c.bf16 %v2532, %v2531
    %v2816 = vpack.c.bf16 %v2534, %v2533
    %v2817 = vpack.c.bf16 %v2536, %v2535
    %v2818 = vpack.c.bf16 %v2538, %v2537
    %v2819 = vpack.c.bf16 %v2540, %v2539
    %v2820 = vpack.c.bf16 %v2542, %v2541
    %v2821 = vpack.c.bf16 %v2544, %v2543
    %v2822 = vpack.c.bf16 %v2546, %v2545
    %v2823 = vpack.c.bf16 %v2548, %v2547
    %v2824 = vpack.c.bf16 %v2550, %v2549
    %v2825 = vpack.c.bf16 %v2552, %v2551
    %v2826 = vpack.c.bf16 %v2554, %v2553
    %v2827 = vpack.c.bf16 %v2556, %v2555
    %v2828 = vpack.c.bf16 %v2558, %v2557
    %v2829 = vpack.c.bf16 %v2560, %v2559
    %v2830 = vpack.c.bf16 %v2562, %v2561
    %v2831 = vpack.c.bf16 %v2564, %v2563
    %v2832 = vpack.c.bf16 %v2566, %v2565
    %v2833 = vpack.c.bf16 %v2568, %v2567
    %v2834 = vpack.c.bf16 %v2570, %v2569
    %v2835 = vpack.c.bf16 %v2572, %v2571
    %v2836 = vpack.c.bf16 %v2574, %v2573
    %v2837 = vpack.c.bf16 %v2576, %v2575
    %v2838 = vpack.c.bf16 %v2578, %v2577
    %v2839 = vpack.c.bf16 %v2580, %v2579
    %v2840 = vpack.c.bf16 %v2582, %v2581
    %v2841 = vpack.c.bf16 %v2584, %v2583
    %v2842 = vpack.c.bf16 %v2586, %v2585
    %v2843 = vpack.c.bf16 %v2588, %v2587
    %v2844 = vpack.c.bf16 %v2590, %v2589
    %v2845 = vpack.c.bf16 %v2592, %v2591
    %v2846 = vpack.c.bf16 %v2594, %v2593
    %v2847 = vpack.c.bf16 %v2596, %v2595
    %v2848 = vpack.c.bf16 %v2598, %v2597
    %v2849 = vpack.c.bf16 %v2600, %v2599
    %v2850 = vpack.c.bf16 %v2602, %v2601
    %v2851 = vpack.c.bf16 %v2604, %v2603
    %v2852 = vpack.c.bf16 %v2606, %v2605
    %v2853 = vpack.c.bf16 %v2608, %v2607
    %v2854 = vpack.c.bf16 %v2610, %v2609
    %v2855 = vpack.c.bf16 %v2612, %v2611
    %v2856 = vpack.c.bf16 %v2614, %v2613
    %v2857 = vpack.c.bf16 %v2616, %v2615
    %v2858 = vpack.c.bf16 %v2618, %v2617
    %v2859 = vld [vmem:[%s6] sm:$0xff]
    %v2860 = vld [vmem:[%s6 + $0x8] sm:$0xff]
    %v2861 = vld [vmem:[%s6 + $0x10] sm:$0xff]
    %v2862 = vld [vmem:[%s6 + $0x18] sm:$0xff]
    %v2863 = vld [vmem:[%s6 + $0x20] sm:$0xff]
    %v2864 = vld [vmem:[%s6 + $0x28] sm:$0xff]
    %v2865 = vld [vmem:[%s6 + $0x30] sm:$0xff]
    %v2866 = vld [vmem:[%s6 + $0x38] sm:$0xff]
    %v2867 = vld [vmem:[%s6 + $0x40] sm:$0xff]
    %v2868 = vld [vmem:[%s6 + $0x48] sm:$0xff]
    %v2869 = vld [vmem:[%s6 + $0x50] sm:$0xff]
    %v2870 = vld [vmem:[%s6 + $0x58] sm:$0xff]
    %v2871 = vld [vmem:[%s6 + $0x60] sm:$0xff]
    %v2872 = vld [vmem:[%s6 + $0x68] sm:$0xff]
    %v2873 = vld [vmem:[%s6 + $0x70] sm:$0xff]
    %v2874 = vld [vmem:[%s6 + $0x78] sm:$0xff]
    %v2875 = vld [vmem:[%s6 + $0x80] sm:$0xff]
    %v2876 = vld [vmem:[%s6 + $0x88] sm:$0xff]
    %v2877 = vld [vmem:[%s6 + $0x90] sm:$0xff]
    %v2878 = vld [vmem:[%s6 + $0x98] sm:$0xff]
    %v2879 = vld [vmem:[%s6 + $0xa0] sm:$0xff]
    %v2880 = vld [vmem:[%s6 + $0xa8] sm:$0xff]
    %v2881 = vld [vmem:[%s6 + $0xb0] sm:$0xff]
    %v2882 = vld [vmem:[%s6 + $0xb8] sm:$0xff]
    %v2883 = vld [vmem:[%s6 + $0xc0] sm:$0xff]
    %v2884 = vld [vmem:[%s6 + $0xc8] sm:$0xff]
    %v2885 = vld [vmem:[%s6 + $0xd0] sm:$0xff]
    %v2886 = vld [vmem:[%s6 + $0xd8] sm:$0xff]
    %v2887 = vld [vmem:[%s6 + $0xe0] sm:$0xff]
    %v2888 = vld [vmem:[%s6 + $0xe8] sm:$0xff]
    %v2889 = vld [vmem:[%s6 + $0xf0] sm:$0xff]
    %v2890 = vld [vmem:[%s6 + $0xf8] sm:$0xff]
    %v2891 = vld [vmem:[%s6 + $0x100] sm:$0xff]
    %v2892 = vld [vmem:[%s6 + $0x108] sm:$0xff]
    %v2893 = vld [vmem:[%s6 + $0x110] sm:$0xff]
    %v2894 = vld [vmem:[%s6 + $0x118] sm:$0xff]
    %v2895 = vld [vmem:[%s6 + $0x120] sm:$0xff]
    %v2896 = vld [vmem:[%s6 + $0x128] sm:$0xff]
    %v2897 = vld [vmem:[%s6 + $0x130] sm:$0xff]
    %v2898 = vld [vmem:[%s6 + $0x138] sm:$0xff]
    %v2899 = vld [vmem:[%s6 + $0x140] sm:$0xff]
    %v2900 = vld [vmem:[%s6 + $0x148] sm:$0xff]
    %v2901 = vld [vmem:[%s6 + $0x150] sm:$0xff]
    %v2902 = vld [vmem:[%s6 + $0x158] sm:$0xff]
    %v2903 = vld [vmem:[%s6 + $0x160] sm:$0xff]
    %v2904 = vld [vmem:[%s6 + $0x168] sm:$0xff]
    %v2905 = vld [vmem:[%s6 + $0x170] sm:$0xff]
    %v2906 = vld [vmem:[%s6 + $0x178] sm:$0xff]
    %v2907 = vld [vmem:[%s6 + $0x180] sm:$0xff]
    %v2908 = vld [vmem:[%s6 + $0x188] sm:$0xff]
    %v2909 = vld [vmem:[%s6 + $0x190] sm:$0xff]
    %v2910 = vld [vmem:[%s6 + $0x198] sm:$0xff]
    %v2911 = vld [vmem:[%s6 + $0x1a0] sm:$0xff]
    %v2912 = vld [vmem:[%s6 + $0x1a8] sm:$0xff]
    %v2913 = vld [vmem:[%s6 + $0x1b0] sm:$0xff]
    %v2914 = vld [vmem:[%s6 + $0x1b8] sm:$0xff]
    %v2915 = vld [vmem:[%s6 + $0x1c0] sm:$0xff]
    %v2916 = vld [vmem:[%s6 + $0x1c8] sm:$0xff]
    %v2917 = vld [vmem:[%s6 + $0x1d0] sm:$0xff]
    %v2918 = vld [vmem:[%s6 + $0x1d8] sm:$0xff]
    %v2919 = vld [vmem:[%s6 + $0x1e0] sm:$0xff]
    %v2920 = vld [vmem:[%s6 + $0x1e8] sm:$0xff]
    %v2921 = vld [vmem:[%s6 + $0x1f0] sm:$0xff]
    %v2922 = vld [vmem:[%s6 + $0x1f8] sm:$0xff]
    %2924 = vset.pattern.permute.xlu0 0
    %2925 = vperm.xlu0 %2924, %v2859
    %v2926 = vpop.permute.xlu0 %2925
    %2929 = vset.pattern.permute.xlu0 0
    %2930 = vperm.xlu0 %2929, %v2860
    %v2931 = vpop.permute.xlu0 %2930
    %2934 = vset.pattern.permute.xlu0 0
    %2935 = vperm.xlu0 %2934, %v2861
    %v2936 = vpop.permute.xlu0 %2935
    %2939 = vset.pattern.permute.xlu0 0
    %2940 = vperm.xlu0 %2939, %v2862
    %v2941 = vpop.permute.xlu0 %2940
    %2944 = vset.pattern.permute.xlu0 0
    %2945 = vperm.xlu0 %2944, %v2863
    %v2946 = vpop.permute.xlu0 %2945
    %2949 = vset.pattern.permute.xlu0 0
    %2950 = vperm.xlu0 %2949, %v2864
    %v2951 = vpop.permute.xlu0 %2950
    %2954 = vset.pattern.permute.xlu0 0
    %2955 = vperm.xlu0 %2954, %v2865
    %v2956 = vpop.permute.xlu0 %2955
    %2959 = vset.pattern.permute.xlu0 0
    %2960 = vperm.xlu0 %2959, %v2866
    %v2961 = vpop.permute.xlu0 %2960
    %2964 = vset.pattern.permute.xlu0 0
    %2965 = vperm.xlu0 %2964, %v2867
    %v2966 = vpop.permute.xlu0 %2965
    %2969 = vset.pattern.permute.xlu0 0
    %2970 = vperm.xlu0 %2969, %v2868
    %v2971 = vpop.permute.xlu0 %2970
    %2974 = vset.pattern.permute.xlu0 0
    %2975 = vperm.xlu0 %2974, %v2869
    %v2976 = vpop.permute.xlu0 %2975
    %2979 = vset.pattern.permute.xlu0 0
    %2980 = vperm.xlu0 %2979, %v2870
    %v2981 = vpop.permute.xlu0 %2980
    %2984 = vset.pattern.permute.xlu0 0
    %2985 = vperm.xlu0 %2984, %v2871
    %v2986 = vpop.permute.xlu0 %2985
    %2989 = vset.pattern.permute.xlu0 0
    %2990 = vperm.xlu0 %2989, %v2872
    %v2991 = vpop.permute.xlu0 %2990
    %2994 = vset.pattern.permute.xlu0 0
    %2995 = vperm.xlu0 %2994, %v2873
    %v2996 = vpop.permute.xlu0 %2995
    %2999 = vset.pattern.permute.xlu0 0
    %3000 = vperm.xlu0 %2999, %v2874
    %v3001 = vpop.permute.xlu0 %3000
    %3004 = vset.pattern.permute.xlu0 0
    %3005 = vperm.xlu0 %3004, %v2875
    %v3006 = vpop.permute.xlu0 %3005
    %3009 = vset.pattern.permute.xlu0 0
    %3010 = vperm.xlu0 %3009, %v2876
    %v3011 = vpop.permute.xlu0 %3010
    %3014 = vset.pattern.permute.xlu0 0
    %3015 = vperm.xlu0 %3014, %v2877
    %v3016 = vpop.permute.xlu0 %3015
    %3019 = vset.pattern.permute.xlu0 0
    %3020 = vperm.xlu0 %3019, %v2878
    %v3021 = vpop.permute.xlu0 %3020
    %3024 = vset.pattern.permute.xlu0 0
    %3025 = vperm.xlu0 %3024, %v2879
    %v3026 = vpop.permute.xlu0 %3025
    %3029 = vset.pattern.permute.xlu0 0
    %3030 = vperm.xlu0 %3029, %v2880
    %v3031 = vpop.permute.xlu0 %3030
    %3034 = vset.pattern.permute.xlu0 0
    %3035 = vperm.xlu0 %3034, %v2881
    %v3036 = vpop.permute.xlu0 %3035
    %3039 = vset.pattern.permute.xlu0 0
    %3040 = vperm.xlu0 %3039, %v2882
    %v3041 = vpop.permute.xlu0 %3040
    %3044 = vset.pattern.permute.xlu0 0
    %3045 = vperm.xlu0 %3044, %v2883
    %v3046 = vpop.permute.xlu0 %3045
    %3049 = vset.pattern.permute.xlu0 0
    %3050 = vperm.xlu0 %3049, %v2884
    %v3051 = vpop.permute.xlu0 %3050
    %3054 = vset.pattern.permute.xlu0 0
    %3055 = vperm.xlu0 %3054, %v2885
    %v3056 = vpop.permute.xlu0 %3055
    %3059 = vset.pattern.permute.xlu0 0
    %3060 = vperm.xlu0 %3059, %v2886
    %v3061 = vpop.permute.xlu0 %3060
    %3064 = vset.pattern.permute.xlu0 0
    %3065 = vperm.xlu0 %3064, %v2887
    %v3066 = vpop.permute.xlu0 %3065
    %3069 = vset.pattern.permute.xlu0 0
    %3070 = vperm.xlu0 %3069, %v2888
    %v3071 = vpop.permute.xlu0 %3070
    %3074 = vset.pattern.permute.xlu0 0
    %3075 = vperm.xlu0 %3074, %v2889
    %v3076 = vpop.permute.xlu0 %3075
    %3079 = vset.pattern.permute.xlu0 0
    %3080 = vperm.xlu0 %3079, %v2890
    %v3081 = vpop.permute.xlu0 %3080
    %3084 = vset.pattern.permute.xlu0 0
    %3085 = vperm.xlu0 %3084, %v2891
    %v3086 = vpop.permute.xlu0 %3085
    %3089 = vset.pattern.permute.xlu0 0
    %3090 = vperm.xlu0 %3089, %v2892
    %v3091 = vpop.permute.xlu0 %3090
    %3094 = vset.pattern.permute.xlu0 0
    %3095 = vperm.xlu0 %3094, %v2893
    %v3096 = vpop.permute.xlu0 %3095
    %3099 = vset.pattern.permute.xlu0 0
    %3100 = vperm.xlu0 %3099, %v2894
    %v3101 = vpop.permute.xlu0 %3100
    %3104 = vset.pattern.permute.xlu0 0
    %3105 = vperm.xlu0 %3104, %v2895
    %v3106 = vpop.permute.xlu0 %3105
    %3109 = vset.pattern.permute.xlu0 0
    %3110 = vperm.xlu0 %3109, %v2896
    %v3111 = vpop.permute.xlu0 %3110
    %3114 = vset.pattern.permute.xlu0 0
    %3115 = vperm.xlu0 %3114, %v2897
    %v3116 = vpop.permute.xlu0 %3115
    %3119 = vset.pattern.permute.xlu0 0
    %3120 = vperm.xlu0 %3119, %v2898
    %v3121 = vpop.permute.xlu0 %3120
    %3124 = vset.pattern.permute.xlu0 0
    %3125 = vperm.xlu0 %3124, %v2899
    %v3126 = vpop.permute.xlu0 %3125
    %3129 = vset.pattern.permute.xlu0 0
    %3130 = vperm.xlu0 %3129, %v2900
    %v3131 = vpop.permute.xlu0 %3130
    %3134 = vset.pattern.permute.xlu0 0
    %3135 = vperm.xlu0 %3134, %v2901
    %v3136 = vpop.permute.xlu0 %3135
    %3139 = vset.pattern.permute.xlu0 0
    %3140 = vperm.xlu0 %3139, %v2902
    %v3141 = vpop.permute.xlu0 %3140
    %3144 = vset.pattern.permute.xlu0 0
    %3145 = vperm.xlu0 %3144, %v2903
    %v3146 = vpop.permute.xlu0 %3145
    %3149 = vset.pattern.permute.xlu0 0
    %3150 = vperm.xlu0 %3149, %v2904
    %v3151 = vpop.permute.xlu0 %3150
    %3154 = vset.pattern.permute.xlu0 0
    %3155 = vperm.xlu0 %3154, %v2905
    %v3156 = vpop.permute.xlu0 %3155
    %3159 = vset.pattern.permute.xlu0 0
    %3160 = vperm.xlu0 %3159, %v2906
    %v3161 = vpop.permute.xlu0 %3160
    %3164 = vset.pattern.permute.xlu0 0
    %3165 = vperm.xlu0 %3164, %v2907
    %v3166 = vpop.permute.xlu0 %3165
    %3169 = vset.pattern.permute.xlu0 0
    %3170 = vperm.xlu0 %3169, %v2908
    %v3171 = vpop.permute.xlu0 %3170
    %3174 = vset.pattern.permute.xlu0 0
    %3175 = vperm.xlu0 %3174, %v2909
    %v3176 = vpop.permute.xlu0 %3175
    %3179 = vset.pattern.permute.xlu0 0
    %3180 = vperm.xlu0 %3179, %v2910
    %v3181 = vpop.permute.xlu0 %3180
    %3184 = vset.pattern.permute.xlu0 0
    %3185 = vperm.xlu0 %3184, %v2911
    %v3186 = vpop.permute.xlu0 %3185
    %3189 = vset.pattern.permute.xlu0 0
    %3190 = vperm.xlu0 %3189, %v2912
    %v3191 = vpop.permute.xlu0 %3190
    %3194 = vset.pattern.permute.xlu0 0
    %3195 = vperm.xlu0 %3194, %v2913
    %v3196 = vpop.permute.xlu0 %3195
    %3199 = vset.pattern.permute.xlu0 0
    %3200 = vperm.xlu0 %3199, %v2914
    %v3201 = vpop.permute.xlu0 %3200
    %3204 = vset.pattern.permute.xlu0 0
    %3205 = vperm.xlu0 %3204, %v2915
    %v3206 = vpop.permute.xlu0 %3205
    %3209 = vset.pattern.permute.xlu0 0
    %3210 = vperm.xlu0 %3209, %v2916
    %v3211 = vpop.permute.xlu0 %3210
    %3214 = vset.pattern.permute.xlu0 0
    %3215 = vperm.xlu0 %3214, %v2917
    %v3216 = vpop.permute.xlu0 %3215
    %3219 = vset.pattern.permute.xlu0 0
    %3220 = vperm.xlu0 %3219, %v2918
    %v3221 = vpop.permute.xlu0 %3220
    %3224 = vset.pattern.permute.xlu0 0
    %3225 = vperm.xlu0 %3224, %v2919
    %v3226 = vpop.permute.xlu0 %3225
    %3229 = vset.pattern.permute.xlu0 0
    %3230 = vperm.xlu0 %3229, %v2920
    %v3231 = vpop.permute.xlu0 %3230
    %3234 = vset.pattern.permute.xlu0 0
    %3235 = vperm.xlu0 %3234, %v2921
    %v3236 = vpop.permute.xlu0 %3235
    %3239 = vset.pattern.permute.xlu0 0
    %3240 = vperm.xlu0 %3239, %v2922
    %v3241 = vpop.permute.xlu0 %3240
    %v3435 = vunpack.c.l.b16 %v2619
    %v3436 = vunpack.c.h.b16 %v2619
    %v3437 = vunpack.c.l.b16 %v2620
    %v3438 = vunpack.c.h.b16 %v2620
    %v3439 = vunpack.c.l.b16 %v2621
    %v3440 = vunpack.c.h.b16 %v2621
    %v3441 = vunpack.c.l.b16 %v2622
    %v3442 = vunpack.c.h.b16 %v2622
    %v3443 = vunpack.c.l.b16 %v2623
    %v3444 = vunpack.c.h.b16 %v2623
    %v3445 = vunpack.c.l.b16 %v2624
    %v3446 = vunpack.c.h.b16 %v2624
    %v3447 = vunpack.c.l.b16 %v2625
    %v3448 = vunpack.c.h.b16 %v2625
    %v3449 = vunpack.c.l.b16 %v2626
    %v3450 = vunpack.c.h.b16 %v2626
    %v3451 = vunpack.c.l.b16 %v2627
    %v3452 = vunpack.c.h.b16 %v2627
    %v3453 = vunpack.c.l.b16 %v2628
    %v3454 = vunpack.c.h.b16 %v2628
    %v3455 = vunpack.c.l.b16 %v2629
    %v3456 = vunpack.c.h.b16 %v2629
    %v3457 = vunpack.c.l.b16 %v2630
    %v3458 = vunpack.c.h.b16 %v2630
    %v3459 = vunpack.c.l.b16 %v2631
    %v3460 = vunpack.c.h.b16 %v2631
    %v3461 = vunpack.c.l.b16 %v2632
    %v3462 = vunpack.c.h.b16 %v2632
    %v3463 = vunpack.c.l.b16 %v2633
    %v3464 = vunpack.c.h.b16 %v2633
    %v3465 = vunpack.c.l.b16 %v2634
    %v3466 = vunpack.c.h.b16 %v2634
    %v3467 = vunpack.c.l.b16 %v2635
    %v3468 = vunpack.c.h.b16 %v2635
    %v3469 = vunpack.c.l.b16 %v2636
    %v3470 = vunpack.c.h.b16 %v2636
    %v3471 = vunpack.c.l.b16 %v2637
    %v3472 = vunpack.c.h.b16 %v2637
    %v3473 = vunpack.c.l.b16 %v2638
    %v3474 = vunpack.c.h.b16 %v2638
    %v3475 = vunpack.c.l.b16 %v2639
    %v3476 = vunpack.c.h.b16 %v2639
    %v3477 = vunpack.c.l.b16 %v2640
    %v3478 = vunpack.c.h.b16 %v2640
    %v3479 = vunpack.c.l.b16 %v2641
    %v3480 = vunpack.c.h.b16 %v2641
    %v3481 = vunpack.c.l.b16 %v2642
    %v3482 = vunpack.c.h.b16 %v2642
    %v3483 = vunpack.c.l.b16 %v2643
    %v3484 = vunpack.c.h.b16 %v2643
    %v3485 = vunpack.c.l.b16 %v2644
    %v3486 = vunpack.c.h.b16 %v2644
    %v3487 = vunpack.c.l.b16 %v2645
    %v3488 = vunpack.c.h.b16 %v2645
    %v3489 = vunpack.c.l.b16 %v2646
    %v3490 = vunpack.c.h.b16 %v2646
    %v3491 = vunpack.c.l.b16 %v2647
    %v3492 = vunpack.c.h.b16 %v2647
    %v3493 = vunpack.c.l.b16 %v2648
    %v3494 = vunpack.c.h.b16 %v2648
    %v3495 = vunpack.c.l.b16 %v2649
    %v3496 = vunpack.c.h.b16 %v2649
    %v3497 = vunpack.c.l.b16 %v2650
    %v3498 = vunpack.c.h.b16 %v2650
    %v3499 = vunpack.c.l.b16 %v2651
    %v3500 = vunpack.c.h.b16 %v2651
    %v3501 = vunpack.c.l.b16 %v2652
    %v3502 = vunpack.c.h.b16 %v2652
    %v3503 = vunpack.c.l.b16 %v2653
    %v3504 = vunpack.c.h.b16 %v2653
    %v3505 = vunpack.c.l.b16 %v2654
    %v3506 = vunpack.c.h.b16 %v2654
    %v3507 = vunpack.c.l.b16 %v2655
    %v3508 = vunpack.c.h.b16 %v2655
    %v3509 = vunpack.c.l.b16 %v2656
    %v3510 = vunpack.c.h.b16 %v2656
    %v3511 = vunpack.c.l.b16 %v2657
    %v3512 = vunpack.c.h.b16 %v2657
    %v3513 = vunpack.c.l.b16 %v2658
    %v3514 = vunpack.c.h.b16 %v2658
    %v3515 = vunpack.c.l.b16 %v2659
    %v3516 = vunpack.c.h.b16 %v2659
    %v3517 = vunpack.c.l.b16 %v2660
    %v3518 = vunpack.c.h.b16 %v2660
    %v3519 = vunpack.c.l.b16 %v2661
    %v3520 = vunpack.c.h.b16 %v2661
    %v3521 = vunpack.c.l.b16 %v2662
    %v3522 = vunpack.c.h.b16 %v2662
    %v3523 = vunpack.c.l.b16 %v2663
    %v3524 = vunpack.c.h.b16 %v2663
    %v3525 = vunpack.c.l.b16 %v2664
    %v3526 = vunpack.c.h.b16 %v2664
    %v3527 = vunpack.c.l.b16 %v2665
    %v3528 = vunpack.c.h.b16 %v2665
    %v3529 = vunpack.c.l.b16 %v2666
    %v3530 = vunpack.c.h.b16 %v2666
    %v3531 = vunpack.c.l.b16 %v2667
    %v3532 = vunpack.c.h.b16 %v2667
    %v3533 = vunpack.c.l.b16 %v2668
    %v3534 = vunpack.c.h.b16 %v2668
    %v3535 = vunpack.c.l.b16 %v2669
    %v3536 = vunpack.c.h.b16 %v2669
    %v3537 = vunpack.c.l.b16 %v2670
    %v3538 = vunpack.c.h.b16 %v2670
    %v3539 = vunpack.c.l.b16 %v2671
    %v3540 = vunpack.c.h.b16 %v2671
    %v3541 = vunpack.c.l.b16 %v2672
    %v3542 = vunpack.c.h.b16 %v2672
    %v3543 = vunpack.c.l.b16 %v2673
    %v3544 = vunpack.c.h.b16 %v2673
    %v3545 = vunpack.c.l.b16 %v2674
    %v3546 = vunpack.c.h.b16 %v2674
    %v3547 = vunpack.c.l.b16 %v2675
    %v3548 = vunpack.c.h.b16 %v2675
    %v3549 = vunpack.c.l.b16 %v2676
    %v3550 = vunpack.c.h.b16 %v2676
    %v3551 = vunpack.c.l.b16 %v2677
    %v3552 = vunpack.c.h.b16 %v2677
    %v3553 = vunpack.c.l.b16 %v2678
    %v3554 = vunpack.c.h.b16 %v2678
    %v3555 = vunpack.c.l.b16 %v2679
    %v3556 = vunpack.c.h.b16 %v2679
    %v3557 = vunpack.c.l.b16 %v2680
    %v3558 = vunpack.c.h.b16 %v2680
    %v3559 = vunpack.c.l.b16 %v2681
    %v3560 = vunpack.c.h.b16 %v2681
    %v3561 = vunpack.c.l.b16 %v2682
    %v3562 = vunpack.c.h.b16 %v2682
    %v3563 = vunpack.c.l.b16 %v2683
    %v3564 = vunpack.c.h.b16 %v2683
    %v3565 = vunpack.c.l.b16 %v2684
    %v3566 = vunpack.c.h.b16 %v2684
    %v3567 = vunpack.c.l.b16 %v2685
    %v3568 = vunpack.c.h.b16 %v2685
    %v3569 = vunpack.c.l.b16 %v2686
    %v3570 = vunpack.c.h.b16 %v2686
    %v3571 = vunpack.c.l.b16 %v2687
    %v3572 = vunpack.c.h.b16 %v2687
    %v3573 = vunpack.c.l.b16 %v2688
    %v3574 = vunpack.c.h.b16 %v2688
    %v3575 = vunpack.c.l.b16 %v2689
    %v3576 = vunpack.c.h.b16 %v2689
    %v3577 = vunpack.c.l.b16 %v2690
    %v3578 = vunpack.c.h.b16 %v2690
    %v3579 = vunpack.c.l.b16 %v2691
    %v3580 = vunpack.c.h.b16 %v2691
    %v3581 = vunpack.c.l.b16 %v2692
    %v3582 = vunpack.c.h.b16 %v2692
    %v3583 = vunpack.c.l.b16 %v2693
    %v3584 = vunpack.c.h.b16 %v2693
    %v3585 = vunpack.c.l.b16 %v2694
    %v3586 = vunpack.c.h.b16 %v2694
    %v3587 = vunpack.c.l.b16 %v2695
    %v3588 = vunpack.c.h.b16 %v2695
    %v3589 = vunpack.c.l.b16 %v2696
    %v3590 = vunpack.c.h.b16 %v2696
    %v3591 = vunpack.c.l.b16 %v2697
    %v3592 = vunpack.c.h.b16 %v2697
    %v3593 = vunpack.c.l.b16 %v2698
    %v3594 = vunpack.c.h.b16 %v2698
    %v3595 = vunpack.c.l.b16 %v2699
    %v3596 = vunpack.c.h.b16 %v2699
    %v3597 = vunpack.c.l.b16 %v2700
    %v3598 = vunpack.c.h.b16 %v2700
    %v3599 = vunpack.c.l.b16 %v2701
    %v3600 = vunpack.c.h.b16 %v2701
    %v3601 = vunpack.c.l.b16 %v2702
    %v3602 = vunpack.c.h.b16 %v2702
    %v3603 = vunpack.c.l.b16 %v2703
    %v3604 = vunpack.c.h.b16 %v2703
    %v3605 = vunpack.c.l.b16 %v2704
    %v3606 = vunpack.c.h.b16 %v2704
    %v3607 = vunpack.c.l.b16 %v2705
    %v3608 = vunpack.c.h.b16 %v2705
    %v3609 = vunpack.c.l.b16 %v2706
    %v3610 = vunpack.c.h.b16 %v2706
    %v3611 = vunpack.c.l.b16 %v2707
    %v3612 = vunpack.c.h.b16 %v2707
    %v3613 = vunpack.c.l.b16 %v2708
    %v3614 = vunpack.c.h.b16 %v2708
    %v3615 = vunpack.c.l.b16 %v2709
    %v3616 = vunpack.c.h.b16 %v2709
    %v3617 = vunpack.c.l.b16 %v2710
    %v3618 = vunpack.c.h.b16 %v2710
    %v3619 = vunpack.c.l.b16 %v2711
    %v3620 = vunpack.c.h.b16 %v2711
    %v3621 = vunpack.c.l.b16 %v2712
    %v3622 = vunpack.c.h.b16 %v2712
    %v3623 = vunpack.c.l.b16 %v2713
    %v3624 = vunpack.c.h.b16 %v2713
    %v3625 = vunpack.c.l.b16 %v2714
    %v3626 = vunpack.c.h.b16 %v2714
    %v3627 = vunpack.c.l.b16 %v2715
    %v3628 = vunpack.c.h.b16 %v2715
    %v3629 = vunpack.c.l.b16 %v2716
    %v3630 = vunpack.c.h.b16 %v2716
    %v3631 = vunpack.c.l.b16 %v2717
    %v3632 = vunpack.c.h.b16 %v2717
    %v3633 = vunpack.c.l.b16 %v2718
    %v3634 = vunpack.c.h.b16 %v2718
    %v3635 = vunpack.c.l.b16 %v2719
    %v3636 = vunpack.c.h.b16 %v2719
    %v3637 = vunpack.c.l.b16 %v2720
    %v3638 = vunpack.c.h.b16 %v2720
    %v3639 = vunpack.c.l.b16 %v2721
    %v3640 = vunpack.c.h.b16 %v2721
    %v3641 = vunpack.c.l.b16 %v2722
    %v3642 = vunpack.c.h.b16 %v2722
    %v3643 = vunpack.c.l.b16 %v2723
    %v3644 = vunpack.c.h.b16 %v2723
    %v3645 = vunpack.c.l.b16 %v2724
    %v3646 = vunpack.c.h.b16 %v2724
    %v3647 = vunpack.c.l.b16 %v2725
    %v3648 = vunpack.c.h.b16 %v2725
    %v3649 = vunpack.c.l.b16 %v2726
    %v3650 = vunpack.c.h.b16 %v2726
    %v3651 = vunpack.c.l.b16 %v2727
    %v3652 = vunpack.c.h.b16 %v2727
    %v3653 = vunpack.c.l.b16 %v2728
    %v3654 = vunpack.c.h.b16 %v2728
    %v3655 = vunpack.c.l.b16 %v2729
    %v3656 = vunpack.c.h.b16 %v2729
    %v3657 = vunpack.c.l.b16 %v2730
    %v3658 = vunpack.c.h.b16 %v2730
    %v3659 = vunpack.c.l.b16 %v2731
    %v3660 = vunpack.c.h.b16 %v2731
    %v3661 = vunpack.c.l.b16 %v2732
    %v3662 = vunpack.c.h.b16 %v2732
    %v3663 = vunpack.c.l.b16 %v2733
    %v3664 = vunpack.c.h.b16 %v2733
    %v3665 = vunpack.c.l.b16 %v2734
    %v3666 = vunpack.c.h.b16 %v2734
    %v3667 = vunpack.c.l.b16 %v2735
    %v3668 = vunpack.c.h.b16 %v2735
    %v3669 = vunpack.c.l.b16 %v2736
    %v3670 = vunpack.c.h.b16 %v2736
    %v3671 = vunpack.c.l.b16 %v2737
    %v3672 = vunpack.c.h.b16 %v2737
    %v3673 = vunpack.c.l.b16 %v2738
    %v3674 = vunpack.c.h.b16 %v2738
    %v3675 = vunpack.c.l.b16 %v2739
    %v3676 = vunpack.c.h.b16 %v2739
    %v3677 = vunpack.c.l.b16 %v2740
    %v3678 = vunpack.c.h.b16 %v2740
    %v3679 = vunpack.c.l.b16 %v2741
    %v3680 = vunpack.c.h.b16 %v2741
    %v3681 = vunpack.c.l.b16 %v2742
    %v3682 = vunpack.c.h.b16 %v2742
    %v3683 = vunpack.c.l.b16 %v2743
    %v3684 = vunpack.c.h.b16 %v2743
    %v3685 = vunpack.c.l.b16 %v2744
    %v3686 = vunpack.c.h.b16 %v2744
    %v3687 = vunpack.c.l.b16 %v2745
    %v3688 = vunpack.c.h.b16 %v2745
    %v3689 = vunpack.c.l.b16 %v2746
    %v3690 = vunpack.c.h.b16 %v2746
    %v3691 = vunpack.c.l.b16 %v2747
    %v3692 = vunpack.c.h.b16 %v2747
    %v3693 = vunpack.c.l.b16 %v2748
    %v3694 = vunpack.c.h.b16 %v2748
    %v3695 = vunpack.c.l.b16 %v2749
    %v3696 = vunpack.c.h.b16 %v2749
    %v3697 = vunpack.c.l.b16 %v2750
    %v3698 = vunpack.c.h.b16 %v2750
    %v3699 = vunpack.c.l.b16 %v2751
    %v3700 = vunpack.c.h.b16 %v2751
    %v3701 = vunpack.c.l.b16 %v2752
    %v3702 = vunpack.c.h.b16 %v2752
    %v3703 = vunpack.c.l.b16 %v2753
    %v3704 = vunpack.c.h.b16 %v2753
    %v3705 = vunpack.c.l.b16 %v2754
    %v3706 = vunpack.c.h.b16 %v2754
    %v3707 = vunpack.c.l.b16 %v2755
    %v3708 = vunpack.c.h.b16 %v2755
    %v3709 = vunpack.c.l.b16 %v2756
    %v3710 = vunpack.c.h.b16 %v2756
    %v3711 = vunpack.c.l.b16 %v2757
    %v3712 = vunpack.c.h.b16 %v2757
    %v3713 = vunpack.c.l.b16 %v2758
    %v3714 = vunpack.c.h.b16 %v2758
    %v3715 = vunpack.c.l.b16 %v2759
    %v3716 = vunpack.c.h.b16 %v2759
    %v3717 = vunpack.c.l.b16 %v2760
    %v3718 = vunpack.c.h.b16 %v2760
    %v3719 = vunpack.c.l.b16 %v2761
    %v3720 = vunpack.c.h.b16 %v2761
    %v3721 = vunpack.c.l.b16 %v2762
    %v3722 = vunpack.c.h.b16 %v2762
    %v3723 = vunpack.c.l.b16 %v2763
    %v3724 = vunpack.c.h.b16 %v2763
    %v3725 = vunpack.c.l.b16 %v2764
    %v3726 = vunpack.c.h.b16 %v2764
    %v3727 = vunpack.c.l.b16 %v2765
    %v3728 = vunpack.c.h.b16 %v2765
    %v3729 = vunpack.c.l.b16 %v2766
    %v3730 = vunpack.c.h.b16 %v2766
    %v3731 = vunpack.c.l.b16 %v2767
    %v3732 = vunpack.c.h.b16 %v2767
    %v3733 = vunpack.c.l.b16 %v2768
    %v3734 = vunpack.c.h.b16 %v2768
    %v3735 = vunpack.c.l.b16 %v2769
    %v3736 = vunpack.c.h.b16 %v2769
    %v3737 = vunpack.c.l.b16 %v2770
    %v3738 = vunpack.c.h.b16 %v2770
    %v3739 = vunpack.c.l.b16 %v2771
    %v3740 = vunpack.c.h.b16 %v2771
    %v3741 = vunpack.c.l.b16 %v2772
    %v3742 = vunpack.c.h.b16 %v2772
    %v3743 = vunpack.c.l.b16 %v2773
    %v3744 = vunpack.c.h.b16 %v2773
    %v3745 = vunpack.c.l.b16 %v2774
    %v3746 = vunpack.c.h.b16 %v2774
    %v3747 = vunpack.c.l.b16 %v2775
    %v3748 = vunpack.c.h.b16 %v2775
    %v3749 = vunpack.c.l.b16 %v2776
    %v3750 = vunpack.c.h.b16 %v2776
    %v3751 = vunpack.c.l.b16 %v2777
    %v3752 = vunpack.c.h.b16 %v2777
    %v3753 = vunpack.c.l.b16 %v2778
    %v3754 = vunpack.c.h.b16 %v2778
    %v3755 = vunpack.c.l.b16 %v2779
    %v3756 = vunpack.c.h.b16 %v2779
    %v3757 = vunpack.c.l.b16 %v2780
    %v3758 = vunpack.c.h.b16 %v2780
    %v3759 = vunpack.c.l.b16 %v2781
    %v3760 = vunpack.c.h.b16 %v2781
    %v3761 = vunpack.c.l.b16 %v2782
    %v3762 = vunpack.c.h.b16 %v2782
    %v3763 = vunpack.c.l.b16 %v2783
    %v3764 = vunpack.c.h.b16 %v2783
    %v3765 = vunpack.c.l.b16 %v2784
    %v3766 = vunpack.c.h.b16 %v2784
    %v3767 = vunpack.c.l.b16 %v2785
    %v3768 = vunpack.c.h.b16 %v2785
    %v3769 = vunpack.c.l.b16 %v2786
    %v3770 = vunpack.c.h.b16 %v2786
    %v3771 = vunpack.c.l.b16 %v2787
    %v3772 = vunpack.c.h.b16 %v2787
    %v3773 = vunpack.c.l.b16 %v2788
    %v3774 = vunpack.c.h.b16 %v2788
    %v3775 = vunpack.c.l.b16 %v2789
    %v3776 = vunpack.c.h.b16 %v2789
    %v3777 = vunpack.c.l.b16 %v2790
    %v3778 = vunpack.c.h.b16 %v2790
    %v3779 = vunpack.c.l.b16 %v2791
    %v3780 = vunpack.c.h.b16 %v2791
    %v3781 = vunpack.c.l.b16 %v2792
    %v3782 = vunpack.c.h.b16 %v2792
    %v3783 = vunpack.c.l.b16 %v2793
    %v3784 = vunpack.c.h.b16 %v2793
    %v3785 = vunpack.c.l.b16 %v2794
    %v3786 = vunpack.c.h.b16 %v2794
    %v3787 = vunpack.c.l.b16 %v2795
    %v3788 = vunpack.c.h.b16 %v2795
    %v3789 = vunpack.c.l.b16 %v2796
    %v3790 = vunpack.c.h.b16 %v2796
    %v3791 = vunpack.c.l.b16 %v2797
    %v3792 = vunpack.c.h.b16 %v2797
    %v3793 = vunpack.c.l.b16 %v2798
    %v3794 = vunpack.c.h.b16 %v2798
    %v3795 = vunpack.c.l.b16 %v2799
    %v3796 = vunpack.c.h.b16 %v2799
    %v3797 = vunpack.c.l.b16 %v2800
    %v3798 = vunpack.c.h.b16 %v2800
    %v3799 = vunpack.c.l.b16 %v2801
    %v3800 = vunpack.c.h.b16 %v2801
    %v3801 = vunpack.c.l.b16 %v2802
    %v3802 = vunpack.c.h.b16 %v2802
    %v3803 = vunpack.c.l.b16 %v2803
    %v3804 = vunpack.c.h.b16 %v2803
    %v3805 = vunpack.c.l.b16 %v2804
    %v3806 = vunpack.c.h.b16 %v2804
    %v3807 = vunpack.c.l.b16 %v2805
    %v3808 = vunpack.c.h.b16 %v2805
    %v3809 = vunpack.c.l.b16 %v2806
    %v3810 = vunpack.c.h.b16 %v2806
    %v3811 = vunpack.c.l.b16 %v2807
    %v3812 = vunpack.c.h.b16 %v2807
    %v3813 = vunpack.c.l.b16 %v2808
    %v3814 = vunpack.c.h.b16 %v2808
    %v3815 = vunpack.c.l.b16 %v2809
    %v3816 = vunpack.c.h.b16 %v2809
    %v3817 = vunpack.c.l.b16 %v2810
    %v3818 = vunpack.c.h.b16 %v2810
    %v3819 = vpack.c.b16 %v3441, %v3435
    %v3820 = vpack.c.b16 %v3442, %v3436
    %v3821 = vpack.c.b16 %v3443, %v3437
    %v3822 = vpack.c.b16 %v3444, %v3438
    %v3823 = vpack.c.b16 %v3445, %v3439
    %v3824 = vpack.c.b16 %v3446, %v3440
    %v3825 = vpack.c.b16 %v3453, %v3447
    %v3826 = vpack.c.b16 %v3454, %v3448
    %v3827 = vpack.c.b16 %v3455, %v3449
    %v3828 = vpack.c.b16 %v3456, %v3450
    %v3829 = vpack.c.b16 %v3457, %v3451
    %v3830 = vpack.c.b16 %v3458, %v3452
    %v3831 = vpack.c.b16 %v3465, %v3459
    %v3832 = vpack.c.b16 %v3466, %v3460
    %v3833 = vpack.c.b16 %v3467, %v3461
    %v3834 = vpack.c.b16 %v3468, %v3462
    %v3835 = vpack.c.b16 %v3469, %v3463
    %v3836 = vpack.c.b16 %v3470, %v3464
    %v3837 = vpack.c.b16 %v3477, %v3471
    %v3838 = vpack.c.b16 %v3478, %v3472
    %v3839 = vpack.c.b16 %v3479, %v3473
    %v3840 = vpack.c.b16 %v3480, %v3474
    %v3841 = vpack.c.b16 %v3481, %v3475
    %v3842 = vpack.c.b16 %v3482, %v3476
    %v3843 = vpack.c.b16 %v3489, %v3483
    %v3844 = vpack.c.b16 %v3490, %v3484
    %v3845 = vpack.c.b16 %v3491, %v3485
    %v3846 = vpack.c.b16 %v3492, %v3486
    %v3847 = vpack.c.b16 %v3493, %v3487
    %v3848 = vpack.c.b16 %v3494, %v3488
    %v3849 = vpack.c.b16 %v3501, %v3495
    %v3850 = vpack.c.b16 %v3502, %v3496
    %v3851 = vpack.c.b16 %v3503, %v3497
    %v3852 = vpack.c.b16 %v3504, %v3498
    %v3853 = vpack.c.b16 %v3505, %v3499
    %v3854 = vpack.c.b16 %v3506, %v3500
    %v3855 = vpack.c.b16 %v3513, %v3507
    %v3856 = vpack.c.b16 %v3514, %v3508
    %v3857 = vpack.c.b16 %v3515, %v3509
    %v3858 = vpack.c.b16 %v3516, %v3510
    %v3859 = vpack.c.b16 %v3517, %v3511
    %v3860 = vpack.c.b16 %v3518, %v3512
    %v3861 = vpack.c.b16 %v3525, %v3519
    %v3862 = vpack.c.b16 %v3526, %v3520
    %v3863 = vpack.c.b16 %v3527, %v3521
    %v3864 = vpack.c.b16 %v3528, %v3522
    %v3865 = vpack.c.b16 %v3529, %v3523
    %v3866 = vpack.c.b16 %v3530, %v3524
    %v3867 = vpack.c.b16 %v3537, %v3531
    %v3868 = vpack.c.b16 %v3538, %v3532
    %v3869 = vpack.c.b16 %v3539, %v3533
    %v3870 = vpack.c.b16 %v3540, %v3534
    %v3871 = vpack.c.b16 %v3541, %v3535
    %v3872 = vpack.c.b16 %v3542, %v3536
    %v3873 = vpack.c.b16 %v3549, %v3543
    %v3874 = vpack.c.b16 %v3550, %v3544
    %v3875 = vpack.c.b16 %v3551, %v3545
    %v3876 = vpack.c.b16 %v3552, %v3546
    %v3877 = vpack.c.b16 %v3553, %v3547
    %v3878 = vpack.c.b16 %v3554, %v3548
    %v3879 = vpack.c.b16 %v3561, %v3555
    %v3880 = vpack.c.b16 %v3562, %v3556
    %v3881 = vpack.c.b16 %v3563, %v3557
    %v3882 = vpack.c.b16 %v3564, %v3558
    %v3883 = vpack.c.b16 %v3565, %v3559
    %v3884 = vpack.c.b16 %v3566, %v3560
    %v3885 = vpack.c.b16 %v3573, %v3567
    %v3886 = vpack.c.b16 %v3574, %v3568
    %v3887 = vpack.c.b16 %v3575, %v3569
    %v3888 = vpack.c.b16 %v3576, %v3570
    %v3889 = vpack.c.b16 %v3577, %v3571
    %v3890 = vpack.c.b16 %v3578, %v3572
    %v3891 = vpack.c.b16 %v3585, %v3579
    %v3892 = vpack.c.b16 %v3586, %v3580
    %v3893 = vpack.c.b16 %v3587, %v3581
    %v3894 = vpack.c.b16 %v3588, %v3582
    %v3895 = vpack.c.b16 %v3589, %v3583
    %v3896 = vpack.c.b16 %v3590, %v3584
    %v3897 = vpack.c.b16 %v3597, %v3591
    %v3898 = vpack.c.b16 %v3598, %v3592
    %v3899 = vpack.c.b16 %v3599, %v3593
    %v3900 = vpack.c.b16 %v3600, %v3594
    %v3901 = vpack.c.b16 %v3601, %v3595
    %v3902 = vpack.c.b16 %v3602, %v3596
    %v3903 = vpack.c.b16 %v3609, %v3603
    %v3904 = vpack.c.b16 %v3610, %v3604
    %v3905 = vpack.c.b16 %v3611, %v3605
    %v3906 = vpack.c.b16 %v3612, %v3606
    %v3907 = vpack.c.b16 %v3613, %v3607
    %v3908 = vpack.c.b16 %v3614, %v3608
    %v3909 = vpack.c.b16 %v3621, %v3615
    %v3910 = vpack.c.b16 %v3622, %v3616
    %v3911 = vpack.c.b16 %v3623, %v3617
    %v3912 = vpack.c.b16 %v3624, %v3618
    %v3913 = vpack.c.b16 %v3625, %v3619
    %v3914 = vpack.c.b16 %v3626, %v3620
    %v3915 = vpack.c.b16 %v3633, %v3627
    %v3916 = vpack.c.b16 %v3634, %v3628
    %v3917 = vpack.c.b16 %v3635, %v3629
    %v3918 = vpack.c.b16 %v3636, %v3630
    %v3919 = vpack.c.b16 %v3637, %v3631
    %v3920 = vpack.c.b16 %v3638, %v3632
    %v3921 = vpack.c.b16 %v3645, %v3639
    %v3922 = vpack.c.b16 %v3646, %v3640
    %v3923 = vpack.c.b16 %v3647, %v3641
    %v3924 = vpack.c.b16 %v3648, %v3642
    %v3925 = vpack.c.b16 %v3649, %v3643
    %v3926 = vpack.c.b16 %v3650, %v3644
    %v3927 = vpack.c.b16 %v3657, %v3651
    %v3928 = vpack.c.b16 %v3658, %v3652
    %v3929 = vpack.c.b16 %v3659, %v3653
    %v3930 = vpack.c.b16 %v3660, %v3654
    %v3931 = vpack.c.b16 %v3661, %v3655
    %v3932 = vpack.c.b16 %v3662, %v3656
    %v3933 = vpack.c.b16 %v3669, %v3663
    %v3934 = vpack.c.b16 %v3670, %v3664
    %v3935 = vpack.c.b16 %v3671, %v3665
    %v3936 = vpack.c.b16 %v3672, %v3666
    %v3937 = vpack.c.b16 %v3673, %v3667
    %v3938 = vpack.c.b16 %v3674, %v3668
    %v3939 = vpack.c.b16 %v3681, %v3675
    %v3940 = vpack.c.b16 %v3682, %v3676
    %v3941 = vpack.c.b16 %v3683, %v3677
    %v3942 = vpack.c.b16 %v3684, %v3678
    %v3943 = vpack.c.b16 %v3685, %v3679
    %v3944 = vpack.c.b16 %v3686, %v3680
    %v3945 = vpack.c.b16 %v3693, %v3687
    %v3946 = vpack.c.b16 %v3694, %v3688
    %v3947 = vpack.c.b16 %v3695, %v3689
    %v3948 = vpack.c.b16 %v3696, %v3690
    %v3949 = vpack.c.b16 %v3697, %v3691
    %v3950 = vpack.c.b16 %v3698, %v3692
    %v3951 = vpack.c.b16 %v3705, %v3699
    %v3952 = vpack.c.b16 %v3706, %v3700
    %v3953 = vpack.c.b16 %v3707, %v3701
    %v3954 = vpack.c.b16 %v3708, %v3702
    %v3955 = vpack.c.b16 %v3709, %v3703
    %v3956 = vpack.c.b16 %v3710, %v3704
    %v3957 = vpack.c.b16 %v3717, %v3711
    %v3958 = vpack.c.b16 %v3718, %v3712
    %v3959 = vpack.c.b16 %v3719, %v3713
    %v3960 = vpack.c.b16 %v3720, %v3714
    %v3961 = vpack.c.b16 %v3721, %v3715
    %v3962 = vpack.c.b16 %v3722, %v3716
    %v3963 = vpack.c.b16 %v3729, %v3723
    %v3964 = vpack.c.b16 %v3730, %v3724
    %v3965 = vpack.c.b16 %v3731, %v3725
    %v3966 = vpack.c.b16 %v3732, %v3726
    %v3967 = vpack.c.b16 %v3733, %v3727
    %v3968 = vpack.c.b16 %v3734, %v3728
    %v3969 = vpack.c.b16 %v3741, %v3735
    %v3970 = vpack.c.b16 %v3742, %v3736
    %v3971 = vpack.c.b16 %v3743, %v3737
    %v3972 = vpack.c.b16 %v3744, %v3738
    %v3973 = vpack.c.b16 %v3745, %v3739
    %v3974 = vpack.c.b16 %v3746, %v3740
    %v3975 = vpack.c.b16 %v3753, %v3747
    %v3976 = vpack.c.b16 %v3754, %v3748
    %v3977 = vpack.c.b16 %v3755, %v3749
    %v3978 = vpack.c.b16 %v3756, %v3750
    %v3979 = vpack.c.b16 %v3757, %v3751
    %v3980 = vpack.c.b16 %v3758, %v3752
    %v3981 = vpack.c.b16 %v3765, %v3759
    %v3982 = vpack.c.b16 %v3766, %v3760
    %v3983 = vpack.c.b16 %v3767, %v3761
    %v3984 = vpack.c.b16 %v3768, %v3762
    %v3985 = vpack.c.b16 %v3769, %v3763
    %v3986 = vpack.c.b16 %v3770, %v3764
    %v3987 = vpack.c.b16 %v3777, %v3771
    %v3988 = vpack.c.b16 %v3778, %v3772
    %v3989 = vpack.c.b16 %v3779, %v3773
    %v3990 = vpack.c.b16 %v3780, %v3774
    %v3991 = vpack.c.b16 %v3781, %v3775
    %v3992 = vpack.c.b16 %v3782, %v3776
    %v3993 = vpack.c.b16 %v3789, %v3783
    %v3994 = vpack.c.b16 %v3790, %v3784
    %v3995 = vpack.c.b16 %v3791, %v3785
    %v3996 = vpack.c.b16 %v3792, %v3786
    %v3997 = vpack.c.b16 %v3793, %v3787
    %v3998 = vpack.c.b16 %v3794, %v3788
    %v3999 = vpack.c.b16 %v3801, %v3795
    %v4000 = vpack.c.b16 %v3802, %v3796
    %v4001 = vpack.c.b16 %v3803, %v3797
    %v4002 = vpack.c.b16 %v3804, %v3798
    %v4003 = vpack.c.b16 %v3805, %v3799
    %v4004 = vpack.c.b16 %v3806, %v3800
    %v4005 = vpack.c.b16 %v3813, %v3807
    %v4006 = vpack.c.b16 %v3814, %v3808
    %v4007 = vpack.c.b16 %v3815, %v3809
    %v4008 = vpack.c.b16 %v3816, %v3810
    %v4009 = vpack.c.b16 %v3817, %v3811
    %v4010 = vpack.c.b16 %v3818, %v3812
    %4203 = vmatprep.subr.bf16.mxu0 0
    %4204 = vmatpush1.bf16.msra.mxu0 %v2811
    %4205 = vmatprep.subr.bf16.mxu0 0
    %4206 = vmatpush1.bf16.msra.mxu0 %v2812
    %4207 = vmatprep.subr.bf16.mxu0 0
    %4208 = vmatpush1.bf16.msra.mxu0 %v2813
    %4209 = vmatprep.subr.bf16.mxu0 0
    %4210 = vmatpush1.bf16.msra.mxu0 %v2814
    %4211 = vmatprep.subr.bf16.mxu0 0
    %4212 = vmatpush1.bf16.msra.mxu0 %v2815
    %4213 = vmatprep.subr.bf16.mxu0 0
    %4214 = vmatpush1.bf16.msra.mxu0 %v2816
    %4215 = vmatprep.subr.bf16.mxu0 0
    %4216 = vmatpush1.bf16.msra.mxu0 %v2817
    %4217 = vmatprep.subr.bf16.mxu0 0
    %4218 = vmatpush1.bf16.msra.mxu0 %v2818
    %4219 = vmatprep.subr.bf16.mxu0 0
    %4220 = vmatpush1.bf16.msra.mxu0 %v2819
    %4221 = vmatprep.subr.bf16.mxu0 0
    %4222 = vmatpush1.bf16.msra.mxu0 %v2820
    %4223 = vmatprep.subr.bf16.mxu0 0
    %4224 = vmatpush1.bf16.msra.mxu0 %v2821
    %4225 = vmatprep.subr.bf16.mxu0 0
    %4226 = vmatpush1.bf16.msra.mxu0 %v2822
    %4227 = vmatprep.subr.bf16.mxu0 0
    %4228 = vmatpush1.bf16.msra.mxu0 %v2823
    %4229 = vmatprep.subr.bf16.mxu0 0
    %4230 = vmatpush1.bf16.msra.mxu0 %v2824
    %4231 = vmatprep.subr.bf16.mxu0 0
    %4232 = vmatpush1.bf16.msra.mxu0 %v2825
    %4233 = vmatprep.subr.bf16.mxu0 0
    %4234 = vmatpush1.bf16.msra.mxu0 %v2826
    %4235 = vmatprep.mubr.bf16.mxu0 %v3820
    %4236 = vmatmul.mubr.bf16.gmra.mrb[0].mxu0 %v3819
    %v4237 = vpop.f32.mrb[0].mxu0
    %v4238 = vadd.f32 %v2926, %v4237
    %v4239 = vpop.f32.mrb[0].mxu0
    %v4240 = vpop.f32.mrb[0].mxu0
    %v4241 = vadd.f32 %v2931, %v4240
    %v4242 = vpop.f32.mrb[0].mxu0
    %4243 = vmatprep.mubr.bf16.mxu0 %v3826
    %4244 = vmatmul.mubr.bf16.gmra.mrb[0].mxu0 %v3825
    %v4245 = vpop.f32.mrb[0].mxu0
    %v4246 = vadd.f32 %v2936, %v4245
    %v4247 = vpop.f32.mrb[0].mxu0
    %v4248 = vpop.f32.mrb[0].mxu0
    %v4249 = vadd.f32 %v2941, %v4248
    %v4250 = vpop.f32.mrb[0].mxu0
    %4251 = vmatprep.mubr.bf16.mxu0 %v3832
    %4252 = vmatmul.mubr.bf16.gmra.mrb[0].mxu0 %v3831
    %v4253 = vpop.f32.mrb[0].mxu0
    %v4254 = vadd.f32 %v2946, %v4253
    %v4255 = vpop.f32.mrb[0].mxu0
    %v4256 = vpop.f32.mrb[0].mxu0
    %v4257 = vadd.f32 %v2951, %v4256
    %v4258 = vpop.f32.mrb[0].mxu0
    %4259 = vmatprep.mubr.bf16.mxu0 %v3838
    %4260 = vmatmul.mubr.bf16.gmra.mrb[0].mxu0 %v3837
    %v4261 = vpop.f32.mrb[0].mxu0
    %v4262 = vadd.f32 %v2956, %v4261
    %v4263 = vpop.f32.mrb[0].mxu0
    %v4264 = vpop.f32.mrb[0].mxu0
    %v4265 = vadd.f32 %v2961, %v4264
    %v4266 = vpop.f32.mrb[0].mxu0
    %4267 = vmatprep.mubr.bf16.mxu0 %v3844
    %4268 = vmatmul.mubr.bf16.gmra.mrb[0].mxu0 %v3843
    %v4269 = vpop.f32.mrb[0].mxu0
    %v4270 = vadd.f32 %v2966, %v4269
    %v4271 = vpop.f32.mrb[0].mxu0
    %v4272 = vpop.f32.mrb[0].mxu0
    %v4273 = vadd.f32 %v2971, %v4272
    %v4274 = vpop.f32.mrb[0].mxu0
    %4275 = vmatprep.mubr.bf16.mxu0 %v3850
    %4276 = vmatmul.mubr.bf16.gmra.mrb[0].mxu0 %v3849
    %v4277 = vpop.f32.mrb[0].mxu0
    %v4278 = vadd.f32 %v2976, %v4277
    %v4279 = vpop.f32.mrb[0].mxu0
    %v4280 = vpop.f32.mrb[0].mxu0
    %v4281 = vadd.f32 %v2981, %v4280
    %v4282 = vpop.f32.mrb[0].mxu0
    %4283 = vmatprep.mubr.bf16.mxu0 %v3856
    %4284 = vmatmul.mubr.bf16.gmra.mrb[0].mxu0 %v3855
    %v4285 = vpop.f32.mrb[0].mxu0
    %v4286 = vadd.f32 %v2986, %v4285
    %v4287 = vpop.f32.mrb[0].mxu0
    %v4288 = vpop.f32.mrb[0].mxu0
    %v4289 = vadd.f32 %v2991, %v4288
    %v4290 = vpop.f32.mrb[0].mxu0
    %4291 = vmatprep.mubr.bf16.mxu0 %v3862
    %4292 = vmatmul.mubr.bf16.gmra.mrb[0].mxu0 %v3861
    %v4293 = vpop.f32.mrb[0].mxu0
    %v4294 = vadd.f32 %v2996, %v4293
    %v4295 = vpop.f32.mrb[0].mxu0
    %v4296 = vpop.f32.mrb[0].mxu0
    %v4297 = vadd.f32 %v3001, %v4296
    %v4298 = vpop.f32.mrb[0].mxu0
    %4299 = vmatprep.mubr.bf16.mxu0 %v3868
    %4300 = vmatmul.mubr.bf16.gmra.mrb[0].mxu0 %v3867
    %v4301 = vpop.f32.mrb[0].mxu0
    %v4302 = vadd.f32 %v3006, %v4301
    %v4303 = vpop.f32.mrb[0].mxu0
    %v4304 = vpop.f32.mrb[0].mxu0
    %v4305 = vadd.f32 %v3011, %v4304
    %v4306 = vpop.f32.mrb[0].mxu0
    %4307 = vmatprep.mubr.bf16.mxu0 %v3874
    %4308 = vmatmul.mubr.bf16.gmra.mrb[0].mxu0 %v3873
    %v4309 = vpop.f32.mrb[0].mxu0
    %v4310 = vadd.f32 %v3016, %v4309
    %v4311 = vpop.f32.mrb[0].mxu0
    %v4312 = vpop.f32.mrb[0].mxu0
    %v4313 = vadd.f32 %v3021, %v4312
    %v4314 = vpop.f32.mrb[0].mxu0
    %4315 = vmatprep.mubr.bf16.mxu0 %v3880
    %4316 = vmatmul.mubr.bf16.gmra.mrb[0].mxu0 %v3879
    %v4317 = vpop.f32.mrb[0].mxu0
    %v4318 = vadd.f32 %v3026, %v4317
    %v4319 = vpop.f32.mrb[0].mxu0
    %v4320 = vpop.f32.mrb[0].mxu0
    %v4321 = vadd.f32 %v3031, %v4320
    %v4322 = vpop.f32.mrb[0].mxu0
    %4323 = vmatprep.mubr.bf16.mxu0 %v3886
    %4324 = vmatmul.mubr.bf16.gmra.mrb[0].mxu0 %v3885
    %v4325 = vpop.f32.mrb[0].mxu0
    %v4326 = vadd.f32 %v3036, %v4325
    %v4327 = vpop.f32.mrb[0].mxu0
    %v4328 = vpop.f32.mrb[0].mxu0
    %v4329 = vadd.f32 %v3041, %v4328
    %v4330 = vpop.f32.mrb[0].mxu0
    %4331 = vmatprep.mubr.bf16.mxu0 %v3892
    %4332 = vmatmul.mubr.bf16.gmra.mrb[0].mxu0 %v3891
    %v4333 = vpop.f32.mrb[0].mxu0
    %v4334 = vadd.f32 %v3046, %v4333
    %v4335 = vpop.f32.mrb[0].mxu0
    %v4336 = vpop.f32.mrb[0].mxu0
    %v4337 = vadd.f32 %v3051, %v4336
    %v4338 = vpop.f32.mrb[0].mxu0
    %4339 = vmatprep.mubr.bf16.mxu0 %v3898
    %4340 = vmatmul.mubr.bf16.gmra.mrb[0].mxu0 %v3897
    %v4341 = vpop.f32.mrb[0].mxu0
    %v4342 = vadd.f32 %v3056, %v4341
    %v4343 = vpop.f32.mrb[0].mxu0
    %v4344 = vpop.f32.mrb[0].mxu0
    %v4345 = vadd.f32 %v3061, %v4344
    %v4346 = vpop.f32.mrb[0].mxu0
    %4347 = vmatprep.mubr.bf16.mxu0 %v3904
    %4348 = vmatmul.mubr.bf16.gmra.mrb[0].mxu0 %v3903
    %v4349 = vpop.f32.mrb[0].mxu0
    %v4350 = vadd.f32 %v3066, %v4349
    %v4351 = vpop.f32.mrb[0].mxu0
    %v4352 = vpop.f32.mrb[0].mxu0
    %v4353 = vadd.f32 %v3071, %v4352
    %v4354 = vpop.f32.mrb[0].mxu0
    %4355 = vmatprep.mubr.bf16.mxu0 %v3910
    %4356 = vmatmul.mubr.bf16.gmra.mrb[0].mxu0 %v3909
    %v4357 = vpop.f32.mrb[0].mxu0
    %v4358 = vadd.f32 %v3076, %v4357
    %v4359 = vpop.f32.mrb[0].mxu0
    %v4360 = vpop.f32.mrb[0].mxu0
    %v4361 = vadd.f32 %v3081, %v4360
    %v4362 = vpop.f32.mrb[0].mxu0
    %4363 = vmatprep.mubr.bf16.mxu0 %v3916
    %4364 = vmatmul.mubr.bf16.gmra.mrb[0].mxu0 %v3915
    %v4365 = vpop.f32.mrb[0].mxu0
    %v4366 = vadd.f32 %v3086, %v4365
    %v4367 = vpop.f32.mrb[0].mxu0
    %v4368 = vpop.f32.mrb[0].mxu0
    %v4369 = vadd.f32 %v3091, %v4368
    %v4370 = vpop.f32.mrb[0].mxu0
    %4371 = vmatprep.mubr.bf16.mxu0 %v3922
    %4372 = vmatmul.mubr.bf16.gmra.mrb[0].mxu0 %v3921
    %v4373 = vpop.f32.mrb[0].mxu0
    %v4374 = vadd.f32 %v3096, %v4373
    %v4375 = vpop.f32.mrb[0].mxu0
    %v4376 = vpop.f32.mrb[0].mxu0
    %v4377 = vadd.f32 %v3101, %v4376
    %v4378 = vpop.f32.mrb[0].mxu0
    %4379 = vmatprep.mubr.bf16.mxu0 %v3928
    %4380 = vmatmul.mubr.bf16.gmra.mrb[0].mxu0 %v3927
    %v4381 = vpop.f32.mrb[0].mxu0
    %v4382 = vadd.f32 %v3106, %v4381
    %v4383 = vpop.f32.mrb[0].mxu0
    %v4384 = vpop.f32.mrb[0].mxu0
    %v4385 = vadd.f32 %v3111, %v4384
    %v4386 = vpop.f32.mrb[0].mxu0
    %4387 = vmatprep.mubr.bf16.mxu0 %v3934
    %4388 = vmatmul.mubr.bf16.gmra.mrb[0].mxu0 %v3933
    %v4389 = vpop.f32.mrb[0].mxu0
    %v4390 = vadd.f32 %v3116, %v4389
    %v4391 = vpop.f32.mrb[0].mxu0
    %v4392 = vpop.f32.mrb[0].mxu0
    %v4393 = vadd.f32 %v3121, %v4392
    %v4394 = vpop.f32.mrb[0].mxu0
    %4395 = vmatprep.mubr.bf16.mxu0 %v3940
    %4396 = vmatmul.mubr.bf16.gmra.mrb[0].mxu0 %v3939
    %v4397 = vpop.f32.mrb[0].mxu0
    %v4398 = vadd.f32 %v3126, %v4397
    %v4399 = vpop.f32.mrb[0].mxu0
    %v4400 = vpop.f32.mrb[0].mxu0
    %v4401 = vadd.f32 %v3131, %v4400
    %v4402 = vpop.f32.mrb[0].mxu0
    %4403 = vmatprep.mubr.bf16.mxu0 %v3946
    %4404 = vmatmul.mubr.bf16.gmra.mrb[0].mxu0 %v3945
    %v4405 = vpop.f32.mrb[0].mxu0
    %v4406 = vadd.f32 %v3136, %v4405
    %v4407 = vpop.f32.mrb[0].mxu0
    %v4408 = vpop.f32.mrb[0].mxu0
    %v4409 = vadd.f32 %v3141, %v4408
    %v4410 = vpop.f32.mrb[0].mxu0
    %4411 = vmatprep.mubr.bf16.mxu0 %v3952
    %4412 = vmatmul.mubr.bf16.gmra.mrb[0].mxu0 %v3951
    %v4413 = vpop.f32.mrb[0].mxu0
    %v4414 = vadd.f32 %v3146, %v4413
    %v4415 = vpop.f32.mrb[0].mxu0
    %v4416 = vpop.f32.mrb[0].mxu0
    %v4417 = vadd.f32 %v3151, %v4416
    %v4418 = vpop.f32.mrb[0].mxu0
    %4419 = vmatprep.mubr.bf16.mxu0 %v3958
    %4420 = vmatmul.mubr.bf16.gmra.mrb[0].mxu0 %v3957
    %v4421 = vpop.f32.mrb[0].mxu0
    %v4422 = vadd.f32 %v3156, %v4421
    %v4423 = vpop.f32.mrb[0].mxu0
    %v4424 = vpop.f32.mrb[0].mxu0
    %v4425 = vadd.f32 %v3161, %v4424
    %v4426 = vpop.f32.mrb[0].mxu0
    %4427 = vmatprep.mubr.bf16.mxu0 %v3964
    %4428 = vmatmul.mubr.bf16.gmra.mrb[0].mxu0 %v3963
    %v4429 = vpop.f32.mrb[0].mxu0
    %v4430 = vadd.f32 %v3166, %v4429
    %v4431 = vpop.f32.mrb[0].mxu0
    %v4432 = vpop.f32.mrb[0].mxu0
    %v4433 = vadd.f32 %v3171, %v4432
    %v4434 = vpop.f32.mrb[0].mxu0
    %4435 = vmatprep.mubr.bf16.mxu0 %v3970
    %4436 = vmatmul.mubr.bf16.gmra.mrb[0].mxu0 %v3969
    %v4437 = vpop.f32.mrb[0].mxu0
    %v4438 = vadd.f32 %v3176, %v4437
    %v4439 = vpop.f32.mrb[0].mxu0
    %v4440 = vpop.f32.mrb[0].mxu0
    %v4441 = vadd.f32 %v3181, %v4440
    %v4442 = vpop.f32.mrb[0].mxu0
    %4443 = vmatprep.mubr.bf16.mxu0 %v3976
    %4444 = vmatmul.mubr.bf16.gmra.mrb[0].mxu0 %v3975
    %v4445 = vpop.f32.mrb[0].mxu0
    %v4446 = vadd.f32 %v3186, %v4445
    %v4447 = vpop.f32.mrb[0].mxu0
    %v4448 = vpop.f32.mrb[0].mxu0
    %v4449 = vadd.f32 %v3191, %v4448
    %v4450 = vpop.f32.mrb[0].mxu0
    %4451 = vmatprep.mubr.bf16.mxu0 %v3982
    %4452 = vmatmul.mubr.bf16.gmra.mrb[0].mxu0 %v3981
    %v4453 = vpop.f32.mrb[0].mxu0
    %v4454 = vadd.f32 %v3196, %v4453
    %v4455 = vpop.f32.mrb[0].mxu0
    %v4456 = vpop.f32.mrb[0].mxu0
    %v4457 = vadd.f32 %v3201, %v4456
    %v4458 = vpop.f32.mrb[0].mxu0
    %4459 = vmatprep.mubr.bf16.mxu0 %v3988
    %4460 = vmatmul.mubr.bf16.gmra.mrb[0].mxu0 %v3987
    %v4461 = vpop.f32.mrb[0].mxu0
    %v4462 = vadd.f32 %v3206, %v4461
    %v4463 = vpop.f32.mrb[0].mxu0
    %v4464 = vpop.f32.mrb[0].mxu0
    %v4465 = vadd.f32 %v3211, %v4464
    %v4466 = vpop.f32.mrb[0].mxu0
    %4467 = vmatprep.mubr.bf16.mxu0 %v3994
    %4468 = vmatmul.mubr.bf16.gmra.mrb[0].mxu0 %v3993
    %v4469 = vpop.f32.mrb[0].mxu0
    %v4470 = vadd.f32 %v3216, %v4469
    %v4471 = vpop.f32.mrb[0].mxu0
    %v4472 = vpop.f32.mrb[0].mxu0
    %v4473 = vadd.f32 %v3221, %v4472
    %v4474 = vpop.f32.mrb[0].mxu0
    %4475 = vmatprep.mubr.bf16.mxu0 %v4000
    %4476 = vmatmul.mubr.bf16.gmra.mrb[0].mxu0 %v3999
    %v4477 = vpop.f32.mrb[0].mxu0
    %v4478 = vadd.f32 %v3226, %v4477
    %v4479 = vpop.f32.mrb[0].mxu0
    %v4480 = vpop.f32.mrb[0].mxu0
    %v4481 = vadd.f32 %v3231, %v4480
    %v4482 = vpop.f32.mrb[0].mxu0
    %4483 = vmatprep.mubr.bf16.mxu0 %v4006
    %4484 = vmatmul.mubr.bf16.gmra.mrb[0].mxu0 %v4005
    %v4485 = vpop.f32.mrb[0].mxu0
    %v4486 = vadd.f32 %v3236, %v4485
    %v4487 = vpop.f32.mrb[0].mxu0
    %v4488 = vpop.f32.mrb[0].mxu0
    %v4489 = vadd.f32 %v3241, %v4488
    %v4490 = vpop.f32.mrb[0].mxu0
    %4491 = vdwg.mxu0
    %4492 = vmatprep.subr.bf16.mxu0 0
    %4493 = vmatpush1.bf16.msra.mxu0 %v2827
    %4494 = vmatprep.subr.bf16.mxu0 0
    %4495 = vmatpush1.bf16.msra.mxu0 %v2828
    %4496 = vmatprep.subr.bf16.mxu0 0
    %4497 = vmatpush1.bf16.msra.mxu0 %v2829
    %4498 = vmatprep.subr.bf16.mxu0 0
    %4499 = vmatpush1.bf16.msra.mxu0 %v2830
    %4500 = vmatprep.subr.bf16.mxu0 0
    %4501 = vmatpush1.bf16.msra.mxu0 %v2831
    %4502 = vmatprep.subr.bf16.mxu0 0
    %4503 = vmatpush1.bf16.msra.mxu0 %v2832
    %4504 = vmatprep.subr.bf16.mxu0 0
    %4505 = vmatpush1.bf16.msra.mxu0 %v2833
    %4506 = vmatprep.subr.bf16.mxu0 0
    %4507 = vmatpush1.bf16.msra.mxu0 %v2834
    %4508 = vmatprep.subr.bf16.mxu0 0
    %4509 = vmatpush1.bf16.msra.mxu0 %v2835
    %4510 = vmatprep.subr.bf16.mxu0 0
    %4511 = vmatpush1.bf16.msra.mxu0 %v2836
    %4512 = vmatprep.subr.bf16.mxu0 0
    %4513 = vmatpush1.bf16.msra.mxu0 %v2837
    %4514 = vmatprep.subr.bf16.mxu0 0
    %4515 = vmatpush1.bf16.msra.mxu0 %v2838
    %4516 = vmatprep.subr.bf16.mxu0 0
    %4517 = vmatpush1.bf16.msra.mxu0 %v2839
    %4518 = vmatprep.subr.bf16.mxu0 0
    %4519 = vmatpush1.bf16.msra.mxu0 %v2840
    %4520 = vmatprep.subr.bf16.mxu0 0
    %4521 = vmatpush1.bf16.msra.mxu0 %v2841
    %4522 = vmatprep.subr.bf16.mxu0 0
    %4523 = vmatpush1.bf16.msra.mxu0 %v2842
    %4524 = vmatprep.mubr.bf16.mxu0 %v3822
    %4525 = vmatmul.mubr.bf16.gmra.mrb[0].mxu0 %v3821
    %v4526 = vpop.f32.mrb[0].mxu0
    %v4527 = vadd.f32 %v4238, %v4526
    %v4528 = vpop.f32.mrb[0].mxu0
    %v4529 = vpop.f32.mrb[0].mxu0
    %v4530 = vadd.f32 %v4241, %v4529
    %v4531 = vpop.f32.mrb[0].mxu0
    %4532 = vmatprep.mubr.bf16.mxu0 %v3828
    %4533 = vmatmul.mubr.bf16.gmra.mrb[0].mxu0 %v3827
    %v4534 = vpop.f32.mrb[0].mxu0
    %v4535 = vadd.f32 %v4246, %v4534
    %v4536 = vpop.f32.mrb[0].mxu0
    %v4537 = vpop.f32.mrb[0].mxu0
    %v4538 = vadd.f32 %v4249, %v4537
    %v4539 = vpop.f32.mrb[0].mxu0
    %4540 = vmatprep.mubr.bf16.mxu0 %v3834
    %4541 = vmatmul.mubr.bf16.gmra.mrb[0].mxu0 %v3833
    %v4542 = vpop.f32.mrb[0].mxu0
    %v4543 = vadd.f32 %v4254, %v4542
    %v4544 = vpop.f32.mrb[0].mxu0
    %v4545 = vpop.f32.mrb[0].mxu0
    %v4546 = vadd.f32 %v4257, %v4545
    %v4547 = vpop.f32.mrb[0].mxu0
    %4548 = vmatprep.mubr.bf16.mxu0 %v3840
    %4549 = vmatmul.mubr.bf16.gmra.mrb[0].mxu0 %v3839
    %v4550 = vpop.f32.mrb[0].mxu0
    %v4551 = vadd.f32 %v4262, %v4550
    %v4552 = vpop.f32.mrb[0].mxu0
    %v4553 = vpop.f32.mrb[0].mxu0
    %v4554 = vadd.f32 %v4265, %v4553
    %v4555 = vpop.f32.mrb[0].mxu0
    %4556 = vmatprep.mubr.bf16.mxu0 %v3846
    %4557 = vmatmul.mubr.bf16.gmra.mrb[0].mxu0 %v3845
    %v4558 = vpop.f32.mrb[0].mxu0
    %v4559 = vadd.f32 %v4270, %v4558
    %v4560 = vpop.f32.mrb[0].mxu0
    %v4561 = vpop.f32.mrb[0].mxu0
    %v4562 = vadd.f32 %v4273, %v4561
    %v4563 = vpop.f32.mrb[0].mxu0
    %4564 = vmatprep.mubr.bf16.mxu0 %v3852
    %4565 = vmatmul.mubr.bf16.gmra.mrb[0].mxu0 %v3851
    %v4566 = vpop.f32.mrb[0].mxu0
    %v4567 = vadd.f32 %v4278, %v4566
    %v4568 = vpop.f32.mrb[0].mxu0
    %v4569 = vpop.f32.mrb[0].mxu0
    %v4570 = vadd.f32 %v4281, %v4569
    %v4571 = vpop.f32.mrb[0].mxu0
    %4572 = vmatprep.mubr.bf16.mxu0 %v3858
    %4573 = vmatmul.mubr.bf16.gmra.mrb[0].mxu0 %v3857
    %v4574 = vpop.f32.mrb[0].mxu0
    %v4575 = vadd.f32 %v4286, %v4574
    %v4576 = vpop.f32.mrb[0].mxu0
    %v4577 = vpop.f32.mrb[0].mxu0
    %v4578 = vadd.f32 %v4289, %v4577
    %v4579 = vpop.f32.mrb[0].mxu0
    %4580 = vmatprep.mubr.bf16.mxu0 %v3864
    %4581 = vmatmul.mubr.bf16.gmra.mrb[0].mxu0 %v3863
    %v4582 = vpop.f32.mrb[0].mxu0
    %v4583 = vadd.f32 %v4294, %v4582
    %v4584 = vpop.f32.mrb[0].mxu0
    %v4585 = vpop.f32.mrb[0].mxu0
    %v4586 = vadd.f32 %v4297, %v4585
    %v4587 = vpop.f32.mrb[0].mxu0
    %4588 = vmatprep.mubr.bf16.mxu0 %v3870
    %4589 = vmatmul.mubr.bf16.gmra.mrb[0].mxu0 %v3869
    %v4590 = vpop.f32.mrb[0].mxu0
    %v4591 = vadd.f32 %v4302, %v4590
    %v4592 = vpop.f32.mrb[0].mxu0
    %v4593 = vpop.f32.mrb[0].mxu0
    %v4594 = vadd.f32 %v4305, %v4593
    %v4595 = vpop.f32.mrb[0].mxu0
    %4596 = vmatprep.mubr.bf16.mxu0 %v3876
    %4597 = vmatmul.mubr.bf16.gmra.mrb[0].mxu0 %v3875
    %v4598 = vpop.f32.mrb[0].mxu0
    %v4599 = vadd.f32 %v4310, %v4598
    %v4600 = vpop.f32.mrb[0].mxu0
    %v4601 = vpop.f32.mrb[0].mxu0
    %v4602 = vadd.f32 %v4313, %v4601
    %v4603 = vpop.f32.mrb[0].mxu0
    %4604 = vmatprep.mubr.bf16.mxu0 %v3882
    %4605 = vmatmul.mubr.bf16.gmra.mrb[0].mxu0 %v3881
    %v4606 = vpop.f32.mrb[0].mxu0
    %v4607 = vadd.f32 %v4318, %v4606
    %v4608 = vpop.f32.mrb[0].mxu0
    %v4609 = vpop.f32.mrb[0].mxu0
    %v4610 = vadd.f32 %v4321, %v4609
    %v4611 = vpop.f32.mrb[0].mxu0
    %4612 = vmatprep.mubr.bf16.mxu0 %v3888
    %4613 = vmatmul.mubr.bf16.gmra.mrb[0].mxu0 %v3887
    %v4614 = vpop.f32.mrb[0].mxu0
    %v4615 = vadd.f32 %v4326, %v4614
    %v4616 = vpop.f32.mrb[0].mxu0
    %v4617 = vpop.f32.mrb[0].mxu0
    %v4618 = vadd.f32 %v4329, %v4617
    %v4619 = vpop.f32.mrb[0].mxu0
    %4620 = vmatprep.mubr.bf16.mxu0 %v3894
    %4621 = vmatmul.mubr.bf16.gmra.mrb[0].mxu0 %v3893
    %v4622 = vpop.f32.mrb[0].mxu0
    %v4623 = vadd.f32 %v4334, %v4622
    %v4624 = vpop.f32.mrb[0].mxu0
    %v4625 = vpop.f32.mrb[0].mxu0
    %v4626 = vadd.f32 %v4337, %v4625
    %v4627 = vpop.f32.mrb[0].mxu0
    %4628 = vmatprep.mubr.bf16.mxu0 %v3900
    %4629 = vmatmul.mubr.bf16.gmra.mrb[0].mxu0 %v3899
    %v4630 = vpop.f32.mrb[0].mxu0
    %v4631 = vadd.f32 %v4342, %v4630
    %v4632 = vpop.f32.mrb[0].mxu0
    %v4633 = vpop.f32.mrb[0].mxu0
    %v4634 = vadd.f32 %v4345, %v4633
    %v4635 = vpop.f32.mrb[0].mxu0
    %4636 = vmatprep.mubr.bf16.mxu0 %v3906
    %4637 = vmatmul.mubr.bf16.gmra.mrb[0].mxu0 %v3905
    %v4638 = vpop.f32.mrb[0].mxu0
    %v4639 = vadd.f32 %v4350, %v4638
    %v4640 = vpop.f32.mrb[0].mxu0
    %v4641 = vpop.f32.mrb[0].mxu0
    %v4642 = vadd.f32 %v4353, %v4641
    %v4643 = vpop.f32.mrb[0].mxu0
    %4644 = vmatprep.mubr.bf16.mxu0 %v3912
    %4645 = vmatmul.mubr.bf16.gmra.mrb[0].mxu0 %v3911
    %v4646 = vpop.f32.mrb[0].mxu0
    %v4647 = vadd.f32 %v4358, %v4646
    %v4648 = vpop.f32.mrb[0].mxu0
    %v4649 = vpop.f32.mrb[0].mxu0
    %v4650 = vadd.f32 %v4361, %v4649
    %v4651 = vpop.f32.mrb[0].mxu0
    %4652 = vmatprep.mubr.bf16.mxu0 %v3918
    %4653 = vmatmul.mubr.bf16.gmra.mrb[0].mxu0 %v3917
    %v4654 = vpop.f32.mrb[0].mxu0
    %v4655 = vadd.f32 %v4366, %v4654
    %v4656 = vpop.f32.mrb[0].mxu0
    %v4657 = vpop.f32.mrb[0].mxu0
    %v4658 = vadd.f32 %v4369, %v4657
    %v4659 = vpop.f32.mrb[0].mxu0
    %4660 = vmatprep.mubr.bf16.mxu0 %v3924
    %4661 = vmatmul.mubr.bf16.gmra.mrb[0].mxu0 %v3923
    %v4662 = vpop.f32.mrb[0].mxu0
    %v4663 = vadd.f32 %v4374, %v4662
    %v4664 = vpop.f32.mrb[0].mxu0
    %v4665 = vpop.f32.mrb[0].mxu0
    %v4666 = vadd.f32 %v4377, %v4665
    %v4667 = vpop.f32.mrb[0].mxu0
    %4668 = vmatprep.mubr.bf16.mxu0 %v3930
    %4669 = vmatmul.mubr.bf16.gmra.mrb[0].mxu0 %v3929
    %v4670 = vpop.f32.mrb[0].mxu0
    %v4671 = vadd.f32 %v4382, %v4670
    %v4672 = vpop.f32.mrb[0].mxu0
    %v4673 = vpop.f32.mrb[0].mxu0
    %v4674 = vadd.f32 %v4385, %v4673
    %v4675 = vpop.f32.mrb[0].mxu0
    %4676 = vmatprep.mubr.bf16.mxu0 %v3936
    %4677 = vmatmul.mubr.bf16.gmra.mrb[0].mxu0 %v3935
    %v4678 = vpop.f32.mrb[0].mxu0
    %v4679 = vadd.f32 %v4390, %v4678
    %v4680 = vpop.f32.mrb[0].mxu0
    %v4681 = vpop.f32.mrb[0].mxu0
    %v4682 = vadd.f32 %v4393, %v4681
    %v4683 = vpop.f32.mrb[0].mxu0
    %4684 = vmatprep.mubr.bf16.mxu0 %v3942
    %4685 = vmatmul.mubr.bf16.gmra.mrb[0].mxu0 %v3941
    %v4686 = vpop.f32.mrb[0].mxu0
    %v4687 = vadd.f32 %v4398, %v4686
    %v4688 = vpop.f32.mrb[0].mxu0
    %v4689 = vpop.f32.mrb[0].mxu0
    %v4690 = vadd.f32 %v4401, %v4689
    %v4691 = vpop.f32.mrb[0].mxu0
    %4692 = vmatprep.mubr.bf16.mxu0 %v3948
    %4693 = vmatmul.mubr.bf16.gmra.mrb[0].mxu0 %v3947
    %v4694 = vpop.f32.mrb[0].mxu0
    %v4695 = vadd.f32 %v4406, %v4694
    %v4696 = vpop.f32.mrb[0].mxu0
    %v4697 = vpop.f32.mrb[0].mxu0
    %v4698 = vadd.f32 %v4409, %v4697
    %v4699 = vpop.f32.mrb[0].mxu0
    %4700 = vmatprep.mubr.bf16.mxu0 %v3954
    %4701 = vmatmul.mubr.bf16.gmra.mrb[0].mxu0 %v3953
    %v4702 = vpop.f32.mrb[0].mxu0
    %v4703 = vadd.f32 %v4414, %v4702
    %v4704 = vpop.f32.mrb[0].mxu0
    %v4705 = vpop.f32.mrb[0].mxu0
    %v4706 = vadd.f32 %v4417, %v4705
    %v4707 = vpop.f32.mrb[0].mxu0
    %4708 = vmatprep.mubr.bf16.mxu0 %v3960
    %4709 = vmatmul.mubr.bf16.gmra.mrb[0].mxu0 %v3959
    %v4710 = vpop.f32.mrb[0].mxu0
    %v4711 = vadd.f32 %v4422, %v4710
    %v4712 = vpop.f32.mrb[0].mxu0
    %v4713 = vpop.f32.mrb[0].mxu0
    %v4714 = vadd.f32 %v4425, %v4713
    %v4715 = vpop.f32.mrb[0].mxu0
    %4716 = vmatprep.mubr.bf16.mxu0 %v3966
    %4717 = vmatmul.mubr.bf16.gmra.mrb[0].mxu0 %v3965
    %v4718 = vpop.f32.mrb[0].mxu0
    %v4719 = vadd.f32 %v4430, %v4718
    %v4720 = vpop.f32.mrb[0].mxu0
    %v4721 = vpop.f32.mrb[0].mxu0
    %v4722 = vadd.f32 %v4433, %v4721
    %v4723 = vpop.f32.mrb[0].mxu0
    %4724 = vmatprep.mubr.bf16.mxu0 %v3972
    %4725 = vmatmul.mubr.bf16.gmra.mrb[0].mxu0 %v3971
    %v4726 = vpop.f32.mrb[0].mxu0
    %v4727 = vadd.f32 %v4438, %v4726
    %v4728 = vpop.f32.mrb[0].mxu0
    %v4729 = vpop.f32.mrb[0].mxu0
    %v4730 = vadd.f32 %v4441, %v4729
    %v4731 = vpop.f32.mrb[0].mxu0
    %4732 = vmatprep.mubr.bf16.mxu0 %v3978
    %4733 = vmatmul.mubr.bf16.gmra.mrb[0].mxu0 %v3977
    %v4734 = vpop.f32.mrb[0].mxu0
    %v4735 = vadd.f32 %v4446, %v4734
    %v4736 = vpop.f32.mrb[0].mxu0
    %v4737 = vpop.f32.mrb[0].mxu0
    %v4738 = vadd.f32 %v4449, %v4737
    %v4739 = vpop.f32.mrb[0].mxu0
    %4740 = vmatprep.mubr.bf16.mxu0 %v3984
    %4741 = vmatmul.mubr.bf16.gmra.mrb[0].mxu0 %v3983
    %v4742 = vpop.f32.mrb[0].mxu0
    %v4743 = vadd.f32 %v4454, %v4742
    %v4744 = vpop.f32.mrb[0].mxu0
    %v4745 = vpop.f32.mrb[0].mxu0
    %v4746 = vadd.f32 %v4457, %v4745
    %v4747 = vpop.f32.mrb[0].mxu0
    %4748 = vmatprep.mubr.bf16.mxu0 %v3990
    %4749 = vmatmul.mubr.bf16.gmra.mrb[0].mxu0 %v3989
    %v4750 = vpop.f32.mrb[0].mxu0
    %v4751 = vadd.f32 %v4462, %v4750
    %v4752 = vpop.f32.mrb[0].mxu0
    %v4753 = vpop.f32.mrb[0].mxu0
    %v4754 = vadd.f32 %v4465, %v4753
    %v4755 = vpop.f32.mrb[0].mxu0
    %4756 = vmatprep.mubr.bf16.mxu0 %v3996
    %4757 = vmatmul.mubr.bf16.gmra.mrb[0].mxu0 %v3995
    %v4758 = vpop.f32.mrb[0].mxu0
    %v4759 = vadd.f32 %v4470, %v4758
    %v4760 = vpop.f32.mrb[0].mxu0
    %v4761 = vpop.f32.mrb[0].mxu0
    %v4762 = vadd.f32 %v4473, %v4761
    %v4763 = vpop.f32.mrb[0].mxu0
    %4764 = vmatprep.mubr.bf16.mxu0 %v4002
    %4765 = vmatmul.mubr.bf16.gmra.mrb[0].mxu0 %v4001
    %v4766 = vpop.f32.mrb[0].mxu0
    %v4767 = vadd.f32 %v4478, %v4766
    %v4768 = vpop.f32.mrb[0].mxu0
    %v4769 = vpop.f32.mrb[0].mxu0
    %v4770 = vadd.f32 %v4481, %v4769
    %v4771 = vpop.f32.mrb[0].mxu0
    %4772 = vmatprep.mubr.bf16.mxu0 %v4008
    %4773 = vmatmul.mubr.bf16.gmra.mrb[0].mxu0 %v4007
    %v4774 = vpop.f32.mrb[0].mxu0
    %v4775 = vadd.f32 %v4486, %v4774
    %v4776 = vpop.f32.mrb[0].mxu0
    %v4777 = vpop.f32.mrb[0].mxu0
    %v4778 = vadd.f32 %v4489, %v4777
    %v4779 = vpop.f32.mrb[0].mxu0
    %4780 = vdwg.mxu0
    %4781 = vmatprep.subr.bf16.mxu0 0
    %4782 = vmatpush1.bf16.msra.mxu0 %v2843
    %4783 = vmatprep.subr.bf16.mxu0 0
    %4784 = vmatpush1.bf16.msra.mxu0 %v2844
    %4785 = vmatprep.subr.bf16.mxu0 0
    %4786 = vmatpush1.bf16.msra.mxu0 %v2845
    %4787 = vmatprep.subr.bf16.mxu0 0
    %4788 = vmatpush1.bf16.msra.mxu0 %v2846
    %4789 = vmatprep.subr.bf16.mxu0 0
    %4790 = vmatpush1.bf16.msra.mxu0 %v2847
    %4791 = vmatprep.subr.bf16.mxu0 0
    %4792 = vmatpush1.bf16.msra.mxu0 %v2848
    %4793 = vmatprep.subr.bf16.mxu0 0
    %4794 = vmatpush1.bf16.msra.mxu0 %v2849
    %4795 = vmatprep.subr.bf16.mxu0 0
    %4796 = vmatpush1.bf16.msra.mxu0 %v2850
    %4797 = vmatprep.subr.bf16.mxu0 0
    %4798 = vmatpush1.bf16.msra.mxu0 %v2851
    %4799 = vmatprep.subr.bf16.mxu0 0
    %4800 = vmatpush1.bf16.msra.mxu0 %v2852
    %4801 = vmatprep.subr.bf16.mxu0 0
    %4802 = vmatpush1.bf16.msra.mxu0 %v2853
    %4803 = vmatprep.subr.bf16.mxu0 0
    %4804 = vmatpush1.bf16.msra.mxu0 %v2854
    %4805 = vmatprep.subr.bf16.mxu0 0
    %4806 = vmatpush1.bf16.msra.mxu0 %v2855
    %4807 = vmatprep.subr.bf16.mxu0 0
    %4808 = vmatpush1.bf16.msra.mxu0 %v2856
    %4809 = vmatprep.subr.bf16.mxu0 0
    %4810 = vmatpush1.bf16.msra.mxu0 %v2857
    %4811 = vmatprep.subr.bf16.mxu0 0
    %4812 = vmatpush1.bf16.msra.mxu0 %v2858
    %4813 = vmatprep.mubr.bf16.mxu0 %v3824
    %4814 = vmatmul.mubr.bf16.gmra.mrb[0].mxu0 %v3823
    %v4815 = vpop.f32.mrb[0].mxu0
    %v4816 = vadd.f32 %v4527, %v4815
    %v4817 = vpop.f32.mrb[0].mxu0
    %v4818 = vpop.f32.mrb[0].mxu0
    %v4819 = vadd.f32 %v4530, %v4818
    %v4820 = vpop.f32.mrb[0].mxu0
    %4821 = vmatprep.mubr.bf16.mxu0 %v3830
    %4822 = vmatmul.mubr.bf16.gmra.mrb[0].mxu0 %v3829
    %v4823 = vpop.f32.mrb[0].mxu0
    %v4824 = vadd.f32 %v4535, %v4823
    %v4825 = vpop.f32.mrb[0].mxu0
    %v4826 = vpop.f32.mrb[0].mxu0
    %v4827 = vadd.f32 %v4538, %v4826
    %v4828 = vpop.f32.mrb[0].mxu0
    %4829 = vmatprep.mubr.bf16.mxu0 %v3836
    %4830 = vmatmul.mubr.bf16.gmra.mrb[0].mxu0 %v3835
    %v4831 = vpop.f32.mrb[0].mxu0
    %v4832 = vadd.f32 %v4543, %v4831
    %v4833 = vpop.f32.mrb[0].mxu0
    %v4834 = vpop.f32.mrb[0].mxu0
    %v4835 = vadd.f32 %v4546, %v4834
    %v4836 = vpop.f32.mrb[0].mxu0
    %4837 = vmatprep.mubr.bf16.mxu0 %v3842
    %4838 = vmatmul.mubr.bf16.gmra.mrb[0].mxu0 %v3841
    %v4839 = vpop.f32.mrb[0].mxu0
    %v4840 = vadd.f32 %v4551, %v4839
    %v4841 = vpop.f32.mrb[0].mxu0
    %v4842 = vpop.f32.mrb[0].mxu0
    %v4843 = vadd.f32 %v4554, %v4842
    %v4844 = vpop.f32.mrb[0].mxu0
    %4845 = vmatprep.mubr.bf16.mxu0 %v3848
    %4846 = vmatmul.mubr.bf16.gmra.mrb[0].mxu0 %v3847
    %v4847 = vpop.f32.mrb[0].mxu0
    %v4848 = vadd.f32 %v4559, %v4847
    %v4849 = vpop.f32.mrb[0].mxu0
    %v4850 = vpop.f32.mrb[0].mxu0
    %v4851 = vadd.f32 %v4562, %v4850
    %v4852 = vpop.f32.mrb[0].mxu0
    %4853 = vmatprep.mubr.bf16.mxu0 %v3854
    %4854 = vmatmul.mubr.bf16.gmra.mrb[0].mxu0 %v3853
    %v4855 = vpop.f32.mrb[0].mxu0
    %v4856 = vadd.f32 %v4567, %v4855
    %v4857 = vpop.f32.mrb[0].mxu0
    %v4858 = vpop.f32.mrb[0].mxu0
    %v4859 = vadd.f32 %v4570, %v4858
    %v4860 = vpop.f32.mrb[0].mxu0
    %4861 = vmatprep.mubr.bf16.mxu0 %v3860
    %4862 = vmatmul.mubr.bf16.gmra.mrb[0].mxu0 %v3859
    %v4863 = vpop.f32.mrb[0].mxu0
    %v4864 = vadd.f32 %v4575, %v4863
    %v4865 = vpop.f32.mrb[0].mxu0
    %v4866 = vpop.f32.mrb[0].mxu0
    %v4867 = vadd.f32 %v4578, %v4866
    %v4868 = vpop.f32.mrb[0].mxu0
    %4869 = vmatprep.mubr.bf16.mxu0 %v3866
    %4870 = vmatmul.mubr.bf16.gmra.mrb[0].mxu0 %v3865
    %v4871 = vpop.f32.mrb[0].mxu0
    %v4872 = vadd.f32 %v4583, %v4871
    %v4873 = vpop.f32.mrb[0].mxu0
    %v4874 = vpop.f32.mrb[0].mxu0
    %v4875 = vadd.f32 %v4586, %v4874
    %v4876 = vpop.f32.mrb[0].mxu0
    %4877 = vmatprep.mubr.bf16.mxu0 %v3872
    %4878 = vmatmul.mubr.bf16.gmra.mrb[0].mxu0 %v3871
    %v4879 = vpop.f32.mrb[0].mxu0
    %v4880 = vadd.f32 %v4591, %v4879
    %v4881 = vpop.f32.mrb[0].mxu0
    %v4882 = vpop.f32.mrb[0].mxu0
    %v4883 = vadd.f32 %v4594, %v4882
    %v4884 = vpop.f32.mrb[0].mxu0
    %4885 = vmatprep.mubr.bf16.mxu0 %v3878
    %4886 = vmatmul.mubr.bf16.gmra.mrb[0].mxu0 %v3877
    %v4887 = vpop.f32.mrb[0].mxu0
    %v4888 = vadd.f32 %v4599, %v4887
    %v4889 = vpop.f32.mrb[0].mxu0
    %v4890 = vpop.f32.mrb[0].mxu0
    %v4891 = vadd.f32 %v4602, %v4890
    %v4892 = vpop.f32.mrb[0].mxu0
    %4893 = vmatprep.mubr.bf16.mxu0 %v3884
    %4894 = vmatmul.mubr.bf16.gmra.mrb[0].mxu0 %v3883
    %v4895 = vpop.f32.mrb[0].mxu0
    %v4896 = vadd.f32 %v4607, %v4895
    %v4897 = vpop.f32.mrb[0].mxu0
    %v4898 = vpop.f32.mrb[0].mxu0
    %v4899 = vadd.f32 %v4610, %v4898
    %v4900 = vpop.f32.mrb[0].mxu0
    %4901 = vmatprep.mubr.bf16.mxu0 %v3890
    %4902 = vmatmul.mubr.bf16.gmra.mrb[0].mxu0 %v3889
    %v4903 = vpop.f32.mrb[0].mxu0
    %v4904 = vadd.f32 %v4615, %v4903
    %v4905 = vpop.f32.mrb[0].mxu0
    %v4906 = vpop.f32.mrb[0].mxu0
    %v4907 = vadd.f32 %v4618, %v4906
    %v4908 = vpop.f32.mrb[0].mxu0
    %4909 = vmatprep.mubr.bf16.mxu0 %v3896
    %4910 = vmatmul.mubr.bf16.gmra.mrb[0].mxu0 %v3895
    %v4911 = vpop.f32.mrb[0].mxu0
    %v4912 = vadd.f32 %v4623, %v4911
    %v4913 = vpop.f32.mrb[0].mxu0
    %v4914 = vpop.f32.mrb[0].mxu0
    %v4915 = vadd.f32 %v4626, %v4914
    %v4916 = vpop.f32.mrb[0].mxu0
    %4917 = vmatprep.mubr.bf16.mxu0 %v3902
    %4918 = vmatmul.mubr.bf16.gmra.mrb[0].mxu0 %v3901
    %v4919 = vpop.f32.mrb[0].mxu0
    %v4920 = vadd.f32 %v4631, %v4919
    %v4921 = vpop.f32.mrb[0].mxu0
    %v4922 = vpop.f32.mrb[0].mxu0
    %v4923 = vadd.f32 %v4634, %v4922
    %v4924 = vpop.f32.mrb[0].mxu0
    %4925 = vmatprep.mubr.bf16.mxu0 %v3908
    %4926 = vmatmul.mubr.bf16.gmra.mrb[0].mxu0 %v3907
    %v4927 = vpop.f32.mrb[0].mxu0
    %v4928 = vadd.f32 %v4639, %v4927
    %v4929 = vpop.f32.mrb[0].mxu0
    %v4930 = vpop.f32.mrb[0].mxu0
    %v4931 = vadd.f32 %v4642, %v4930
    %v4932 = vpop.f32.mrb[0].mxu0
    %4933 = vmatprep.mubr.bf16.mxu0 %v3914
    %4934 = vmatmul.mubr.bf16.gmra.mrb[0].mxu0 %v3913
    %v4935 = vpop.f32.mrb[0].mxu0
    %v4936 = vadd.f32 %v4647, %v4935
    %v4937 = vpop.f32.mrb[0].mxu0
    %v4938 = vpop.f32.mrb[0].mxu0
    %v4939 = vadd.f32 %v4650, %v4938
    %v4940 = vpop.f32.mrb[0].mxu0
    %4941 = vmatprep.mubr.bf16.mxu0 %v3920
    %4942 = vmatmul.mubr.bf16.gmra.mrb[0].mxu0 %v3919
    %v4943 = vpop.f32.mrb[0].mxu0
    %v4944 = vadd.f32 %v4655, %v4943
    %v4945 = vpop.f32.mrb[0].mxu0
    %v4946 = vpop.f32.mrb[0].mxu0
    %v4947 = vadd.f32 %v4658, %v4946
    %v4948 = vpop.f32.mrb[0].mxu0
    %4949 = vmatprep.mubr.bf16.mxu0 %v3926
    %4950 = vmatmul.mubr.bf16.gmra.mrb[0].mxu0 %v3925
    %v4951 = vpop.f32.mrb[0].mxu0
    %v4952 = vadd.f32 %v4663, %v4951
    %v4953 = vpop.f32.mrb[0].mxu0
    %v4954 = vpop.f32.mrb[0].mxu0
    %v4955 = vadd.f32 %v4666, %v4954
    %v4956 = vpop.f32.mrb[0].mxu0
    %4957 = vmatprep.mubr.bf16.mxu0 %v3932
    %4958 = vmatmul.mubr.bf16.gmra.mrb[0].mxu0 %v3931
    %v4959 = vpop.f32.mrb[0].mxu0
    %v4960 = vadd.f32 %v4671, %v4959
    %v4961 = vpop.f32.mrb[0].mxu0
    %v4962 = vpop.f32.mrb[0].mxu0
    %v4963 = vadd.f32 %v4674, %v4962
    %v4964 = vpop.f32.mrb[0].mxu0
    %4965 = vmatprep.mubr.bf16.mxu0 %v3938
    %4966 = vmatmul.mubr.bf16.gmra.mrb[0].mxu0 %v3937
    %v4967 = vpop.f32.mrb[0].mxu0
    %v4968 = vadd.f32 %v4679, %v4967
    %v4969 = vpop.f32.mrb[0].mxu0
    %v4970 = vpop.f32.mrb[0].mxu0
    %v4971 = vadd.f32 %v4682, %v4970
    %v4972 = vpop.f32.mrb[0].mxu0
    %4973 = vmatprep.mubr.bf16.mxu0 %v3944
    %4974 = vmatmul.mubr.bf16.gmra.mrb[0].mxu0 %v3943
    %v4975 = vpop.f32.mrb[0].mxu0
    %v4976 = vadd.f32 %v4687, %v4975
    %v4977 = vpop.f32.mrb[0].mxu0
    %v4978 = vpop.f32.mrb[0].mxu0
    %v4979 = vadd.f32 %v4690, %v4978
    %v4980 = vpop.f32.mrb[0].mxu0
    %4981 = vmatprep.mubr.bf16.mxu0 %v3950
    %4982 = vmatmul.mubr.bf16.gmra.mrb[0].mxu0 %v3949
    %v4983 = vpop.f32.mrb[0].mxu0
    %v4984 = vadd.f32 %v4695, %v4983
    %v4985 = vpop.f32.mrb[0].mxu0
    %v4986 = vpop.f32.mrb[0].mxu0
    %v4987 = vadd.f32 %v4698, %v4986
    %v4988 = vpop.f32.mrb[0].mxu0
    %4989 = vmatprep.mubr.bf16.mxu0 %v3956
    %4990 = vmatmul.mubr.bf16.gmra.mrb[0].mxu0 %v3955
    %v4991 = vpop.f32.mrb[0].mxu0
    %v4992 = vadd.f32 %v4703, %v4991
    %v4993 = vpop.f32.mrb[0].mxu0
    %v4994 = vpop.f32.mrb[0].mxu0
    %v4995 = vadd.f32 %v4706, %v4994
    %v4996 = vpop.f32.mrb[0].mxu0
    %4997 = vmatprep.mubr.bf16.mxu0 %v3962
    %4998 = vmatmul.mubr.bf16.gmra.mrb[0].mxu0 %v3961
    %v4999 = vpop.f32.mrb[0].mxu0
    %v5000 = vadd.f32 %v4711, %v4999
    %v5001 = vpop.f32.mrb[0].mxu0
    %v5002 = vpop.f32.mrb[0].mxu0
    %v5003 = vadd.f32 %v4714, %v5002
    %v5004 = vpop.f32.mrb[0].mxu0
    %5005 = vmatprep.mubr.bf16.mxu0 %v3968
    %5006 = vmatmul.mubr.bf16.gmra.mrb[0].mxu0 %v3967
    %v5007 = vpop.f32.mrb[0].mxu0
    %v5008 = vadd.f32 %v4719, %v5007
    %v5009 = vpop.f32.mrb[0].mxu0
    %v5010 = vpop.f32.mrb[0].mxu0
    %v5011 = vadd.f32 %v4722, %v5010
    %v5012 = vpop.f32.mrb[0].mxu0
    %5013 = vmatprep.mubr.bf16.mxu0 %v3974
    %5014 = vmatmul.mubr.bf16.gmra.mrb[0].mxu0 %v3973
    %v5015 = vpop.f32.mrb[0].mxu0
    %v5016 = vadd.f32 %v4727, %v5015
    %v5017 = vpop.f32.mrb[0].mxu0
    %v5018 = vpop.f32.mrb[0].mxu0
    %v5019 = vadd.f32 %v4730, %v5018
    %v5020 = vpop.f32.mrb[0].mxu0
    %5021 = vmatprep.mubr.bf16.mxu0 %v3980
    %5022 = vmatmul.mubr.bf16.gmra.mrb[0].mxu0 %v3979
    %v5023 = vpop.f32.mrb[0].mxu0
    %v5024 = vadd.f32 %v4735, %v5023
    %v5025 = vpop.f32.mrb[0].mxu0
    %v5026 = vpop.f32.mrb[0].mxu0
    %v5027 = vadd.f32 %v4738, %v5026
    %v5028 = vpop.f32.mrb[0].mxu0
    %5029 = vmatprep.mubr.bf16.mxu0 %v3986
    %5030 = vmatmul.mubr.bf16.gmra.mrb[0].mxu0 %v3985
    %v5031 = vpop.f32.mrb[0].mxu0
    %v5032 = vadd.f32 %v4743, %v5031
    %v5033 = vpop.f32.mrb[0].mxu0
    %v5034 = vpop.f32.mrb[0].mxu0
    %v5035 = vadd.f32 %v4746, %v5034
    %v5036 = vpop.f32.mrb[0].mxu0
    %5037 = vmatprep.mubr.bf16.mxu0 %v3992
    %5038 = vmatmul.mubr.bf16.gmra.mrb[0].mxu0 %v3991
    %v5039 = vpop.f32.mrb[0].mxu0
    %v5040 = vadd.f32 %v4751, %v5039
    %v5041 = vpop.f32.mrb[0].mxu0
    %v5042 = vpop.f32.mrb[0].mxu0
    %v5043 = vadd.f32 %v4754, %v5042
    %v5044 = vpop.f32.mrb[0].mxu0
    %5045 = vmatprep.mubr.bf16.mxu0 %v3998
    %5046 = vmatmul.mubr.bf16.gmra.mrb[0].mxu0 %v3997
    %v5047 = vpop.f32.mrb[0].mxu0
    %v5048 = vadd.f32 %v4759, %v5047
    %v5049 = vpop.f32.mrb[0].mxu0
    %v5050 = vpop.f32.mrb[0].mxu0
    %v5051 = vadd.f32 %v4762, %v5050
    %v5052 = vpop.f32.mrb[0].mxu0
    %5053 = vmatprep.mubr.bf16.mxu0 %v4004
    %5054 = vmatmul.mubr.bf16.gmra.mrb[0].mxu0 %v4003
    %v5055 = vpop.f32.mrb[0].mxu0
    %v5056 = vadd.f32 %v4767, %v5055
    %v5057 = vpop.f32.mrb[0].mxu0
    %v5058 = vpop.f32.mrb[0].mxu0
    %v5059 = vadd.f32 %v4770, %v5058
    %v5060 = vpop.f32.mrb[0].mxu0
    %5061 = vmatprep.mubr.bf16.mxu0 %v4010
    %5062 = vmatmul.mubr.bf16.gmra.mrb[0].mxu0 %v4009
    %v5063 = vpop.f32.mrb[0].mxu0
    %v5064 = vadd.f32 %v4775, %v5063
    %v5065 = vpop.f32.mrb[0].mxu0
    %v5066 = vpop.f32.mrb[0].mxu0
    %v5067 = vadd.f32 %v4778, %v5066
    %v5068 = vpop.f32.mrb[0].mxu0
    %5069 = vdwg.mxu0
    %v5070 = vmax.f32 %v4816, 0.0
    %v5071 = vmax.f32 %v4819, 0.0
    %v5072 = vmax.f32 %v4824, 0.0
    %v5073 = vmax.f32 %v4827, 0.0
    %v5074 = vmax.f32 %v4832, 0.0
    %v5075 = vmax.f32 %v4835, 0.0
    %v5076 = vmax.f32 %v4840, 0.0
    %v5077 = vmax.f32 %v4843, 0.0
    %v5078 = vmax.f32 %v4848, 0.0
    %v5079 = vmax.f32 %v4851, 0.0
    %v5080 = vmax.f32 %v4856, 0.0
    %v5081 = vmax.f32 %v4859, 0.0
    %v5082 = vmax.f32 %v4864, 0.0
    %v5083 = vmax.f32 %v4867, 0.0
    %v5084 = vmax.f32 %v4872, 0.0
    %v5085 = vmax.f32 %v4875, 0.0
    %v5086 = vmax.f32 %v4880, 0.0
    %v5087 = vmax.f32 %v4883, 0.0
    %v5088 = vmax.f32 %v4888, 0.0
    %v5089 = vmax.f32 %v4891, 0.0
    %v5090 = vmax.f32 %v4896, 0.0
    %v5091 = vmax.f32 %v4899, 0.0
    %v5092 = vmax.f32 %v4904, 0.0
    %v5093 = vmax.f32 %v4907, 0.0
    %v5094 = vmax.f32 %v4912, 0.0
    %v5095 = vmax.f32 %v4915, 0.0
    %v5096 = vmax.f32 %v4920, 0.0
    %v5097 = vmax.f32 %v4923, 0.0
    %v5098 = vmax.f32 %v4928, 0.0
    %v5099 = vmax.f32 %v4931, 0.0
    %v5100 = vmax.f32 %v4936, 0.0
    %v5101 = vmax.f32 %v4939, 0.0
    %v5102 = vmax.f32 %v4944, 0.0
    %v5103 = vmax.f32 %v4947, 0.0
    %v5104 = vmax.f32 %v4952, 0.0
    %v5105 = vmax.f32 %v4955, 0.0
    %v5106 = vmax.f32 %v4960, 0.0
    %v5107 = vmax.f32 %v4963, 0.0
    %v5108 = vmax.f32 %v4968, 0.0
    %v5109 = vmax.f32 %v4971, 0.0
    %v5110 = vmax.f32 %v4976, 0.0
    %v5111 = vmax.f32 %v4979, 0.0
    %v5112 = vmax.f32 %v4984, 0.0
    %v5113 = vmax.f32 %v4987, 0.0
    %v5114 = vmax.f32 %v4992, 0.0
    %v5115 = vmax.f32 %v4995, 0.0
    %v5116 = vmax.f32 %v5000, 0.0
    %v5117 = vmax.f32 %v5003, 0.0
    %v5118 = vmax.f32 %v5008, 0.0
    %v5119 = vmax.f32 %v5011, 0.0
    %v5120 = vmax.f32 %v5016, 0.0
    %v5121 = vmax.f32 %v5019, 0.0
    %v5122 = vmax.f32 %v5024, 0.0
    %v5123 = vmax.f32 %v5027, 0.0
    %v5124 = vmax.f32 %v5032, 0.0
    %v5125 = vmax.f32 %v5035, 0.0
    %v5126 = vmax.f32 %v5040, 0.0
    %v5127 = vmax.f32 %v5043, 0.0
    %v5128 = vmax.f32 %v5048, 0.0
    %v5129 = vmax.f32 %v5051, 0.0
    %v5130 = vmax.f32 %v5056, 0.0
    %v5131 = vmax.f32 %v5059, 0.0
    %v5132 = vmax.f32 %v5064, 0.0
    %v5133 = vmax.f32 %v5067, 0.0
    %v5134 = vld [vmem:[%s7] sm:$0xff]
    %v5135 = vld [vmem:[%s7 + $0x8] sm:$0xff]
    %v5136 = vld [vmem:[%s7 + $0x10] sm:$0xff]
    %v5137 = vld [vmem:[%s7 + $0x18] sm:$0xff]
    %v5138 = vld [vmem:[%s7 + $0x20] sm:$0xff]
    %v5139 = vld [vmem:[%s7 + $0x28] sm:$0xff]
    %v5140 = vld [vmem:[%s7 + $0x30] sm:$0xff]
    %v5141 = vld [vmem:[%s7 + $0x38] sm:$0xff]
    %v5142 = vld [vmem:[%s7 + $0x40] sm:$0xff]
    %v5143 = vld [vmem:[%s7 + $0x48] sm:$0xff]
    %v5144 = vld [vmem:[%s7 + $0x50] sm:$0xff]
    %v5145 = vld [vmem:[%s7 + $0x58] sm:$0xff]
    %v5146 = vld [vmem:[%s7 + $0x60] sm:$0xff]
    %v5147 = vld [vmem:[%s7 + $0x68] sm:$0xff]
    %v5148 = vld [vmem:[%s7 + $0x70] sm:$0xff]
    %v5149 = vld [vmem:[%s7 + $0x78] sm:$0xff]
    %v5150 = vld [vmem:[%s7 + $0x80] sm:$0xff]
    %v5151 = vld [vmem:[%s7 + $0x88] sm:$0xff]
    %v5152 = vld [vmem:[%s7 + $0x90] sm:$0xff]
    %v5153 = vld [vmem:[%s7 + $0x98] sm:$0xff]
    %v5154 = vld [vmem:[%s7 + $0xa0] sm:$0xff]
    %v5155 = vld [vmem:[%s7 + $0xa8] sm:$0xff]
    %v5156 = vld [vmem:[%s7 + $0xb0] sm:$0xff]
    %v5157 = vld [vmem:[%s7 + $0xb8] sm:$0xff]
    %v5158 = vld [vmem:[%s7 + $0xc0] sm:$0xff]
    %v5159 = vld [vmem:[%s7 + $0xc8] sm:$0xff]
    %v5160 = vld [vmem:[%s7 + $0xd0] sm:$0xff]
    %v5161 = vld [vmem:[%s7 + $0xd8] sm:$0xff]
    %v5162 = vld [vmem:[%s7 + $0xe0] sm:$0xff]
    %v5163 = vld [vmem:[%s7 + $0xe8] sm:$0xff]
    %v5164 = vld [vmem:[%s7 + $0xf0] sm:$0xff]
    %v5165 = vld [vmem:[%s7 + $0xf8] sm:$0xff]
    %v5166 = vld [vmem:[%s7 + $0x100] sm:$0xff]
    %v5167 = vld [vmem:[%s7 + $0x108] sm:$0xff]
    %v5168 = vld [vmem:[%s7 + $0x110] sm:$0xff]
    %v5169 = vld [vmem:[%s7 + $0x118] sm:$0xff]
    %v5170 = vld [vmem:[%s7 + $0x120] sm:$0xff]
    %v5171 = vld [vmem:[%s7 + $0x128] sm:$0xff]
    %v5172 = vld [vmem:[%s7 + $0x130] sm:$0xff]
    %v5173 = vld [vmem:[%s7 + $0x138] sm:$0xff]
    %v5174 = vld [vmem:[%s7 + $0x140] sm:$0xff]
    %v5175 = vld [vmem:[%s7 + $0x148] sm:$0xff]
    %v5176 = vld [vmem:[%s7 + $0x150] sm:$0xff]
    %v5177 = vld [vmem:[%s7 + $0x158] sm:$0xff]
    %v5178 = vld [vmem:[%s7 + $0x160] sm:$0xff]
    %v5179 = vld [vmem:[%s7 + $0x168] sm:$0xff]
    %v5180 = vld [vmem:[%s7 + $0x170] sm:$0xff]
    %v5181 = vld [vmem:[%s7 + $0x178] sm:$0xff]
    %v5182 = vld [vmem:[%s7 + $0x180] sm:$0xff]
    %v5183 = vld [vmem:[%s7 + $0x188] sm:$0xff]
    %v5184 = vld [vmem:[%s7 + $0x190] sm:$0xff]
    %v5185 = vld [vmem:[%s7 + $0x198] sm:$0xff]
    %v5186 = vld [vmem:[%s7 + $0x1a0] sm:$0xff]
    %v5187 = vld [vmem:[%s7 + $0x1a8] sm:$0xff]
    %v5188 = vld [vmem:[%s7 + $0x1b0] sm:$0xff]
    %v5189 = vld [vmem:[%s7 + $0x1b8] sm:$0xff]
    %v5190 = vld [vmem:[%s7 + $0x1c0] sm:$0xff]
    %v5191 = vld [vmem:[%s7 + $0x1c8] sm:$0xff]
    %v5192 = vld [vmem:[%s7 + $0x1d0] sm:$0xff]
    %v5193 = vld [vmem:[%s7 + $0x1d8] sm:$0xff]
    %v5194 = vld [vmem:[%s7 + $0x1e0] sm:$0xff]
    %v5195 = vld [vmem:[%s7 + $0x1e8] sm:$0xff]
    %v5196 = vld [vmem:[%s7 + $0x1f0] sm:$0xff]
    %v5197 = vld [vmem:[%s7 + $0x1f8] sm:$0xff]
    %5199 = vset.pattern.permute.xlu0 0
    %5200 = vperm.xlu0 %5199, %v5134
    %v5201 = vpop.permute.xlu0 %5200
    %5204 = vset.pattern.permute.xlu0 0
    %5205 = vperm.xlu0 %5204, %v5135
    %v5206 = vpop.permute.xlu0 %5205
    %5209 = vset.pattern.permute.xlu0 0
    %5210 = vperm.xlu0 %5209, %v5136
    %v5211 = vpop.permute.xlu0 %5210
    %5214 = vset.pattern.permute.xlu0 0
    %5215 = vperm.xlu0 %5214, %v5137
    %v5216 = vpop.permute.xlu0 %5215
    %5219 = vset.pattern.permute.xlu0 0
    %5220 = vperm.xlu0 %5219, %v5138
    %v5221 = vpop.permute.xlu0 %5220
    %5224 = vset.pattern.permute.xlu0 0
    %5225 = vperm.xlu0 %5224, %v5139
    %v5226 = vpop.permute.xlu0 %5225
    %5229 = vset.pattern.permute.xlu0 0
    %5230 = vperm.xlu0 %5229, %v5140
    %v5231 = vpop.permute.xlu0 %5230
    %5234 = vset.pattern.permute.xlu0 0
    %5235 = vperm.xlu0 %5234, %v5141
    %v5236 = vpop.permute.xlu0 %5235
    %5239 = vset.pattern.permute.xlu0 0
    %5240 = vperm.xlu0 %5239, %v5142
    %v5241 = vpop.permute.xlu0 %5240
    %5244 = vset.pattern.permute.xlu0 0
    %5245 = vperm.xlu0 %5244, %v5143
    %v5246 = vpop.permute.xlu0 %5245
    %5249 = vset.pattern.permute.xlu0 0
    %5250 = vperm.xlu0 %5249, %v5144
    %v5251 = vpop.permute.xlu0 %5250
    %5254 = vset.pattern.permute.xlu0 0
    %5255 = vperm.xlu0 %5254, %v5145
    %v5256 = vpop.permute.xlu0 %5255
    %5259 = vset.pattern.permute.xlu0 0
    %5260 = vperm.xlu0 %5259, %v5146
    %v5261 = vpop.permute.xlu0 %5260
    %5264 = vset.pattern.permute.xlu0 0
    %5265 = vperm.xlu0 %5264, %v5147
    %v5266 = vpop.permute.xlu0 %5265
    %5269 = vset.pattern.permute.xlu0 0
    %5270 = vperm.xlu0 %5269, %v5148
    %v5271 = vpop.permute.xlu0 %5270
    %5274 = vset.pattern.permute.xlu0 0
    %5275 = vperm.xlu0 %5274, %v5149
    %v5276 = vpop.permute.xlu0 %5275
    %5279 = vset.pattern.permute.xlu0 0
    %5280 = vperm.xlu0 %5279, %v5150
    %v5281 = vpop.permute.xlu0 %5280
    %5284 = vset.pattern.permute.xlu0 0
    %5285 = vperm.xlu0 %5284, %v5151
    %v5286 = vpop.permute.xlu0 %5285
    %5289 = vset.pattern.permute.xlu0 0
    %5290 = vperm.xlu0 %5289, %v5152
    %v5291 = vpop.permute.xlu0 %5290
    %5294 = vset.pattern.permute.xlu0 0
    %5295 = vperm.xlu0 %5294, %v5153
    %v5296 = vpop.permute.xlu0 %5295
    %5299 = vset.pattern.permute.xlu0 0
    %5300 = vperm.xlu0 %5299, %v5154
    %v5301 = vpop.permute.xlu0 %5300
    %5304 = vset.pattern.permute.xlu0 0
    %5305 = vperm.xlu0 %5304, %v5155
    %v5306 = vpop.permute.xlu0 %5305
    %5309 = vset.pattern.permute.xlu0 0
    %5310 = vperm.xlu0 %5309, %v5156
    %v5311 = vpop.permute.xlu0 %5310
    %5314 = vset.pattern.permute.xlu0 0
    %5315 = vperm.xlu0 %5314, %v5157
    %v5316 = vpop.permute.xlu0 %5315
    %5319 = vset.pattern.permute.xlu0 0
    %5320 = vperm.xlu0 %5319, %v5158
    %v5321 = vpop.permute.xlu0 %5320
    %5324 = vset.pattern.permute.xlu0 0
    %5325 = vperm.xlu0 %5324, %v5159
    %v5326 = vpop.permute.xlu0 %5325
    %5329 = vset.pattern.permute.xlu0 0
    %5330 = vperm.xlu0 %5329, %v5160
    %v5331 = vpop.permute.xlu0 %5330
    %5334 = vset.pattern.permute.xlu0 0
    %5335 = vperm.xlu0 %5334, %v5161
    %v5336 = vpop.permute.xlu0 %5335
    %5339 = vset.pattern.permute.xlu0 0
    %5340 = vperm.xlu0 %5339, %v5162
    %v5341 = vpop.permute.xlu0 %5340
    %5344 = vset.pattern.permute.xlu0 0
    %5345 = vperm.xlu0 %5344, %v5163
    %v5346 = vpop.permute.xlu0 %5345
    %5349 = vset.pattern.permute.xlu0 0
    %5350 = vperm.xlu0 %5349, %v5164
    %v5351 = vpop.permute.xlu0 %5350
    %5354 = vset.pattern.permute.xlu0 0
    %5355 = vperm.xlu0 %5354, %v5165
    %v5356 = vpop.permute.xlu0 %5355
    %5359 = vset.pattern.permute.xlu0 0
    %5360 = vperm.xlu0 %5359, %v5166
    %v5361 = vpop.permute.xlu0 %5360
    %5364 = vset.pattern.permute.xlu0 0
    %5365 = vperm.xlu0 %5364, %v5167
    %v5366 = vpop.permute.xlu0 %5365
    %5369 = vset.pattern.permute.xlu0 0
    %5370 = vperm.xlu0 %5369, %v5168
    %v5371 = vpop.permute.xlu0 %5370
    %5374 = vset.pattern.permute.xlu0 0
    %5375 = vperm.xlu0 %5374, %v5169
    %v5376 = vpop.permute.xlu0 %5375
    %5379 = vset.pattern.permute.xlu0 0
    %5380 = vperm.xlu0 %5379, %v5170
    %v5381 = vpop.permute.xlu0 %5380
    %5384 = vset.pattern.permute.xlu0 0
    %5385 = vperm.xlu0 %5384, %v5171
    %v5386 = vpop.permute.xlu0 %5385
    %5389 = vset.pattern.permute.xlu0 0
    %5390 = vperm.xlu0 %5389, %v5172
    %v5391 = vpop.permute.xlu0 %5390
    %5394 = vset.pattern.permute.xlu0 0
    %5395 = vperm.xlu0 %5394, %v5173
    %v5396 = vpop.permute.xlu0 %5395
    %5399 = vset.pattern.permute.xlu0 0
    %5400 = vperm.xlu0 %5399, %v5174
    %v5401 = vpop.permute.xlu0 %5400
    %5404 = vset.pattern.permute.xlu0 0
    %5405 = vperm.xlu0 %5404, %v5175
    %v5406 = vpop.permute.xlu0 %5405
    %5409 = vset.pattern.permute.xlu0 0
    %5410 = vperm.xlu0 %5409, %v5176
    %v5411 = vpop.permute.xlu0 %5410
    %5414 = vset.pattern.permute.xlu0 0
    %5415 = vperm.xlu0 %5414, %v5177
    %v5416 = vpop.permute.xlu0 %5415
    %5419 = vset.pattern.permute.xlu0 0
    %5420 = vperm.xlu0 %5419, %v5178
    %v5421 = vpop.permute.xlu0 %5420
    %5424 = vset.pattern.permute.xlu0 0
    %5425 = vperm.xlu0 %5424, %v5179
    %v5426 = vpop.permute.xlu0 %5425
    %5429 = vset.pattern.permute.xlu0 0
    %5430 = vperm.xlu0 %5429, %v5180
    %v5431 = vpop.permute.xlu0 %5430
    %5434 = vset.pattern.permute.xlu0 0
    %5435 = vperm.xlu0 %5434, %v5181
    %v5436 = vpop.permute.xlu0 %5435
    %5439 = vset.pattern.permute.xlu0 0
    %5440 = vperm.xlu0 %5439, %v5182
    %v5441 = vpop.permute.xlu0 %5440
    %5444 = vset.pattern.permute.xlu0 0
    %5445 = vperm.xlu0 %5444, %v5183
    %v5446 = vpop.permute.xlu0 %5445
    %5449 = vset.pattern.permute.xlu0 0
    %5450 = vperm.xlu0 %5449, %v5184
    %v5451 = vpop.permute.xlu0 %5450
    %5454 = vset.pattern.permute.xlu0 0
    %5455 = vperm.xlu0 %5454, %v5185
    %v5456 = vpop.permute.xlu0 %5455
    %5459 = vset.pattern.permute.xlu0 0
    %5460 = vperm.xlu0 %5459, %v5186
    %v5461 = vpop.permute.xlu0 %5460
    %5464 = vset.pattern.permute.xlu0 0
    %5465 = vperm.xlu0 %5464, %v5187
    %v5466 = vpop.permute.xlu0 %5465
    %5469 = vset.pattern.permute.xlu0 0
    %5470 = vperm.xlu0 %5469, %v5188
    %v5471 = vpop.permute.xlu0 %5470
    %5474 = vset.pattern.permute.xlu0 0
    %5475 = vperm.xlu0 %5474, %v5189
    %v5476 = vpop.permute.xlu0 %5475
    %5479 = vset.pattern.permute.xlu0 0
    %5480 = vperm.xlu0 %5479, %v5190
    %v5481 = vpop.permute.xlu0 %5480
    %5484 = vset.pattern.permute.xlu0 0
    %5485 = vperm.xlu0 %5484, %v5191
    %v5486 = vpop.permute.xlu0 %5485
    %5489 = vset.pattern.permute.xlu0 0
    %5490 = vperm.xlu0 %5489, %v5192
    %v5491 = vpop.permute.xlu0 %5490
    %5494 = vset.pattern.permute.xlu0 0
    %5495 = vperm.xlu0 %5494, %v5193
    %v5496 = vpop.permute.xlu0 %5495
    %5499 = vset.pattern.permute.xlu0 0
    %5500 = vperm.xlu0 %5499, %v5194
    %v5501 = vpop.permute.xlu0 %5500
    %5504 = vset.pattern.permute.xlu0 0
    %5505 = vperm.xlu0 %5504, %v5195
    %v5506 = vpop.permute.xlu0 %5505
    %5509 = vset.pattern.permute.xlu0 0
    %5510 = vperm.xlu0 %5509, %v5196
    %v5511 = vpop.permute.xlu0 %5510
    %5514 = vset.pattern.permute.xlu0 0
    %5515 = vperm.xlu0 %5514, %v5197
    %v5516 = vpop.permute.xlu0 %5515
    %v5518 = vmul.f32 %v5070, %v5201
    %v5519 = vmul.f32 %v5071, %v5206
    %v5520 = vmul.f32 %v5072, %v5211
    %v5521 = vmul.f32 %v5073, %v5216
    %v5522 = vmul.f32 %v5074, %v5221
    %v5523 = vmul.f32 %v5075, %v5226
    %v5524 = vmul.f32 %v5076, %v5231
    %v5525 = vmul.f32 %v5077, %v5236
    %v5526 = vmul.f32 %v5078, %v5241
    %v5527 = vmul.f32 %v5079, %v5246
    %v5528 = vmul.f32 %v5080, %v5251
    %v5529 = vmul.f32 %v5081, %v5256
    %v5530 = vmul.f32 %v5082, %v5261
    %v5531 = vmul.f32 %v5083, %v5266
    %v5532 = vmul.f32 %v5084, %v5271
    %v5533 = vmul.f32 %v5085, %v5276
    %v5534 = vmul.f32 %v5086, %v5281
    %v5535 = vmul.f32 %v5087, %v5286
    %v5536 = vmul.f32 %v5088, %v5291
    %v5537 = vmul.f32 %v5089, %v5296
    %v5538 = vmul.f32 %v5090, %v5301
    %v5539 = vmul.f32 %v5091, %v5306
    %v5540 = vmul.f32 %v5092, %v5311
    %v5541 = vmul.f32 %v5093, %v5316
    %v5542 = vmul.f32 %v5094, %v5321
    %v5543 = vmul.f32 %v5095, %v5326
    %v5544 = vmul.f32 %v5096, %v5331
    %v5545 = vmul.f32 %v5097, %v5336
    %v5546 = vmul.f32 %v5098, %v5341
    %v5547 = vmul.f32 %v5099, %v5346
    %v5548 = vmul.f32 %v5100, %v5351
    %v5549 = vmul.f32 %v5101, %v5356
    %v5550 = vmul.f32 %v5102, %v5361
    %v5551 = vmul.f32 %v5103, %v5366
    %v5552 = vmul.f32 %v5104, %v5371
    %v5553 = vmul.f32 %v5105, %v5376
    %v5554 = vmul.f32 %v5106, %v5381
    %v5555 = vmul.f32 %v5107, %v5386
    %v5556 = vmul.f32 %v5108, %v5391
    %v5557 = vmul.f32 %v5109, %v5396
    %v5558 = vmul.f32 %v5110, %v5401
    %v5559 = vmul.f32 %v5111, %v5406
    %v5560 = vmul.f32 %v5112, %v5411
    %v5561 = vmul.f32 %v5113, %v5416
    %v5562 = vmul.f32 %v5114, %v5421
    %v5563 = vmul.f32 %v5115, %v5426
    %v5564 = vmul.f32 %v5116, %v5431
    %v5565 = vmul.f32 %v5117, %v5436
    %v5566 = vmul.f32 %v5118, %v5441
    %v5567 = vmul.f32 %v5119, %v5446
    %v5568 = vmul.f32 %v5120, %v5451
    %v5569 = vmul.f32 %v5121, %v5456
    %v5570 = vmul.f32 %v5122, %v5461
    %v5571 = vmul.f32 %v5123, %v5466
    %v5572 = vmul.f32 %v5124, %v5471
    %v5573 = vmul.f32 %v5125, %v5476
    %v5574 = vmul.f32 %v5126, %v5481
    %v5575 = vmul.f32 %v5127, %v5486
    %v5576 = vmul.f32 %v5128, %v5491
    %v5577 = vmul.f32 %v5129, %v5496
    %v5578 = vmul.f32 %v5130, %v5501
    %v5579 = vmul.f32 %v5131, %v5506
    %v5580 = vmul.f32 %v5132, %v5511
    %v5581 = vmul.f32 %v5133, %v5516
    %vm5582 = vcmask 64512
    %v5583 = vsel %vm5582, %v5518, 0.0
    %v5584 = vsel %vm5582, %v5519, 0.0
    %v5585 = vadd.f32 %v5583, %v5584
    %v5586 = vsel %vm5582, %v5520, 0.0
    %v5587 = vadd.f32 %v5585, %v5586
    %v5588 = vsel %vm5582, %v5521, 0.0
    %v5589 = vadd.f32 %v5587, %v5588
    %v5590 = vsel %vm5582, %v5522, 0.0
    %v5591 = vadd.f32 %v5589, %v5590
    %v5592 = vsel %vm5582, %v5523, 0.0
    %v5593 = vadd.f32 %v5591, %v5592
    %v5594 = vsel %vm5582, %v5524, 0.0
    %v5595 = vadd.f32 %v5593, %v5594
    %v5596 = vsel %vm5582, %v5525, 0.0
    %v5597 = vadd.f32 %v5595, %v5596
    %v5598 = vsel %vm5582, %v5526, 0.0
    %v5599 = vadd.f32 %v5597, %v5598
    %v5600 = vsel %vm5582, %v5527, 0.0
    %v5601 = vadd.f32 %v5599, %v5600
    %v5602 = vsel %vm5582, %v5528, 0.0
    %v5603 = vadd.f32 %v5601, %v5602
    %v5604 = vsel %vm5582, %v5529, 0.0
    %v5605 = vadd.f32 %v5603, %v5604
    %v5606 = vsel %vm5582, %v5530, 0.0
    %v5607 = vadd.f32 %v5605, %v5606
    %v5608 = vsel %vm5582, %v5531, 0.0
    %v5609 = vadd.f32 %v5607, %v5608
    %v5610 = vsel %vm5582, %v5532, 0.0
    %v5611 = vadd.f32 %v5609, %v5610
    %v5612 = vsel %vm5582, %v5533, 0.0
    %v5613 = vadd.f32 %v5611, %v5612
    %v5614 = vsel %vm5582, %v5534, 0.0
    %v5615 = vadd.f32 %v5613, %v5614
    %v5616 = vsel %vm5582, %v5535, 0.0
    %v5617 = vadd.f32 %v5615, %v5616
    %v5618 = vsel %vm5582, %v5536, 0.0
    %v5619 = vadd.f32 %v5617, %v5618
    %v5620 = vsel %vm5582, %v5537, 0.0
    %v5621 = vadd.f32 %v5619, %v5620
    %v5622 = vsel %vm5582, %v5538, 0.0
    %v5623 = vadd.f32 %v5621, %v5622
    %v5624 = vsel %vm5582, %v5539, 0.0
    %v5625 = vadd.f32 %v5623, %v5624
    %v5626 = vsel %vm5582, %v5540, 0.0
    %v5627 = vadd.f32 %v5625, %v5626
    %v5628 = vsel %vm5582, %v5541, 0.0
    %v5629 = vadd.f32 %v5627, %v5628
    %v5630 = vsel %vm5582, %v5542, 0.0
    %v5631 = vadd.f32 %v5629, %v5630
    %v5632 = vsel %vm5582, %v5543, 0.0
    %v5633 = vadd.f32 %v5631, %v5632
    %v5634 = vsel %vm5582, %v5544, 0.0
    %v5635 = vadd.f32 %v5633, %v5634
    %v5636 = vsel %vm5582, %v5545, 0.0
    %v5637 = vadd.f32 %v5635, %v5636
    %v5638 = vsel %vm5582, %v5546, 0.0
    %v5639 = vadd.f32 %v5637, %v5638
    %v5640 = vsel %vm5582, %v5547, 0.0
    %v5641 = vadd.f32 %v5639, %v5640
    %v5642 = vsel %vm5582, %v5548, 0.0
    %v5643 = vadd.f32 %v5641, %v5642
    %v5644 = vsel %vm5582, %v5549, 0.0
    %v5645 = vadd.f32 %v5643, %v5644
    %v5646 = vsel %vm5582, %v5550, 0.0
    %v5647 = vadd.f32 %v5645, %v5646
    %v5648 = vsel %vm5582, %v5551, 0.0
    %v5649 = vadd.f32 %v5647, %v5648
    %v5650 = vsel %vm5582, %v5552, 0.0
    %v5651 = vadd.f32 %v5649, %v5650
    %v5652 = vsel %vm5582, %v5553, 0.0
    %v5653 = vadd.f32 %v5651, %v5652
    %v5654 = vsel %vm5582, %v5554, 0.0
    %v5655 = vadd.f32 %v5653, %v5654
    %v5656 = vsel %vm5582, %v5555, 0.0
    %v5657 = vadd.f32 %v5655, %v5656
    %v5658 = vsel %vm5582, %v5556, 0.0
    %v5659 = vadd.f32 %v5657, %v5658
    %v5660 = vsel %vm5582, %v5557, 0.0
    %v5661 = vadd.f32 %v5659, %v5660
    %v5662 = vsel %vm5582, %v5558, 0.0
    %v5663 = vadd.f32 %v5661, %v5662
    %v5664 = vsel %vm5582, %v5559, 0.0
    %v5665 = vadd.f32 %v5663, %v5664
    %v5666 = vsel %vm5582, %v5560, 0.0
    %v5667 = vadd.f32 %v5665, %v5666
    %v5668 = vsel %vm5582, %v5561, 0.0
    %v5669 = vadd.f32 %v5667, %v5668
    %v5670 = vsel %vm5582, %v5562, 0.0
    %v5671 = vadd.f32 %v5669, %v5670
    %v5672 = vsel %vm5582, %v5563, 0.0
    %v5673 = vadd.f32 %v5671, %v5672
    %v5674 = vsel %vm5582, %v5564, 0.0
    %v5675 = vadd.f32 %v5673, %v5674
    %v5676 = vsel %vm5582, %v5565, 0.0
    %v5677 = vadd.f32 %v5675, %v5676
    %v5678 = vsel %vm5582, %v5566, 0.0
    %v5679 = vadd.f32 %v5677, %v5678
    %v5680 = vsel %vm5582, %v5567, 0.0
    %v5681 = vadd.f32 %v5679, %v5680
    %v5682 = vsel %vm5582, %v5568, 0.0
    %v5683 = vadd.f32 %v5681, %v5682
    %v5684 = vsel %vm5582, %v5569, 0.0
    %v5685 = vadd.f32 %v5683, %v5684
    %v5686 = vsel %vm5582, %v5570, 0.0
    %v5687 = vadd.f32 %v5685, %v5686
    %v5688 = vsel %vm5582, %v5571, 0.0
    %v5689 = vadd.f32 %v5687, %v5688
    %v5690 = vsel %vm5582, %v5572, 0.0
    %v5691 = vadd.f32 %v5689, %v5690
    %v5692 = vsel %vm5582, %v5573, 0.0
    %v5693 = vadd.f32 %v5691, %v5692
    %v5694 = vsel %vm5582, %v5574, 0.0
    %v5695 = vadd.f32 %v5693, %v5694
    %v5696 = vsel %vm5582, %v5575, 0.0
    %v5697 = vadd.f32 %v5695, %v5696
    %v5698 = vsel %vm5582, %v5576, 0.0
    %v5699 = vadd.f32 %v5697, %v5698
    %v5700 = vsel %vm5582, %v5577, 0.0
    %v5701 = vadd.f32 %v5699, %v5700
    %v5702 = vsel %vm5582, %v5578, 0.0
    %v5703 = vadd.f32 %v5701, %v5702
    %v5704 = vsel %vm5582, %v5579, 0.0
    %v5705 = vadd.f32 %v5703, %v5704
    %v5706 = vsel %vm5582, %v5580, 0.0
    %v5707 = vadd.f32 %v5705, %v5706
    %v5708 = vsel %vm5582, %v5581, 0.0
    %v5709 = vadd.f32 %v5707, %v5708
    %v5710 = vrot.slane %v5709, 4
    %v5711 = vadd.f32 %v5709, %v5710
    %v5712 = vrot.slane %v5711, 2
    %v5713 = vadd.f32 %v5711, %v5712
    %v5714 = vrot.slane %v5713, 1
    %v5715 = vadd.f32 %v5713, %v5714
    %v5716 = vld [vmem:[#allocation2] sm:$0x1]
    %5718 = vset.pattern.permute.xlu0 0
    %5719 = vperm.xlu0 %5718, %v5716
    %v5720 = vpop.permute.xlu0 %5719
    %v5722 = vlaneseq
    %v5723 = vshrl.u32 %v5722, 7
    %v5724 = vsub.s32 0, %v5723
    %v5725 = vrot.slane %v5720, %v5724
    %v5726 = vadd.f32 %v5715, %v5725
    %vm5727 = vcmask 57344
    %5728 = vst.msk [vmem:[#allocation3] sm:$0x1] %vm5727, %v5726
    // Predicated region
    $region38: #{tpu_custom_call.1} parent=1 // pred_check
      _
    $region39: #{tpu_custom_call.1} parent=1 // pred_check_branch
      %5730 = sbr.rel (0) target = $region41
    $region40: #{tpu_custom_call.1} parent=1 // pred_region
      %s5732 = ssub.s32 16, 16
      %5733 = vsyncadd [#allocation4], %s5732
      %s5735 = sshll.u32 [#allocation3], 4
      %s5736 = int_to_ptr.vmem [resolvable:$true] %s5735
      %5738 = dma.vmem_to_hbm [thread:$0]  %s5736, 16, %s9, [#allocation4]
    $region41: #{tpu_custom_call.1} parent=1 // pred_fallthru
      _
    // Predicated region
    $region42: #{tpu_custom_call.1} parent=1 // pred_check
      _
    $region43: #{tpu_custom_call.1} parent=1 // pred_check_branch
      %5740 = sbr.rel (0) target = $region45
    $region44: #{tpu_custom_call.1} parent=1 // pred_region
      %5741 = dma.done [#allocation4], 16
    $region45: #{tpu_custom_call.1} parent=1 // pred_fallthru
      _
    %5742 = vsyncpa [#allocation4], 1

</llo_original>
